<compile_context>
chip_gen: v5e
topology: v5e:2x2
jax: 0.10.0
libtpu: 0.0.40
codegen_flags: <defaults>
</compile_context>

<pallas_src>
from collections import namedtuple

import numpy as np
import jax
import jax.numpy as jnp
from jax.experimental import pallas as pl
from jax.experimental.pallas import tpu as pltpu

Genotype = namedtuple("Genotype", "normal normal_concat reduce reduce_concat")

GENOTYPE = Genotype(
    normal=[("sep_conv_3x3", 0, 1.0), ("skip_connect", 1, 1.0),
            ("sep_conv_3x3", 1, 1.0), ("avg_pool_3x3", 0, 1.0),
            ("skip_connect", 2, 1.0), ("max_pool_3x3", 1, 1.0),
            ("sep_conv_3x3", 3, 1.0), ("skip_connect", 0, 1.0)],
    normal_concat=[2, 3, 4, 5],
    reduce=[("max_pool_3x3", 0, 1.0), ("sep_conv_3x3", 1, 1.0),
            ("skip_connect", 2, 1.0), ("avg_pool_3x3", 0, 1.0),
            ("max_pool_3x3", 1, 1.0), ("skip_connect", 3, 1.0),
            ("avg_pool_3x3", 1, 1.0), ("sep_conv_3x3", 2, 1.0)],
    reduce_concat=[2, 3, 4, 5],
)

BN_EPS = 1e-5
NEG_INF = -3.0e38


def _round_up(n, m):
    return ((n + m - 1) // m) * m


def _pad_lanes(a, mpad):
    m = a.shape[-1]
    if m == mpad:
        return a
    pad = [(0, 0)] * (a.ndim - 1) + [(0, mpad - m)]
    return jnp.pad(a, pad)


# ----------------------------------------------------------------------------
# One-time probe: is pltpu.roll supported here, and which direction is it?
#   +1 -> matches jnp.roll semantics, -1 -> opposite, 0 -> unsupported (fallback)
# ----------------------------------------------------------------------------
_ROLL_MODE = None


def _get_roll_mode():
    global _ROLL_MODE
    if _ROLL_MODE is not None:
        return _ROLL_MODE
    mode = None
    try:
        for rows, m, s in ((4, 512, 17), (4, 128, 111)):
            xn = np.arange(rows * m, dtype=np.float32).reshape(rows, m)

            def _probe_kernel(x_ref, o_ref, _s=s):
                o_ref[...] = pltpu.roll(x_ref[...], _s, 1)

            y = pl.pallas_call(
                _probe_kernel,
                out_shape=jax.ShapeDtypeStruct((rows, m), jnp.float32),
            )(jnp.asarray(xn))
            y = np.asarray(jax.block_until_ready(y))
            if np.array_equal(y, np.roll(xn, s, 1)):
                this = 1
            elif np.array_equal(y, np.roll(xn, -s, 1)):
                this = -1
            else:
                this = 0
            if mode is None:
                mode = this
            elif mode != this:
                mode = 0
            if mode == 0:
                break
    except Exception:  # lowering / runtime failure -> safe fallback path
        mode = 0
    _ROLL_MODE = mode
    return _ROLL_MODE


# ----------------------------------------------------------------------------
# Pallas kernels (all single-invocation, full-array VMEM blocks, lane-dense
# [Cout, M] outputs).
# ----------------------------------------------------------------------------
def _mm_bias_kernel(x_ref, w_ref, b_ref, o_ref):
    o_ref[...] = (jnp.dot(w_ref[...], x_ref[...],
                          preferred_element_type=jnp.float32) + b_ref[...])


def _relu_mm_bias_kernel(x_ref, w_ref, b_ref, o_ref):
    x = jnp.maximum(x_ref[...], 0.0)
    o_ref[...] = (jnp.dot(w_ref[...], x,
                          preferred_element_type=jnp.float32) + b_ref[...])


def matmul_bias(x, w, b, relu_input=False):
    """y[Cout, M] = w[Cout, K] @ relu?(x[K, M]) + b[Cout, 1] (BN pre-folded)."""
    K, M = x.shape
    Cout = w.shape[0]
    kernel = _relu_mm_bias_kernel if relu_input else _mm_bias_kernel
    return pl.pallas_call(
        kernel,
        out_shape=jax.ShapeDtypeStruct((Cout, M), jnp.float32),
    )(x, w, b.reshape(Cout, 1))


def _dw3x3_roll(v, dw_ref, m_ref, shifts):
    """ReLU -> 9-tap depthwise 3x3 using in-register lane rolls (XLU) + masks."""
    vr = jnp.maximum(v, 0.0)
    acc = None
    for t in range(9):
        tap = vr if shifts[t] == 0 else pltpu.roll(vr, shifts[t], 1)
        term = dw_ref[t] * (tap * m_ref[t])
        acc = term if acc is None else acc + term
    return acc


def _make_sep_s1_kernel(shifts, has_res):
    """Fully fused stride-1 SepConv: both dw3x3 stages via in-kernel rolls."""
    if has_res:
        def kernel(x_ref, m_ref, dw1_ref, pw1_ref, b1_ref,
                   dw2_ref, pw2_ref, b2_ref, res_ref, o_ref):
            h = (jnp.dot(pw1_ref[...], _dw3x3_roll(x_ref[...], dw1_ref, m_ref, shifts),
                         preferred_element_type=jnp.float32) + b1_ref[...])
            o_ref[...] = (jnp.dot(pw2_ref[...], _dw3x3_roll(h, dw2_ref, m_ref, shifts),
                                  preferred_element_type=jnp.float32)
                          + b2_ref[...] + res_ref[...])
    else:
        def kernel(x_ref, m_ref, dw1_ref, pw1_ref, b1_ref,
                   dw2_ref, pw2_ref, b2_ref, o_ref):
            h = (jnp.dot(pw1_ref[...], _dw3x3_roll(x_ref[...], dw1_ref, m_ref, shifts),
                         preferred_element_type=jnp.float32) + b1_ref[...])
            o_ref[...] = (jnp.dot(pw2_ref[...], _dw3x3_roll(h, dw2_ref, m_ref, shifts),
                                  preferred_element_type=jnp.float32) + b2_ref[...])
    return kernel


def _make_sep_s2_kernel(shifts, has_res):
    """Fused stride-2 SepConv: stage-1 from pre-extracted taps, stage-2 via rolls."""
    def stage1(taps_ref, dw1_ref, pw1_ref, b1_ref):
        acc = None
        for t in range(9):
            term = dw1_ref[t] * jnp.maximum(taps_ref[t], 0.0)
            acc = term if acc is None else acc + term
        return (jnp.dot(pw1_ref[...], acc,
                        preferred_element_type=jnp.float32) + b1_ref[...])

    if has_res:
        def kernel(taps_ref, m_ref, dw1_ref, pw1_ref, b1_ref,
                   dw2_ref, pw2_ref, b2_ref, res_ref, o_ref):
            h = stage1(taps_ref, dw1_ref, pw1_ref, b1_ref)
            o_ref[...] = (jnp.dot(pw2_ref[...], _dw3x3_roll(h, dw2_ref, m_ref, shifts),
                                  preferred_element_type=jnp.float32)
                          + b2_ref[...] + res_ref[...])
    else:
        def kernel(taps_ref, m_ref, dw1_ref, pw1_ref, b1_ref,
                   dw2_ref, pw2_ref, b2_ref, o_ref):
            h = stage1(taps_ref, dw1_ref, pw1_ref, b1_ref)
            o_ref[...] = (jnp.dot(pw2_ref[...], _dw3x3_roll(h, dw2_ref, m_ref, shifts),
                                  preferred_element_type=jnp.float32) + b2_ref[...])
    return kernel


# Fallback (two kernels per SepConv) used only when pltpu.roll is unavailable.
def _sep_stage_kernel(taps_ref, dw_ref, pw_ref, b_ref, o_ref):
    acc = dw_ref[0] * jnp.maximum(taps_ref[0], 0.0)
    for t in range(1, 9):
        acc = acc + dw_ref[t] * jnp.maximum(taps_ref[t], 0.0)
    o_ref[...] = (jnp.dot(pw_ref[...], acc,
                          preferred_element_type=jnp.float32) + b_ref[...])


def _sep_stage_res_kernel(taps_ref, dw_ref, pw_ref, b_ref, res_ref, o_ref):
    acc = dw_ref[0] * jnp.maximum(taps_ref[0], 0.0)
    for t in range(1, 9):
        acc = acc + dw_ref[t] * jnp.maximum(taps_ref[t], 0.0)
    o_ref[...] = (jnp.dot(pw_ref[...], acc,
                          preferred_element_type=jnp.float32)
                  + b_ref[...] + res_ref[...])


def _avg_pool_kernel(taps_ref, inv_ref, o_ref):
    acc = taps_ref[0]
    for t in range(1, 9):
        acc = acc + taps_ref[t]
    o_ref[...] = acc * inv_ref[...]


def _avg_pool_res_kernel(taps_ref, inv_ref, res_ref, o_ref):
    acc = taps_ref[0]
    for t in range(1, 9):
        acc = acc + taps_ref[t]
    o_ref[...] = acc * inv_ref[...] + res_ref[...]


def _max_pool_kernel(taps_ref, o_ref):
    acc = taps_ref[0]
    for t in range(1, 9):
        acc = jnp.maximum(acc, taps_ref[t])
    o_ref[...] = acc


def _max_pool_res_kernel(taps_ref, res_ref, o_ref):
    acc = taps_ref[0]
    for t in range(1, 9):
        acc = jnp.maximum(acc, taps_ref[t])
    o_ref[...] = acc + res_ref[...]


def _pool_fc_kernel(x_ref, pmat_ref, w_ref, b_ref, o_ref):
    # Global average pool (matmul with [M, N] averaging matrix) + Linear, fused.
    pooled = jnp.dot(x_ref[...], pmat_ref[...], preferred_element_type=jnp.float32)
    o_ref[...] = (jnp.dot(w_ref[...], pooled,
                          preferred_element_type=jnp.float32) + b_ref[...])


# ----------------------------------------------------------------------------
# JAX / numpy glue: tap extraction, roll masks, averaging counts
# ----------------------------------------------------------------------------
def extract_taps(x, k, stride, pad, pad_value):
    """x: [C, N, H, W] -> taps [k*k, C, N, Ho, Wo]."""
    C, N, H, W = x.shape
    Ho = (H + 2 * pad - k) // stride + 1
    Wo = (W + 2 * pad - k) // stride + 1
    xp = jnp.pad(x, ((0, 0), (0, 0), (pad, pad), (pad, pad)),
                 constant_values=pad_value)
    taps = []
    for dy in range(k):
        for dx in range(k):
            taps.append(xp[:, :, dy:dy + stride * (Ho - 1) + 1:stride,
                           dx:dx + stride * (Wo - 1) + 1:stride])
    return jnp.stack(taps, axis=0)


_MASK_CACHE = {}


def _masks_offsets(N, H, W, Mpad):
    """Boundary-validity masks [9, 1, Mpad] and flat tap offsets for 3x3/pad=1."""
    key = (N, H, W, Mpad)
    hit = _MASK_CACHE.get(key)
    if hit is not None:
        return hit
    M = N * H * W
    hh = np.arange(H)[:, None]
    ww = np.arange(W)[None, :]
    masks = np.zeros((9, 1, Mpad), np.float32)
    offs = []
    t = 0
    for dy in range(3):
        for dx in range(3):
            offs.append((dy - 1) * W + (dx - 1))
            valid = ((hh + dy - 1 >= 0) & (hh + dy - 1 < H) &
                     (ww + dx - 1 >= 0) & (ww + dx - 1 < W))          # [H, W]
            valid = np.broadcast_to(valid[None], (N, H, W)).reshape(M)
            masks[t, 0, :M] = valid.astype(np.float32)
            t += 1
    out = (jnp.asarray(masks), tuple(offs))
    _MASK_CACHE[key] = out
    return out


_INV_CACHE = {}


def _avg_inv(N, H, W, stride):
    """1/window-count table (count_include_pad=False) as a [1, N*Ho*Wo] constant."""
    key = (N, H, W, stride)
    hit = _INV_CACHE.get(key)
    if hit is not None:
        return hit
    ones = np.pad(np.ones((H, W), np.float32), ((1, 1), (1, 1)))
    Ho = (H + 2 - 3) // stride + 1
    Wo = (W + 2 - 3) // stride + 1
    cnt = np.zeros((Ho, Wo), np.float32)
    for dy in range(3):
        for dx in range(3):
            cnt += ones[dy:dy + stride * (Ho - 1) + 1:stride,
                        dx:dx + stride * (Wo - 1) + 1:stride]
    inv = np.broadcast_to((1.0 / cnt)[None], (N, Ho, Wo)).reshape(1, N * Ho * Wo)
    out = jnp.asarray(inv)
    _INV_CACHE[key] = out
    return out


# ----------------------------------------------------------------------------
# Deterministic parameter construction (synthetic eval-mode weights)
# ----------------------------------------------------------------------------
class PInit:
    def __init__(self, seed=0):
        self.key = jax.random.PRNGKey(seed)

    def _next(self):
        self.key, sub = jax.random.split(self.key)
        return sub

    def weight(self, shape, scale=0.1):
        return scale * jax.random.normal(self._next(), shape, jnp.float32)

    def bn(self, C):
        # eval-mode BatchNorm folded into per-channel scale/bias
        gamma = 1.0 + 0.1 * jax.random.normal(self._next(), (C,), jnp.float32)
        beta = 0.1 * jax.random.normal(self._next(), (C,), jnp.float32)
        mean = 0.1 * jax.random.normal(self._next(), (C,), jnp.float32)
        var = 1.0 + 0.1 * jnp.abs(jax.random.normal(self._next(), (C,), jnp.float32))
        scale = gamma / jnp.sqrt(var + BN_EPS)
        bias = beta - mean * scale
        return scale, bias


# ----------------------------------------------------------------------------
# Ops (ReLUConvBN, FactorizedReduce, SepConv, pools, identity)
# ----------------------------------------------------------------------------
def build_relu_conv_bn(pi, Cin, Cout):
    w = pi.weight((Cout, Cin))
    s, b = pi.bn(Cout)
    return {"w": w * s[:, None], "b": b}          # BN scale folded into weight


def apply_relu_conv_bn(p, x):
    C, N, H, W = x.shape
    y = matmul_bias(x.reshape(C, N * H * W), p["w"], p["b"], relu_input=True)
    return y.reshape(-1, N, H, W)


def build_fact_reduce(pi, Cin, Cout):
    c1 = Cout // 2
    w1 = pi.weight((c1, Cin))
    w2 = pi.weight((Cout - c1, Cin))
    s, b = pi.bn(Cout)
    # Block weight acting on stacked [x_even; x_odd]: both 1x1 convs + BN in one matmul.
    w = jnp.zeros((Cout, 2 * Cin), jnp.float32)
    w = w.at[:c1, :Cin].set(w1 * s[:c1, None])
    w = w.at[c1:, Cin:].set(w2 * s[c1:, None])
    return {"w": w, "b": b}


def apply_fact_reduce(p, x):
    Cin, N, H, W = x.shape
    x1 = x[:, :, ::2, ::2]
    x2 = x[:, :, 1::2, 1::2]
    Ho, Wo = x1.shape[2], x1.shape[3]
    xcat = jnp.concatenate([x1.reshape(Cin, -1), x2.reshape(Cin, -1)], axis=0)
    y = matmul_bias(xcat, p["w"], p["b"], relu_input=True)
    return y.reshape(-1, N, Ho, Wo)


def build_sep_conv(pi, C, stride):
    s1, b1 = pi.bn(C)
    s2, b2 = pi.bn(C)
    return {"stride": stride,
            "dw1": pi.weight((9, C, 1)), "pw1": pi.weight((C, C)) * s1[:, None],
            "b1": b1,
            "dw2": pi.weight((9, C, 1)), "pw2": pi.weight((C, C)) * s2[:, None],
            "b2": b2}


def _apply_sep_conv_twostage(p, x, residual=None):
    """Fallback path (no pltpu.roll): one kernel per SepConv stage."""
    C, N, H, W = x.shape
    taps = extract_taps(x, 3, p["stride"], 1, 0.0)
    Ho, Wo = taps.shape[3], taps.shape[4]
    M = N * Ho * Wo
    h = pl.pallas_call(
        _sep_stage_kernel, out_shape=jax.ShapeDtypeStruct((C, M), jnp.float32),
    )(taps.reshape(9, C, M), p["dw1"], p["pw1"], p["b1"].reshape(-1, 1))
    taps2 = extract_taps(h.reshape(C, N, Ho, Wo), 3, 1, 1, 0.0).reshape(9, C, M)
    if residual is None:
        out = pl.pallas_call(
            _sep_stage_kernel, out_shape=jax.ShapeDtypeStruct((C, M), jnp.float32),
        )(taps2, p["dw2"], p["pw2"], p["b2"].reshape(-1, 1))
    else:
        out = pl.pallas_call(
            _sep_stage_res_kernel, out_shape=jax.ShapeDtypeStruct((C, M), jnp.float32),
        )(taps2, p["dw2"], p["pw2"], p["b2"].reshape(-1, 1), residual.reshape(C, M))
    return out.reshape(C, N, Ho, Wo)


def apply_sep_conv(p, x, residual=None):
    C, N, H, W = x.shape
    stride = p["stride"]
    mode = _get_roll_mode()
    if mode == 0:
        y = _apply_sep_conv_twostage(p, x, None if residual is None else residual)
        return y

    if stride == 1:
        Ho, Wo = H, W
        M = N * Ho * Wo
        Mpad = _round_up(M, 128)
        masks, offs = _masks_offsets(N, Ho, Wo, Mpad)
        shifts = tuple((mode * (-o)) % Mpad for o in offs)
        lead = _pad_lanes(x.reshape(C, M), Mpad)
        kernel = _make_sep_s1_kernel(shifts, residual is not None)
    else:
        taps = extract_taps(x, 3, stride, 1, 0.0)
        Ho, Wo = taps.shape[3], taps.shape[4]
        M = N * Ho * Wo
        Mpad = _round_up(M, 128)
        masks, offs = _masks_offsets(N, Ho, Wo, Mpad)
        shifts = tuple((mode * (-o)) % Mpad for o in offs)
        lead = _pad_lanes(taps.reshape(9, C, M), Mpad)
        kernel = _make_sep_s2_kernel(shifts, residual is not None)

    args = [lead, masks,
            p["dw1"], p["pw1"], p["b1"].reshape(-1, 1),
            p["dw2"], p["pw2"], p["b2"].reshape(-1, 1)]
    if residual is not None:
        args.append(_pad_lanes(residual.reshape(C, M), Mpad))
    out = pl.pallas_call(
        kernel, out_shape=jax.ShapeDtypeStruct((C, Mpad), jnp.float32),
    )(*args)
    return out[:, :M].reshape(C, N, Ho, Wo)


def apply_avg_pool(stride, x, residual=None):
    # AvgPool2d(3, stride, padding=1, count_include_pad=False) [+ fused residual]
    C, N, H, W = x.shape
    taps = extract_taps(x, 3, stride, 1, 0.0)
    Ho, Wo = taps.shape[3], taps.shape[4]
    M = N * Ho * Wo
    inv = _avg_inv(N, H, W, stride)
    taps9 = taps.reshape(9, C, M)
    if residual is None:
        out = pl.pallas_call(
            _avg_pool_kernel, out_shape=jax.ShapeDtypeStruct((C, M), jnp.float32),
        )(taps9, inv)
    else:
        out = pl.pallas_call(
            _avg_pool_res_kernel, out_shape=jax.ShapeDtypeStruct((C, M), jnp.float32),
        )(taps9, inv, residual.reshape(C, M))
    return out.reshape(C, N, Ho, Wo)


def apply_max_pool(stride, x, residual=None):
    # MaxPool2d(3, stride, padding=1) [+ fused residual]
    C, N, H, W = x.shape
    taps = extract_taps(x, 3, stride, 1, NEG_INF)
    Ho, Wo = taps.shape[3], taps.shape[4]
    M = N * Ho * Wo
    taps9 = taps.reshape(9, C, M)
    if residual is None:
        out = pl.pallas_call(
            _max_pool_kernel, out_shape=jax.ShapeDtypeStruct((C, M), jnp.float32),
        )(taps9)
    else:
        out = pl.pallas_call(
            _max_pool_res_kernel, out_shape=jax.ShapeDtypeStruct((C, M), jnp.float32),
        )(taps9, residual.reshape(C, M))
    return out.reshape(C, N, Ho, Wo)


def build_op(pi, name, C, stride):
    if name == "sep_conv_3x3":
        return ("sep_conv_3x3", build_sep_conv(pi, C, stride))
    if name == "skip_connect":
        if stride == 1:
            return ("identity", None)
        return ("fact_reduce", build_fact_reduce(pi, C, C))
    if name == "avg_pool_3x3":
        return ("avg_pool_3x3", stride)
    if name == "max_pool_3x3":
        return ("max_pool_3x3", stride)
    raise ValueError("unsupported op: " + name)


def apply_op(op, x, residual=None):
    kind, p = op
    if kind == "sep_conv_3x3":
        return apply_sep_conv(p, x, residual)
    if kind == "identity":
        return x if residual is None else x + residual
    if kind == "fact_reduce":
        y = apply_fact_reduce(p, x)
        return y if residual is None else y + residual
    if kind == "avg_pool_3x3":
        return apply_avg_pool(p, x, residual)
    if kind == "max_pool_3x3":
        return apply_max_pool(p, x, residual)
    raise ValueError(kind)


# ----------------------------------------------------------------------------
# Cell / Network
# ----------------------------------------------------------------------------
def build_cell(pi, genotype, C_pp, C_p, C, reduction, reduction_prev):
    cell = {}
    if reduction_prev:
        cell["pre0"] = ("fact_reduce", build_fact_reduce(pi, C_pp, C))
    else:
        cell["pre0"] = ("relu_conv_bn", build_relu_conv_bn(pi, C_pp, C))
    cell["pre1"] = ("relu_conv_bn", build_relu_conv_bn(pi, C_p, C))
    entries = genotype.reduce if reduction else genotype.normal
    concat = genotype.reduce_concat if reduction else genotype.normal_concat
    op_names, indices, _values = zip(*entries)
    ops = []
    for name, index in zip(op_names, indices):
        stride = 2 if reduction and index < 2 else 1
        ops.append(build_op(pi, name, C, stride))
    cell.update(ops=ops, indices=indices, concat=list(concat),
                steps=len(op_names) // 2, multiplier=len(concat))
    return cell


def apply_pre(pre, x):
    kind, p = pre
    if kind == "fact_reduce":
        return apply_fact_reduce(p, x)
    return apply_relu_conv_bn(p, x)


def apply_cell(cell, s0, s1):
    s0 = apply_pre(cell["pre0"], s0)
    s1 = apply_pre(cell["pre1"], s1)
    states = [s0, s1]
    for i in range(cell["steps"]):
        op1 = cell["ops"][2 * i]
        op2 = cell["ops"][2 * i + 1]
        x1 = states[cell["indices"][2 * i]]
        x2 = states[cell["indices"][2 * i + 1]]
        # Fuse the node add (h1 + h2) into the epilogue of the second kernel.
        if op2[0] == "identity":
            s = (x1 + x2) if op1[0] == "identity" else apply_op(op1, x1, residual=x2)
        elif op1[0] == "identity":
            s = apply_op(op2, x2, residual=x1)
        else:
            h1 = apply_op(op1, x1)
            s = apply_op(op2, x2, residual=h1)
        states.append(s)
    return jnp.concatenate([states[i] for i in cell["concat"]], axis=0)


def build_network(pi, C, num_classes, layers, genotype):
    net = {}
    stem_mult = 3
    C_curr = stem_mult * C
    w = pi.weight((C_curr, 9 * 3))                 # Conv2d(3, 3C, 3, pad=1)
    s, b = pi.bn(C_curr)
    net["stem_w"] = w * s[:, None]                 # BN scale folded
    net["stem_b"] = b
    C_pp, C_p, C_curr = C_curr, C_curr, C
    cells = []
    reduction_prev = False
    for i in range(layers):
        if i in [layers // 3, 2 * layers // 3]:
            C_curr *= 2
            reduction = True
        else:
            reduction = False
        cell = build_cell(pi, genotype, C_pp, C_p, C_curr, reduction, reduction_prev)
        reduction_prev = reduction
        cells.append(cell)
        C_pp, C_p = C_p, cell["multiplier"] * C_curr
    net["cells"] = cells
    net["cls_w"] = pi.weight((num_classes, C_p))   # Linear(C_prev, num_classes)
    net["cls_b"] = pi.weight((num_classes,), scale=0.01)
    return net


def classifier_head(x, w, b):
    # AdaptiveAvgPool2d(1) + Linear fused into one tiny kernel:
    # pooled[Cp, N] = x[Cp, M] @ pmat[M, N];  logits = w @ pooled + b.
    Cp, N, H, W = x.shape
    HW = H * W
    pmat = jnp.asarray(np.repeat(np.eye(N, dtype=np.float32), HW, axis=0) / HW)
    out = pl.pallas_call(
        _pool_fc_kernel,
        out_shape=jax.ShapeDtypeStruct((w.shape[0], N), jnp.float32),
    )(x.reshape(Cp, N * HW), pmat, w, b.reshape(-1, 1))
    return out.T                                   # [N, num_classes]


def network_forward(net, x_nchw):
    x = jnp.transpose(x_nchw, (1, 0, 2, 3)).astype(jnp.float32)   # NCHW -> [C,N,H,W]
    Cin, N, H, W = x.shape
    taps = extract_taps(x, 3, 1, 1, 0.0)                          # stem 3x3, pad 1
    stem = matmul_bias(taps.reshape(9 * Cin, N * H * W),
                       net["stem_w"], net["stem_b"])
    s0 = s1 = stem.reshape(-1, N, H, W)
    for cell in net["cells"]:
        s0, s1 = s1, apply_cell(cell, s0, s1)
    return classifier_head(s1, net["cls_w"], net["cls_b"])


# ----------------------------------------------------------------------------
if __name__ == "__main__":
    C, num_classes, layers = 4, 10, 3

    # Probe pltpu.roll support/direction once, eagerly, before tracing the net.
    _get_roll_mode()

    pi = PInit(seed=0)
    net = build_network(pi, C, num_classes, layers, GENOTYPE)

    key = jax.random.PRNGKey(0)
    x = jax.random.normal(key, (2, 3, 16, 16), jnp.float32)   # PyTorch NCHW input

    fwd = jax.jit(lambda xx: network_forward(net, xx))
    logits = fwd(x)
    jax.block_until_ready(logits)
    assert logits.shape == (2, num_classes)
    assert bool(jnp.all(jnp.isfinite(logits)))
    print("KERNEL_OK")
</pallas_src>

<mosaic_0001>
module attributes {stable_mosaic.version = 11 : i64} {
  func.func @_probe_kernel(%arg0: memref<4x512xf32, #tpu.memory_space<vmem>>, %arg1: memref<4x512xf32, #tpu.memory_space<vmem>>) attributes {dimension_semantics = [], scalar_prefetch = 0 : i64, scratch_operands = 0 : i64, tpu.core_type = #tpu.core_type<tc>} {
    %c0 = arith.constant 0 : index
    %c0_0 = arith.constant 0 : index
    %0 = vector.load %arg0[%c0, %c0_0] : memref<4x512xf32, #tpu.memory_space<vmem>>, vector<4x512xf32>
    %c17_i32 = arith.constant 17 : i32
    %1 = tpu.dynamic_rotate %0 by %c17_i32 dim 1 : vector<4x512xf32>, i32 -> vector<4x512xf32>
    %c0_1 = arith.constant 0 : index
    %c0_2 = arith.constant 0 : index
    %2 = vector.load %arg1[%c0_1, %c0_2] : memref<4x512xf32, #tpu.memory_space<vmem>>, vector<4x512xf32>
    tpu.vector_store %arg1[%c0_1, %c0_2], %1 {strides = array<i32>} : memref<4x512xf32, #tpu.memory_space<vmem>>, vector<4x512xf32>,
    return
  }
}

module attributes {stable_mosaic.version = 11 : i64} {
  func.func @_mm_bias_kernel(%arg0: memref<27x512xf32, #tpu.memory_space<vmem>>, %arg1: memref<12x27xf32, #tpu.memory_space<vmem>>, %arg2: memref<12x1xf32, #tpu.memory_space<vmem>>, %arg3: memref<12x512xf32, #tpu.memory_space<vmem>>) attributes {dimension_semantics = [], scalar_prefetch = 0 : i64, scratch_operands = 0 : i64, tpu.core_type = #tpu.core_type<tc>} {
    %c0 = arith.constant 0 : index
    %c0_0 = arith.constant 0 : index
    %0 = vector.load %arg1[%c0, %c0_0] : memref<12x27xf32, #tpu.memory_space<vmem>>, vector<12x27xf32>
    %c0_1 = arith.constant 0 : index
    %c0_2 = arith.constant 0 : index
    %1 = vector.load %arg0[%c0_1, %c0_2] : memref<27x512xf32, #tpu.memory_space<vmem>>, vector<27x512xf32>
    %cst = arith.constant dense<0.000000e+00> : vector<12x512xf32>
    %2 = tpu.matmul %0, %1, %cst {dimension_numbers = #tpu.dot_dimension_numbers<[1], [0], [0], [1], [0, 0, 1, 1], [], []>} : vector<12x27xf32>, vector<27x512xf32>, vector<12x512xf32> -> vector<12x512xf32>
    %c0_3 = arith.constant 0 : index
    %c0_4 = arith.constant 0 : index
    %3 = vector.load %arg2[%c0_3, %c0_4] : memref<12x1xf32, #tpu.memory_space<vmem>>, vector<12x1xf32>
    %4 = vector.broadcast %3 : vector<12x1xf32> to vector<12x512xf32>
    %5 = arith.addf %2, %4 : vector<12x512xf32>
    %c0_5 = arith.constant 0 : index
    %c0_6 = arith.constant 0 : index
    %6 = vector.load %arg3[%c0_5, %c0_6] : memref<12x512xf32, #tpu.memory_space<vmem>>, vector<12x512xf32>
    tpu.vector_store %arg3[%c0_5, %c0_6], %5 {strides = array<i32>} : memref<12x512xf32, #tpu.memory_space<vmem>>, vector<12x512xf32>,
    return
  }
}

module attributes {stable_mosaic.version = 11 : i64} {
  func.func @_relu_mm_bias_kernel(%arg0: memref<12x512xf32, #tpu.memory_space<vmem>>, %arg1: memref<4x12xf32, #tpu.memory_space<vmem>>, %arg2: memref<4x1xf32, #tpu.memory_space<vmem>>, %arg3: memref<4x512xf32, #tpu.memory_space<vmem>>) attributes {dimension_semantics = [], scalar_prefetch = 0 : i64, scratch_operands = 0 : i64, tpu.core_type = #tpu.core_type<tc>} {
    %c0 = arith.constant 0 : index
    %c0_0 = arith.constant 0 : index
    %0 = vector.load %arg0[%c0, %c0_0] : memref<12x512xf32, #tpu.memory_space<vmem>>, vector<12x512xf32>
    %cst = arith.constant 0.000000e+00 : f32
    %1 = vector.broadcast %cst : f32 to vector<12x512xf32>
    %2 = arith.maximumf %0, %1 : vector<12x512xf32>
    %c0_1 = arith.constant 0 : index
    %c0_2 = arith.constant 0 : index
    %3 = vector.load %arg1[%c0_1, %c0_2] : memref<4x12xf32, #tpu.memory_space<vmem>>, vector<4x12xf32>
    %cst_3 = arith.constant dense<0.000000e+00> : vector<4x512xf32>
    %4 = tpu.matmul %3, %2, %cst_3 {dimension_numbers = #tpu.dot_dimension_numbers<[1], [0], [0], [1], [0, 0, 1, 1], [], []>} : vector<4x12xf32>, vector<12x512xf32>, vector<4x512xf32> -> vector<4x512xf32>
    %c0_4 = arith.constant 0 : index
    %c0_5 = arith.constant 0 : index
    %5 = vector.load %arg2[%c0_4, %c0_5] : memref<4x1xf32, #tpu.memory_space<vmem>>, vector<4x1xf32>
    %6 = vector.broadcast %5 : vector<4x1xf32> to vector<4x512xf32>
    %7 = arith.addf %4, %6 : vector<4x512xf32>
    %c0_6 = arith.constant 0 : index
    %c0_7 = arith.constant 0 : index
    %8 = vector.load %arg3[%c0_6, %c0_7] : memref<4x512xf32, #tpu.memory_space<vmem>>, vector<4x512xf32>
    tpu.vector_store %arg3[%c0_6, %c0_7], %7 {strides = array<i32>} : memref<4x512xf32, #tpu.memory_space<vmem>>, vector<4x512xf32>,
    return
  }
}

module attributes {stable_mosaic.version = 11 : i64} {
  func.func @_sep_stage_res_kernel(%arg0: memref<9x4x512xf32, #tpu.memory_space<vmem>>, %arg1: memref<9x4x1xf32, #tpu.memory_space<vmem>>, %arg2: memref<4x4xf32, #tpu.memory_space<vmem>>, %arg3: memref<4x1xf32, #tpu.memory_space<vmem>>, %arg4: memref<4x512xf32, #tpu.memory_space<vmem>>, %arg5: memref<4x512xf32, #tpu.memory_space<vmem>>) attributes {dimension_semantics = [], scalar_prefetch = 0 : i64, scratch_operands = 0 : i64, tpu.core_type = #tpu.core_type<tc>} {
    %c0 = arith.constant 0 : index
    %c0_0 = arith.constant 0 : index
    %c0_1 = arith.constant 0 : index
    %0 = vector.load %arg1[%c0, %c0_0, %c0_1] : memref<9x4x1xf32, #tpu.memory_space<vmem>>, vector<1x4x1xf32>
    %1 = vector.shape_cast %0 : vector<1x4x1xf32> to vector<4x1xf32>
    %c0_2 = arith.constant 0 : index
    %c0_3 = arith.constant 0 : index
    %c0_4 = arith.constant 0 : index
    %2 = vector.load %arg0[%c0_2, %c0_3, %c0_4] : memref<9x4x512xf32, #tpu.memory_space<vmem>>, vector<1x4x512xf32>
    %3 = vector.shape_cast %2 : vector<1x4x512xf32> to vector<4x512xf32>
    %cst = arith.constant 0.000000e+00 : f32
    %4 = vector.broadcast %cst : f32 to vector<4x512xf32>
    %5 = arith.maximumf %3, %4 : vector<4x512xf32>
    %6 = vector.broadcast %1 : vector<4x1xf32> to vector<4x512xf32>
    %7 = arith.mulf %6, %5 : vector<4x512xf32>
    %c1 = arith.constant 1 : index
    %c0_5 = arith.constant 0 : index
    %c0_6 = arith.constant 0 : index
    %8 = vector.load %arg1[%c1, %c0_5, %c0_6] : memref<9x4x1xf32, #tpu.memory_space<vmem>>, vector<1x4x1xf32>
    %9 = vector.shape_cast %8 : vector<1x4x1xf32> to vector<4x1xf32>
    %c1_7 = arith.constant 1 : index
    %c0_8 = arith.constant 0 : index
    %c0_9 = arith.constant 0 : index
    %10 = vector.load %arg0[%c1_7, %c0_8, %c0_9] : memref<9x4x512xf32, #tpu.memory_space<vmem>>, vector<1x4x512xf32>
    %11 = vector.shape_cast %10 : vector<1x4x512xf32> to vector<4x512xf32>
    %cst_10 = arith.constant 0.000000e+00 : f32
    %12 = vector.broadcast %cst_10 : f32 to vector<4x512xf32>
    %13 = arith.maximumf %11, %12 : vector<4x512xf32>
    %14 = vector.broadcast %9 : vector<4x1xf32> to vector<4x512xf32>
    %15 = arith.mulf %14, %13 : vector<4x512xf32>
    %16 = arith.addf %7, %15 : vector<4x512xf32>
    %c2 = arith.constant 2 : index
    %c0_11 = arith.constant 0 : index
    %c0_12 = arith.constant 0 : index
    %17 = vector.load %arg1[%c2, %c0_11, %c0_12] : memref<9x4x1xf32, #tpu.memory_space<vmem>>, vector<1x4x1xf32>
    %18 = vector.shape_cast %17 : vector<1x4x1xf32> to vector<4x1xf32>
    %c2_13 = arith.constant 2 : index
    %c0_14 = arith.constant 0 : index
    %c0_15 = arith.constant 0 : index
    %19 = vector.load %arg0[%c2_13, %c0_14, %c0_15] : memref<9x4x512xf32, #tpu.memory_space<vmem>>, vector<1x4x512xf32>
    %20 = vector.shape_cast %19 : vector<1x4x512xf32> to vector<4x512xf32>
    %cst_16 = arith.constant 0.000000e+00 : f32
    %21 = vector.broadcast %cst_16 : f32 to vector<4x512xf32>
    %22 = arith.maximumf %20, %21 : vector<4x512xf32>
    %23 = vector.broadcast %18 : vector<4x1xf32> to vector<4x512xf32>
    %24 = arith.mulf %23, %22 : vector<4x512xf32>
    %25 = arith.addf %16, %24 : vector<4x512xf32>
    %c3 = arith.constant 3 : index
    %c0_17 = arith.constant 0 : index
    %c0_18 = arith.constant 0 : index
    %26 = vector.load %arg1[%c3, %c0_17, %c0_18] : memref<9x4x1xf32, #tpu.memory_space<vmem>>, vector<1x4x1xf32>
    %27 = vector.shape_cast %26 : vector<1x4x1xf32> to vector<4x1xf32>
    %c3_19 = arith.constant 3 : index
    %c0_20 = arith.constant 0 : index
    %c0_21 = arith.constant 0 : index
    %28 = vector.load %arg0[%c3_19, %c0_20, %c0_21] : memref<9x4x512xf32, #tpu.memory_space<vmem>>, vector<1x4x512xf32>
    %29 = vector.shape_cast %28 : vector<1x4x512xf32> to vector<4x512xf32>
    %cst_22 = arith.constant 0.000000e+00 : f32
    %30 = vector.broadcast %cst_22 : f32 to vector<4x512xf32>
    %31 = arith.maximumf %29, %30 : vector<4x512xf32>
    %32 = vector.broadcast %27 : vector<4x1xf32> to vector<4x512xf32>
    %33 = arith.mulf %32, %31 : vector<4x512xf32>
    %34 = arith.addf %25, %33 : vector<4x512xf32>
    %c4 = arith.constant 4 : index
    %c0_23 = arith.constant 0 : index
    %c0_24 = arith.constant 0 : index
    %35 = vector.load %arg1[%c4, %c0_23, %c0_24] : memref<9x4x1xf32, #tpu.memory_space<vmem>>, vector<1x4x1xf32>
    %36 = vector.shape_cast %35 : vector<1x4x1xf32> to vector<4x1xf32>
    %c4_25 = arith.constant 4 : index
    %c0_26 = arith.constant 0 : index
    %c0_27 = arith.constant 0 : index
    %37 = vector.load %arg0[%c4_25, %c0_26, %c0_27] : memref<9x4x512xf32, #tpu.memory_space<vmem>>, vector<1x4x512xf32>
    %38 = vector.shape_cast %37 : vector<1x4x512xf32> to vector<4x512xf32>
    %cst_28 = arith.constant 0.000000e+00 : f32
    %39 = vector.broadcast %cst_28 : f32 to vector<4x512xf32>
    %40 = arith.maximumf %38, %39 : vector<4x512xf32>
    %41 = vector.broadcast %36 : vector<4x1xf32> to vector<4x512xf32>
    %42 = arith.mulf %41, %40 : vector<4x512xf32>
    %43 = arith.addf %34, %42 : vector<4x512xf32>
    %c5 = arith.constant 5 : index
    %c0_29 = arith.constant 0 : index
    %c0_30 = arith.constant 0 : index
    %44 = vector.load %arg1[%c5, %c0_29, %c0_30] : memref<9x4x1xf32, #tpu.memory_space<vmem>>, vector<1x4x1xf32>
    %45 = vector.shape_cast %44 : vector<1x4x1xf32> to vector<4x1xf32>
    %c5_31 = arith.constant 5 : index
    %c0_32 = arith.constant 0 : index
    %c0_33 = arith.constant 0 : index
    %46 = vector.load %arg0[%c5_31, %c0_32, %c0_33] : memref<9x4x512xf32, #tpu.memory_space<vmem>>, vector<1x4x512xf32>
    %47 = vector.shape_cast %46 : vector<1x4x512xf32> to vector<4x512xf32>
    %cst_34 = arith.constant 0.000000e+00 : f32
    %48 = vector.broadcast %cst_34 : f32 to vector<4x512xf32>
    %49 = arith.maximumf %47, %48 : vector<4x512xf32>
    %50 = vector.broadcast %45 : vector<4x1xf32> to vector<4x512xf32>
    %51 = arith.mulf %50, %49 : vector<4x512xf32>
    %52 = arith.addf %43, %51 : vector<4x512xf32>
    %c6 = arith.constant 6 : index
    %c0_35 = arith.constant 0 : index
    %c0_36 = arith.constant 0 : index
    %53 = vector.load %arg1[%c6, %c0_35, %c0_36] : memref<9x4x1xf32, #tpu.memory_space<vmem>>, vector<1x4x1xf32>
    %54 = vector.shape_cast %53 : vector<1x4x1xf32> to vector<4x1xf32>
    %c6_37 = arith.constant 6 : index
    %c0_38 = arith.constant 0 : index
    %c0_39 = arith.constant 0 : index
    %55 = vector.load %arg0[%c6_37, %c0_38, %c0_39] : memref<9x4x512xf32, #tpu.memory_space<vmem>>, vector<1x4x512xf32>
    %56 = vector.shape_cast %55 : vector<1x4x512xf32> to vector<4x512xf32>
    %cst_40 = arith.constant 0.000000e+00 : f32
    %57 = vector.broadcast %cst_40 : f32 to vector<4x512xf32>
    %58 = arith.maximumf %56, %57 : vector<4x512xf32>
    %59 = vector.broadcast %54 : vector<4x1xf32> to vector<4x512xf32>
    %60 = arith.mulf %59, %58 : vector<4x512xf32>
    %61 = arith.addf %52, %60 : vector<4x512xf32>
    %c7 = arith.constant 7 : index
    %c0_41 = arith.constant 0 : index
    %c0_42 = arith.constant 0 : index
    %62 = vector.load %arg1[%c7, %c0_41, %c0_42] : memref<9x4x1xf32, #tpu.memory_space<vmem>>, vector<1x4x1xf32>
    %63 = vector.shape_cast %62 : vector<1x4x1xf32> to vector<4x1xf32>
    %c7_43 = arith.constant 7 : index
    %c0_44 = arith.constant 0 : index
    %c0_45 = arith.constant 0 : index
    %64 = vector.load %arg0[%c7_43, %c0_44, %c0_45] : memref<9x4x512xf32, #tpu.memory_space<vmem>>, vector<1x4x512xf32>
    %65 = vector.shape_cast %64 : vector<1x4x512xf32> to vector<4x512xf32>
    %cst_46 = arith.constant 0.000000e+00 : f32
    %66 = vector.broadcast %cst_46 : f32 to vector<4x512xf32>
    %67 = arith.maximumf %65, %66 : vector<4x512xf32>
    %68 = vector.broadcast %63 : vector<4x1xf32> to vector<4x512xf32>
    %69 = arith.mulf %68, %67 : vector<4x512xf32>
    %70 = arith.addf %61, %69 : vector<4x512xf32>
    %c8 = arith.constant 8 : index
    %c0_47 = arith.constant 0 : index
    %c0_48 = arith.constant 0 : index
    %71 = vector.load %arg1[%c8, %c0_47, %c0_48] : memref<9x4x1xf32, #tpu.memory_space<vmem>>, vector<1x4x1xf32>
    %72 = vector.shape_cast %71 : vector<1x4x1xf32> to vector<4x1xf32>
    %c8_49 = arith.constant 8 : index
    %c0_50 = arith.constant 0 : index
    %c0_51 = arith.constant 0 : index
    %73 = vector.load %arg0[%c8_49, %c0_50, %c0_51] : memref<9x4x512xf32, #tpu.memory_space<vmem>>, vector<1x4x512xf32>
    %74 = vector.shape_cast %73 : vector<1x4x512xf32> to vector<4x512xf32>
    %cst_52 = arith.constant 0.000000e+00 : f32
    %75 = vector.broadcast %cst_52 : f32 to vector<4x512xf32>
    %76 = arith.maximumf %74, %75 : vector<4x512xf32>
    %77 = vector.broadcast %72 : vector<4x1xf32> to vector<4x512xf32>
    %78 = arith.mulf %77, %76 : vector<4x512xf32>
    %79 = arith.addf %70, %78 : vector<4x512xf32>
    %c0_53 = arith.constant 0 : index
    %c0_54 = arith.constant 0 : index
    %80 = vector.load %arg2[%c0_53, %c0_54] : memref<4x4xf32, #tpu.memory_space<vmem>>, vector<4x4xf32>
    %cst_55 = arith.constant dense<0.000000e+00> : vector<4x512xf32>
    %81 = tpu.matmul %80, %79, %cst_55 {dimension_numbers = #tpu.dot_dimension_numbers<[1], [0], [0], [1], [0, 0, 1, 1], [], []>} : vector<4x4xf32>, vector<4x512xf32>, vector<4x512xf32> -> vector<4x512xf32>
    %c0_56 = arith.constant 0 : index
    %c0_57 = arith.constant 0 : index
    %82 = vector.load %arg3[%c0_56, %c0_57] : memref<4x1xf32, #tpu.memory_space<vmem>>, vector<4x1xf32>
    %83 = vector.broadcast %82 : vector<4x1xf32> to vector<4x512xf32>
    %84 = arith.addf %81, %83 : vector<4x512xf32>
    %c0_58 = arith.constant 0 : index
    %c0_59 = arith.constant 0 : index
    %85 = vector.load %arg4[%c0_58, %c0_59] : memref<4x512xf32, #tpu.memory_space<vmem>>, vector<4x512xf32>
    %86 = arith.addf %84, %85 : vector<4x512xf32>
    %c0_60 = arith.constant 0 : index
    %c0_61 = arith.constant 0 : index
    %87 = vector.load %arg5[%c0_60, %c0_61] : memref<4x512xf32, #tpu.memory_space<vmem>>, vector<4x512xf32>
    tpu.vector_store %arg5[%c0_60, %c0_61], %86 {strides = array<i32>} : memref<4x512xf32, #tpu.memory_space<vmem>>, vector<4x512xf32>,
    return
  }
}

module attributes {stable_mosaic.version = 11 : i64} {
  func.func @_sep_stage_kernel(%arg0: memref<9x4x512xf32, #tpu.memory_space<vmem>>, %arg1: memref<9x4x1xf32, #tpu.memory_space<vmem>>, %arg2: memref<4x4xf32, #tpu.memory_space<vmem>>, %arg3: memref<4x1xf32, #tpu.memory_space<vmem>>, %arg4: memref<4x512xf32, #tpu.memory_space<vmem>>) attributes {dimension_semantics = [], scalar_prefetch = 0 : i64, scratch_operands = 0 : i64, tpu.core_type = #tpu.core_type<tc>} {
    %c0 = arith.constant 0 : index
    %c0_0 = arith.constant 0 : index
    %c0_1 = arith.constant 0 : index
    %0 = vector.load %arg1[%c0, %c0_0, %c0_1] : memref<9x4x1xf32, #tpu.memory_space<vmem>>, vector<1x4x1xf32>
    %1 = vector.shape_cast %0 : vector<1x4x1xf32> to vector<4x1xf32>
    %c0_2 = arith.constant 0 : index
    %c0_3 = arith.constant 0 : index
    %c0_4 = arith.constant 0 : index
    %2 = vector.load %arg0[%c0_2, %c0_3, %c0_4] : memref<9x4x512xf32, #tpu.memory_space<vmem>>, vector<1x4x512xf32>
    %3 = vector.shape_cast %2 : vector<1x4x512xf32> to vector<4x512xf32>
    %cst = arith.constant 0.000000e+00 : f32
    %4 = vector.broadcast %cst : f32 to vector<4x512xf32>
    %5 = arith.maximumf %3, %4 : vector<4x512xf32>
    %6 = vector.broadcast %1 : vector<4x1xf32> to vector<4x512xf32>
    %7 = arith.mulf %6, %5 : vector<4x512xf32>
    %c1 = arith.constant 1 : index
    %c0_5 = arith.constant 0 : index
    %c0_6 = arith.constant 0 : index
    %8 = vector.load %arg1[%c1, %c0_5, %c0_6] : memref<9x4x1xf32, #tpu.memory_space<vmem>>, vector<1x4x1xf32>
    %9 = vector.shape_cast %8 : vector<1x4x1xf32> to vector<4x1xf32>
    %c1_7 = arith.constant 1 : index
    %c0_8 = arith.constant 0 : index
    %c0_9 = arith.constant 0 : index
    %10 = vector.load %arg0[%c1_7, %c0_8, %c0_9] : memref<9x4x512xf32, #tpu.memory_space<vmem>>, vector<1x4x512xf32>
    %11 = vector.shape_cast %10 : vector<1x4x512xf32> to vector<4x512xf32>
    %cst_10 = arith.constant 0.000000e+00 : f32
    %12 = vector.broadcast %cst_10 : f32 to vector<4x512xf32>
    %13 = arith.maximumf %11, %12 : vector<4x512xf32>
    %14 = vector.broadcast %9 : vector<4x1xf32> to vector<4x512xf32>
    %15 = arith.mulf %14, %13 : vector<4x512xf32>
    %16 = arith.addf %7, %15 : vector<4x512xf32>
    %c2 = arith.constant 2 : index
    %c0_11 = arith.constant 0 : index
    %c0_12 = arith.constant 0 : index
    %17 = vector.load %arg1[%c2, %c0_11, %c0_12] : memref<9x4x1xf32, #tpu.memory_space<vmem>>, vector<1x4x1xf32>
    %18 = vector.shape_cast %17 : vector<1x4x1xf32> to vector<4x1xf32>
    %c2_13 = arith.constant 2 : index
    %c0_14 = arith.constant 0 : index
    %c0_15 = arith.constant 0 : index
    %19 = vector.load %arg0[%c2_13, %c0_14, %c0_15] : memref<9x4x512xf32, #tpu.memory_space<vmem>>, vector<1x4x512xf32>
    %20 = vector.shape_cast %19 : vector<1x4x512xf32> to vector<4x512xf32>
    %cst_16 = arith.constant 0.000000e+00 : f32
    %21 = vector.broadcast %cst_16 : f32 to vector<4x512xf32>
    %22 = arith.maximumf %20, %21 : vector<4x512xf32>
    %23 = vector.broadcast %18 : vector<4x1xf32> to vector<4x512xf32>
    %24 = arith.mulf %23, %22 : vector<4x512xf32>
    %25 = arith.addf %16, %24 : vector<4x512xf32>
    %c3 = arith.constant 3 : index
    %c0_17 = arith.constant 0 : index
    %c0_18 = arith.constant 0 : index
    %26 = vector.load %arg1[%c3, %c0_17, %c0_18] : memref<9x4x1xf32, #tpu.memory_space<vmem>>, vector<1x4x1xf32>
    %27 = vector.shape_cast %26 : vector<1x4x1xf32> to vector<4x1xf32>
    %c3_19 = arith.constant 3 : index
    %c0_20 = arith.constant 0 : index
    %c0_21 = arith.constant 0 : index
    %28 = vector.load %arg0[%c3_19, %c0_20, %c0_21] : memref<9x4x512xf32, #tpu.memory_space<vmem>>, vector<1x4x512xf32>
    %29 = vector.shape_cast %28 : vector<1x4x512xf32> to vector<4x512xf32>
    %cst_22 = arith.constant 0.000000e+00 : f32
    %30 = vector.broadcast %cst_22 : f32 to vector<4x512xf32>
    %31 = arith.maximumf %29, %30 : vector<4x512xf32>
    %32 = vector.broadcast %27 : vector<4x1xf32> to vector<4x512xf32>
    %33 = arith.mulf %32, %31 : vector<4x512xf32>
    %34 = arith.addf %25, %33 : vector<4x512xf32>
    %c4 = arith.constant 4 : index
    %c0_23 = arith.constant 0 : index
    %c0_24 = arith.constant 0 : index
    %35 = vector.load %arg1[%c4, %c0_23, %c0_24] : memref<9x4x1xf32, #tpu.memory_space<vmem>>, vector<1x4x1xf32>
    %36 = vector.shape_cast %35 : vector<1x4x1xf32> to vector<4x1xf32>
    %c4_25 = arith.constant 4 : index
    %c0_26 = arith.constant 0 : index
    %c0_27 = arith.constant 0 : index
    %37 = vector.load %arg0[%c4_25, %c0_26, %c0_27] : memref<9x4x512xf32, #tpu.memory_space<vmem>>, vector<1x4x512xf32>
    %38 = vector.shape_cast %37 : vector<1x4x512xf32> to vector<4x512xf32>
    %cst_28 = arith.constant 0.000000e+00 : f32
    %39 = vector.broadcast %cst_28 : f32 to vector<4x512xf32>
    %40 = arith.maximumf %38, %39 : vector<4x512xf32>
    %41 = vector.broadcast %36 : vector<4x1xf32> to vector<4x512xf32>
    %42 = arith.mulf %41, %40 : vector<4x512xf32>
    %43 = arith.addf %34, %42 : vector<4x512xf32>
    %c5 = arith.constant 5 : index
    %c0_29 = arith.constant 0 : index
    %c0_30 = arith.constant 0 : index
    %44 = vector.load %arg1[%c5, %c0_29, %c0_30] : memref<9x4x1xf32, #tpu.memory_space<vmem>>, vector<1x4x1xf32>
    %45 = vector.shape_cast %44 : vector<1x4x1xf32> to vector<4x1xf32>
    %c5_31 = arith.constant 5 : index
    %c0_32 = arith.constant 0 : index
    %c0_33 = arith.constant 0 : index
    %46 = vector.load %arg0[%c5_31, %c0_32, %c0_33] : memref<9x4x512xf32, #tpu.memory_space<vmem>>, vector<1x4x512xf32>
    %47 = vector.shape_cast %46 : vector<1x4x512xf32> to vector<4x512xf32>
    %cst_34 = arith.constant 0.000000e+00 : f32
    %48 = vector.broadcast %cst_34 : f32 to vector<4x512xf32>
    %49 = arith.maximumf %47, %48 : vector<4x512xf32>
    %50 = vector.broadcast %45 : vector<4x1xf32> to vector<4x512xf32>
    %51 = arith.mulf %50, %49 : vector<4x512xf32>
    %52 = arith.addf %43, %51 : vector<4x512xf32>
    %c6 = arith.constant 6 : index
    %c0_35 = arith.constant 0 : index
    %c0_36 = arith.constant 0 : index
    %53 = vector.load %arg1[%c6, %c0_35, %c0_36] : memref<9x4x1xf32, #tpu.memory_space<vmem>>, vector<1x4x1xf32>
    %54 = vector.shape_cast %53 : vector<1x4x1xf32> to vector<4x1xf32>
    %c6_37 = arith.constant 6 : index
    %c0_38 = arith.constant 0 : index
    %c0_39 = arith.constant 0 : index
    %55 = vector.load %arg0[%c6_37, %c0_38, %c0_39] : memref<9x4x512xf32, #tpu.memory_space<vmem>>, vector<1x4x512xf32>
    %56 = vector.shape_cast %55 : vector<1x4x512xf32> to vector<4x512xf32>
    %cst_40 = arith.constant 0.000000e+00 : f32
    %57 = vector.broadcast %cst_40 : f32 to vector<4x512xf32>
    %58 = arith.maximumf %56, %57 : vector<4x512xf32>
    %59 = vector.broadcast %54 : vector<4x1xf32> to vector<4x512xf32>
    %60 = arith.mulf %59, %58 : vector<4x512xf32>
    %61 = arith.addf %52, %60 : vector<4x512xf32>
    %c7 = arith.constant 7 : index
    %c0_41 = arith.constant 0 : index
    %c0_42 = arith.constant 0 : index
    %62 = vector.load %arg1[%c7, %c0_41, %c0_42] : memref<9x4x1xf32, #tpu.memory_space<vmem>>, vector<1x4x1xf32>
    %63 = vector.shape_cast %62 : vector<1x4x1xf32> to vector<4x1xf32>
    %c7_43 = arith.constant 7 : index
    %c0_44 = arith.constant 0 : index
    %c0_45 = arith.constant 0 : index
    %64 = vector.load %arg0[%c7_43, %c0_44, %c0_45] : memref<9x4x512xf32, #tpu.memory_space<vmem>>, vector<1x4x512xf32>
    %65 = vector.shape_cast %64 : vector<1x4x512xf32> to vector<4x512xf32>
    %cst_46 = arith.constant 0.000000e+00 : f32
    %66 = vector.broadcast %cst_46 : f32 to vector<4x512xf32>
    %67 = arith.maximumf %65, %66 : vector<4x512xf32>
    %68 = vector.broadcast %63 : vector<4x1xf32> to vector<4x512xf32>
    %69 = arith.mulf %68, %67 : vector<4x512xf32>
    %70 = arith.addf %61, %69 : vector<4x512xf32>
    %c8 = arith.constant 8 : index
    %c0_47 = arith.constant 0 : index
    %c0_48 = arith.constant 0 : index
    %71 = vector.load %arg1[%c8, %c0_47, %c0_48] : memref<9x4x1xf32, #tpu.memory_space<vmem>>, vector<1x4x1xf32>
    %72 = vector.shape_cast %71 : vector<1x4x1xf32> to vector<4x1xf32>
    %c8_49 = arith.constant 8 : index
    %c0_50 = arith.constant 0 : index
    %c0_51 = arith.constant 0 : index
    %73 = vector.load %arg0[%c8_49, %c0_50, %c0_51] : memref<9x4x512xf32, #tpu.memory_space<vmem>>, vector<1x4x512xf32>
    %74 = vector.shape_cast %73 : vector<1x4x512xf32> to vector<4x512xf32>
    %cst_52 = arith.constant 0.000000e+00 : f32
    %75 = vector.broadcast %cst_52 : f32 to vector<4x512xf32>
    %76 = arith.maximumf %74, %75 : vector<4x512xf32>
    %77 = vector.broadcast %72 : vector<4x1xf32> to vector<4x512xf32>
    %78 = arith.mulf %77, %76 : vector<4x512xf32>
    %79 = arith.addf %70, %78 : vector<4x512xf32>
    %c0_53 = arith.constant 0 : index
    %c0_54 = arith.constant 0 : index
    %80 = vector.load %arg2[%c0_53, %c0_54] : memref<4x4xf32, #tpu.memory_space<vmem>>, vector<4x4xf32>
    %cst_55 = arith.constant dense<0.000000e+00> : vector<4x512xf32>
    %81 = tpu.matmul %80, %79, %cst_55 {dimension_numbers = #tpu.dot_dimension_numbers<[1], [0], [0], [1], [0, 0, 1, 1], [], []>} : vector<4x4xf32>, vector<4x512xf32>, vector<4x512xf32> -> vector<4x512xf32>
    %c0_56 = arith.constant 0 : index
    %c0_57 = arith.constant 0 : index
    %82 = vector.load %arg3[%c0_56, %c0_57] : memref<4x1xf32, #tpu.memory_space<vmem>>, vector<4x1xf32>
    %83 = vector.broadcast %82 : vector<4x1xf32> to vector<4x512xf32>
    %84 = arith.addf %81, %83 : vector<4x512xf32>
    %c0_58 = arith.constant 0 : index
    %c0_59 = arith.constant 0 : index
    %85 = vector.load %arg4[%c0_58, %c0_59] : memref<4x512xf32, #tpu.memory_space<vmem>>, vector<4x512xf32>
    tpu.vector_store %arg4[%c0_58, %c0_59], %84 {strides = array<i32>} : memref<4x512xf32, #tpu.memory_space<vmem>>, vector<4x512xf32>,
    return
  }
}

module attributes {stable_mosaic.version = 11 : i64} {
  func.func @_max_pool_res_kernel(%arg0: memref<9x4x512xf32, #tpu.memory_space<vmem>>, %arg1: memref<4x512xf32, #tpu.memory_space<vmem>>, %arg2: memref<4x512xf32, #tpu.memory_space<vmem>>) attributes {dimension_semantics = [], scalar_prefetch = 0 : i64, scratch_operands = 0 : i64, tpu.core_type = #tpu.core_type<tc>} {
    %c0 = arith.constant 0 : index
    %c0_0 = arith.constant 0 : index
    %c0_1 = arith.constant 0 : index
    %0 = vector.load %arg0[%c0, %c0_0, %c0_1] : memref<9x4x512xf32, #tpu.memory_space<vmem>>, vector<1x4x512xf32>
    %1 = vector.shape_cast %0 : vector<1x4x512xf32> to vector<4x512xf32>
    %c1 = arith.constant 1 : index
    %c0_2 = arith.constant 0 : index
    %c0_3 = arith.constant 0 : index
    %2 = vector.load %arg0[%c1, %c0_2, %c0_3] : memref<9x4x512xf32, #tpu.memory_space<vmem>>, vector<1x4x512xf32>
    %3 = vector.shape_cast %2 : vector<1x4x512xf32> to vector<4x512xf32>
    %4 = arith.maximumf %1, %3 : vector<4x512xf32>
    %c2 = arith.constant 2 : index
    %c0_4 = arith.constant 0 : index
    %c0_5 = arith.constant 0 : index
    %5 = vector.load %arg0[%c2, %c0_4, %c0_5] : memref<9x4x512xf32, #tpu.memory_space<vmem>>, vector<1x4x512xf32>
    %6 = vector.shape_cast %5 : vector<1x4x512xf32> to vector<4x512xf32>
    %7 = arith.maximumf %4, %6 : vector<4x512xf32>
    %c3 = arith.constant 3 : index
    %c0_6 = arith.constant 0 : index
    %c0_7 = arith.constant 0 : index
    %8 = vector.load %arg0[%c3, %c0_6, %c0_7] : memref<9x4x512xf32, #tpu.memory_space<vmem>>, vector<1x4x512xf32>
    %9 = vector.shape_cast %8 : vector<1x4x512xf32> to vector<4x512xf32>
    %10 = arith.maximumf %7, %9 : vector<4x512xf32>
    %c4 = arith.constant 4 : index
    %c0_8 = arith.constant 0 : index
    %c0_9 = arith.constant 0 : index
    %11 = vector.load %arg0[%c4, %c0_8, %c0_9] : memref<9x4x512xf32, #tpu.memory_space<vmem>>, vector<1x4x512xf32>
    %12 = vector.shape_cast %11 : vector<1x4x512xf32> to vector<4x512xf32>
    %13 = arith.maximumf %10, %12 : vector<4x512xf32>
    %c5 = arith.constant 5 : index
    %c0_10 = arith.constant 0 : index
    %c0_11 = arith.constant 0 : index
    %14 = vector.load %arg0[%c5, %c0_10, %c0_11] : memref<9x4x512xf32, #tpu.memory_space<vmem>>, vector<1x4x512xf32>
    %15 = vector.shape_cast %14 : vector<1x4x512xf32> to vector<4x512xf32>
    %16 = arith.maximumf %13, %15 : vector<4x512xf32>
    %c6 = arith.constant 6 : index
    %c0_12 = arith.constant 0 : index
    %c0_13 = arith.constant 0 : index
    %17 = vector.load %arg0[%c6, %c0_12, %c0_13] : memref<9x4x512xf32, #tpu.memory_space<vmem>>, vector<1x4x512xf32>
    %18 = vector.shape_cast %17 : vector<1x4x512xf32> to vector<4x512xf32>
    %19 = arith.maximumf %16, %18 : vector<4x512xf32>
    %c7 = arith.constant 7 : index
    %c0_14 = arith.constant 0 : index
    %c0_15 = arith.constant 0 : index
    %20 = vector.load %arg0[%c7, %c0_14, %c0_15] : memref<9x4x512xf32, #tpu.memory_space<vmem>>, vector<1x4x512xf32>
    %21 = vector.shape_cast %20 : vector<1x4x512xf32> to vector<4x512xf32>
    %22 = arith.maximumf %19, %21 : vector<4x512xf32>
    %c8 = arith.constant 8 : index
    %c0_16 = arith.constant 0 : index
    %c0_17 = arith.constant 0 : index
    %23 = vector.load %arg0[%c8, %c0_16, %c0_17] : memref<9x4x512xf32, #tpu.memory_space<vmem>>, vector<1x4x512xf32>
    %24 = vector.shape_cast %23 : vector<1x4x512xf32> to vector<4x512xf32>
    %25 = arith.maximumf %22, %24 : vector<4x512xf32>
    %c0_18 = arith.constant 0 : index
    %c0_19 = arith.constant 0 : index
    %26 = vector.load %arg1[%c0_18, %c0_19] : memref<4x512xf32, #tpu.memory_space<vmem>>, vector<4x512xf32>
    %27 = arith.addf %25, %26 : vector<4x512xf32>
    %c0_20 = arith.constant 0 : index
    %c0_21 = arith.constant 0 : index
    %28 = vector.load %arg2[%c0_20, %c0_21] : memref<4x512xf32, #tpu.memory_space<vmem>>, vector<4x512xf32>
    tpu.vector_store %arg2[%c0_20, %c0_21], %27 {strides = array<i32>} : memref<4x512xf32, #tpu.memory_space<vmem>>, vector<4x512xf32>,
    return
  }
}

module attributes {stable_mosaic.version = 11 : i64} {
  func.func @_avg_pool_res_kernel(%arg0: memref<9x4x512xf32, #tpu.memory_space<vmem>>, %arg1: memref<1x512xf32, #tpu.memory_space<vmem>>, %arg2: memref<4x512xf32, #tpu.memory_space<vmem>>, %arg3: memref<4x512xf32, #tpu.memory_space<vmem>>) attributes {dimension_semantics = [], scalar_prefetch = 0 : i64, scratch_operands = 0 : i64, tpu.core_type = #tpu.core_type<tc>} {
    %c0 = arith.constant 0 : index
    %c0_0 = arith.constant 0 : index
    %c0_1 = arith.constant 0 : index
    %0 = vector.load %arg0[%c0, %c0_0, %c0_1] : memref<9x4x512xf32, #tpu.memory_space<vmem>>, vector<1x4x512xf32>
    %1 = vector.shape_cast %0 : vector<1x4x512xf32> to vector<4x512xf32>
    %c1 = arith.constant 1 : index
    %c0_2 = arith.constant 0 : index
    %c0_3 = arith.constant 0 : index
    %2 = vector.load %arg0[%c1, %c0_2, %c0_3] : memref<9x4x512xf32, #tpu.memory_space<vmem>>, vector<1x4x512xf32>
    %3 = vector.shape_cast %2 : vector<1x4x512xf32> to vector<4x512xf32>
    %4 = arith.addf %1, %3 : vector<4x512xf32>
    %c2 = arith.constant 2 : index
    %c0_4 = arith.constant 0 : index
    %c0_5 = arith.constant 0 : index
    %5 = vector.load %arg0[%c2, %c0_4, %c0_5] : memref<9x4x512xf32, #tpu.memory_space<vmem>>, vector<1x4x512xf32>
    %6 = vector.shape_cast %5 : vector<1x4x512xf32> to vector<4x512xf32>
    %7 = arith.addf %4, %6 : vector<4x512xf32>
    %c3 = arith.constant 3 : index
    %c0_6 = arith.constant 0 : index
    %c0_7 = arith.constant 0 : index
    %8 = vector.load %arg0[%c3, %c0_6, %c0_7] : memref<9x4x512xf32, #tpu.memory_space<vmem>>, vector<1x4x512xf32>
    %9 = vector.shape_cast %8 : vector<1x4x512xf32> to vector<4x512xf32>
    %10 = arith.addf %7, %9 : vector<4x512xf32>
    %c4 = arith.constant 4 : index
    %c0_8 = arith.constant 0 : index
    %c0_9 = arith.constant 0 : index
    %11 = vector.load %arg0[%c4, %c0_8, %c0_9] : memref<9x4x512xf32, #tpu.memory_space<vmem>>, vector<1x4x512xf32>
    %12 = vector.shape_cast %11 : vector<1x4x512xf32> to vector<4x512xf32>
    %13 = arith.addf %10, %12 : vector<4x512xf32>
    %c5 = arith.constant 5 : index
    %c0_10 = arith.constant 0 : index
    %c0_11 = arith.constant 0 : index
    %14 = vector.load %arg0[%c5, %c0_10, %c0_11] : memref<9x4x512xf32, #tpu.memory_space<vmem>>, vector<1x4x512xf32>
    %15 = vector.shape_cast %14 : vector<1x4x512xf32> to vector<4x512xf32>
    %16 = arith.addf %13, %15 : vector<4x512xf32>
    %c6 = arith.constant 6 : index
    %c0_12 = arith.constant 0 : index
    %c0_13 = arith.constant 0 : index
    %17 = vector.load %arg0[%c6, %c0_12, %c0_13] : memref<9x4x512xf32, #tpu.memory_space<vmem>>, vector<1x4x512xf32>
    %18 = vector.shape_cast %17 : vector<1x4x512xf32> to vector<4x512xf32>
    %19 = arith.addf %16, %18 : vector<4x512xf32>
    %c7 = arith.constant 7 : index
    %c0_14 = arith.constant 0 : index
    %c0_15 = arith.constant 0 : index
    %20 = vector.load %arg0[%c7, %c0_14, %c0_15] : memref<9x4x512xf32, #tpu.memory_space<vmem>>, vector<1x4x512xf32>
    %21 = vector.shape_cast %20 : vector<1x4x512xf32> to vector<4x512xf32>
    %22 = arith.addf %19, %21 : vector<4x512xf32>
    %c8 = arith.constant 8 : index
    %c0_16 = arith.constant 0 : index
    %c0_17 = arith.constant 0 : index
    %23 = vector.load %arg0[%c8, %c0_16, %c0_17] : memref<9x4x512xf32, #tpu.memory_space<vmem>>, vector<1x4x512xf32>
    %24 = vector.shape_cast %23 : vector<1x4x512xf32> to vector<4x512xf32>
    %25 = arith.addf %22, %24 : vector<4x512xf32>
    %c0_18 = arith.constant 0 : index
    %c0_19 = arith.constant 0 : index
    %26 = vector.load %arg1[%c0_18, %c0_19] : memref<1x512xf32, #tpu.memory_space<vmem>>, vector<1x512xf32>
    %27 = vector.broadcast %26 : vector<1x512xf32> to vector<4x512xf32>
    %28 = arith.mulf %25, %27 : vector<4x512xf32>
    %c0_20 = arith.constant 0 : index
    %c0_21 = arith.constant 0 : index
    %29 = vector.load %arg2[%c0_20, %c0_21] : memref<4x512xf32, #tpu.memory_space<vmem>>, vector<4x512xf32>
    %30 = arith.addf %28, %29 : vector<4x512xf32>
    %c0_22 = arith.constant 0 : index
    %c0_23 = arith.constant 0 : index
    %31 = vector.load %arg3[%c0_22, %c0_23] : memref<4x512xf32, #tpu.memory_space<vmem>>, vector<4x512xf32>
    tpu.vector_store %arg3[%c0_22, %c0_23], %30 {strides = array<i32>} : memref<4x512xf32, #tpu.memory_space<vmem>>, vector<4x512xf32>,
    return
  }
}

module attributes {stable_mosaic.version = 11 : i64} {
  func.func @_relu_mm_bias_kernel(%arg0: memref<32x128xf32, #tpu.memory_space<vmem>>, %arg1: memref<16x32xf32, #tpu.memory_space<vmem>>, %arg2: memref<16x1xf32, #tpu.memory_space<vmem>>, %arg3: memref<16x128xf32, #tpu.memory_space<vmem>>) attributes {dimension_semantics = [], scalar_prefetch = 0 : i64, scratch_operands = 0 : i64, tpu.core_type = #tpu.core_type<tc>} {
    %c0 = arith.constant 0 : index
    %c0_0 = arith.constant 0 : index
    %0 = vector.load %arg0[%c0, %c0_0] : memref<32x128xf32, #tpu.memory_space<vmem>>, vector<32x128xf32>
    %cst = arith.constant 0.000000e+00 : f32
    %1 = vector.broadcast %cst : f32 to vector<32x128xf32>
    %2 = arith.maximumf %0, %1 : vector<32x128xf32>
    %c0_1 = arith.constant 0 : index
    %c0_2 = arith.constant 0 : index
    %3 = vector.load %arg1[%c0_1, %c0_2] : memref<16x32xf32, #tpu.memory_space<vmem>>, vector<16x32xf32>
    %cst_3 = arith.constant dense<0.000000e+00> : vector<16x128xf32>
    %4 = tpu.matmul %3, %2, %cst_3 {dimension_numbers = #tpu.dot_dimension_numbers<[1], [0], [0], [1], [0, 0, 1, 1], [], []>} : vector<16x32xf32>, vector<32x128xf32>, vector<16x128xf32> -> vector<16x128xf32>
    %c0_4 = arith.constant 0 : index
    %c0_5 = arith.constant 0 : index
    %5 = vector.load %arg2[%c0_4, %c0_5] : memref<16x1xf32, #tpu.memory_space<vmem>>, vector<16x1xf32>
    %6 = vector.broadcast %5 : vector<16x1xf32> to vector<16x128xf32>
    %7 = arith.addf %4, %6 : vector<16x128xf32>
    %c0_6 = arith.constant 0 : index
    %c0_7 = arith.constant 0 : index
    %8 = vector.load %arg3[%c0_6, %c0_7] : memref<16x128xf32, #tpu.memory_space<vmem>>, vector<16x128xf32>
    tpu.vector_store %arg3[%c0_6, %c0_7], %7 {strides = array<i32>} : memref<16x128xf32, #tpu.memory_space<vmem>>, vector<16x128xf32>,
    return
  }
}

module attributes {stable_mosaic.version = 11 : i64} {
  func.func @_relu_mm_bias_kernel(%arg0: memref<16x512xf32, #tpu.memory_space<vmem>>, %arg1: memref<8x16xf32, #tpu.memory_space<vmem>>, %arg2: memref<8x1xf32, #tpu.memory_space<vmem>>, %arg3: memref<8x512xf32, #tpu.memory_space<vmem>>) attributes {dimension_semantics = [], scalar_prefetch = 0 : i64, scratch_operands = 0 : i64, tpu.core_type = #tpu.core_type<tc>} {
    %c0 = arith.constant 0 : index
    %c0_0 = arith.constant 0 : index
    %0 = vector.load %arg0[%c0, %c0_0] : memref<16x512xf32, #tpu.memory_space<vmem>>, vector<16x512xf32>
    %cst = arith.constant 0.000000e+00 : f32
    %1 = vector.broadcast %cst : f32 to vector<16x512xf32>
    %2 = arith.maximumf %0, %1 : vector<16x512xf32>
    %c0_1 = arith.constant 0 : index
    %c0_2 = arith.constant 0 : index
    %3 = vector.load %arg1[%c0_1, %c0_2] : memref<8x16xf32, #tpu.memory_space<vmem>>, vector<8x16xf32>
    %cst_3 = arith.constant dense<0.000000e+00> : vector<8x512xf32>
    %4 = tpu.matmul %3, %2, %cst_3 {dimension_numbers = #tpu.dot_dimension_numbers<[1], [0], [0], [1], [0, 0, 1, 1], [], []>} : vector<8x16xf32>, vector<16x512xf32>, vector<8x512xf32> -> vector<8x512xf32>
    %c0_4 = arith.constant 0 : index
    %c0_5 = arith.constant 0 : index
    %5 = vector.load %arg2[%c0_4, %c0_5] : memref<8x1xf32, #tpu.memory_space<vmem>>, vector<8x1xf32>
    %6 = vector.broadcast %5 : vector<8x1xf32> to vector<8x512xf32>
    %7 = arith.addf %4, %6 : vector<8x512xf32>
    %c0_6 = arith.constant 0 : index
    %c0_7 = arith.constant 0 : index
    %8 = vector.load %arg3[%c0_6, %c0_7] : memref<8x512xf32, #tpu.memory_space<vmem>>, vector<8x512xf32>
    tpu.vector_store %arg3[%c0_6, %c0_7], %7 {strides = array<i32>} : memref<8x512xf32, #tpu.memory_space<vmem>>, vector<8x512xf32>,
    return
  }
}

module attributes {stable_mosaic.version = 11 : i64} {
  func.func @_max_pool_kernel(%arg0: memref<9x16x32xf32, #tpu.memory_space<vmem>>, %arg1: memref<16x32xf32, #tpu.memory_space<vmem>>) attributes {dimension_semantics = [], scalar_prefetch = 0 : i64, scratch_operands = 0 : i64, tpu.core_type = #tpu.core_type<tc>} {
    %c0 = arith.constant 0 : index
    %c0_0 = arith.constant 0 : index
    %c0_1 = arith.constant 0 : index
    %0 = vector.load %arg0[%c0, %c0_0, %c0_1] : memref<9x16x32xf32, #tpu.memory_space<vmem>>, vector<1x16x32xf32>
    %1 = vector.shape_cast %0 : vector<1x16x32xf32> to vector<16x32xf32>
    %c1 = arith.constant 1 : index
    %c0_2 = arith.constant 0 : index
    %c0_3 = arith.constant 0 : index
    %2 = vector.load %arg0[%c1, %c0_2, %c0_3] : memref<9x16x32xf32, #tpu.memory_space<vmem>>, vector<1x16x32xf32>
    %3 = vector.shape_cast %2 : vector<1x16x32xf32> to vector<16x32xf32>
    %4 = arith.maximumf %1, %3 : vector<16x32xf32>
    %c2 = arith.constant 2 : index
    %c0_4 = arith.constant 0 : index
    %c0_5 = arith.constant 0 : index
    %5 = vector.load %arg0[%c2, %c0_4, %c0_5] : memref<9x16x32xf32, #tpu.memory_space<vmem>>, vector<1x16x32xf32>
    %6 = vector.shape_cast %5 : vector<1x16x32xf32> to vector<16x32xf32>
    %7 = arith.maximumf %4, %6 : vector<16x32xf32>
    %c3 = arith.constant 3 : index
    %c0_6 = arith.constant 0 : index
    %c0_7 = arith.constant 0 : index
    %8 = vector.load %arg0[%c3, %c0_6, %c0_7] : memref<9x16x32xf32, #tpu.memory_space<vmem>>, vector<1x16x32xf32>
    %9 = vector.shape_cast %8 : vector<1x16x32xf32> to vector<16x32xf32>
    %10 = arith.maximumf %7, %9 : vector<16x32xf32>
    %c4 = arith.constant 4 : index
    %c0_8 = arith.constant 0 : index
    %c0_9 = arith.constant 0 : index
    %11 = vector.load %arg0[%c4, %c0_8, %c0_9] : memref<9x16x32xf32, #tpu.memory_space<vmem>>, vector<1x16x32xf32>
    %12 = vector.shape_cast %11 : vector<1x16x32xf32> to vector<16x32xf32>
    %13 = arith.maximumf %10, %12 : vector<16x32xf32>
    %c5 = arith.constant 5 : index
    %c0_10 = arith.constant 0 : index
    %c0_11 = arith.constant 0 : index
    %14 = vector.load %arg0[%c5, %c0_10, %c0_11] : memref<9x16x32xf32, #tpu.memory_space<vmem>>, vector<1x16x32xf32>
    %15 = vector.shape_cast %14 : vector<1x16x32xf32> to vector<16x32xf32>
    %16 = arith.maximumf %13, %15 : vector<16x32xf32>
    %c6 = arith.constant 6 : index
    %c0_12 = arith.constant 0 : index
    %c0_13 = arith.constant 0 : index
    %17 = vector.load %arg0[%c6, %c0_12, %c0_13] : memref<9x16x32xf32, #tpu.memory_space<vmem>>, vector<1x16x32xf32>
    %18 = vector.shape_cast %17 : vector<1x16x32xf32> to vector<16x32xf32>
    %19 = arith.maximumf %16, %18 : vector<16x32xf32>
    %c7 = arith.constant 7 : index
    %c0_14 = arith.constant 0 : index
    %c0_15 = arith.constant 0 : index
    %20 = vector.load %arg0[%c7, %c0_14, %c0_15] : memref<9x16x32xf32, #tpu.memory_space<vmem>>, vector<1x16x32xf32>
    %21 = vector.shape_cast %20 : vector<1x16x32xf32> to vector<16x32xf32>
    %22 = arith.maximumf %19, %21 : vector<16x32xf32>
    %c8 = arith.constant 8 : index
    %c0_16 = arith.constant 0 : index
    %c0_17 = arith.constant 0 : index
    %23 = vector.load %arg0[%c8, %c0_16, %c0_17] : memref<9x16x32xf32, #tpu.memory_space<vmem>>, vector<1x16x32xf32>
    %24 = vector.shape_cast %23 : vector<1x16x32xf32> to vector<16x32xf32>
    %25 = arith.maximumf %22, %24 : vector<16x32xf32>
    %c0_18 = arith.constant 0 : index
    %c0_19 = arith.constant 0 : index
    %26 = vector.load %arg1[%c0_18, %c0_19] : memref<16x32xf32, #tpu.memory_space<vmem>>, vector<16x32xf32>
    tpu.vector_store %arg1[%c0_18, %c0_19], %25 {strides = array<i32>} : memref<16x32xf32, #tpu.memory_space<vmem>>, vector<16x32xf32>,
    return
  }
}

module attributes {stable_mosaic.version = 11 : i64} {
  func.func @_relu_mm_bias_kernel(%arg0: memref<12x512xf32, #tpu.memory_space<vmem>>, %arg1: memref<8x12xf32, #tpu.memory_space<vmem>>, %arg2: memref<8x1xf32, #tpu.memory_space<vmem>>, %arg3: memref<8x512xf32, #tpu.memory_space<vmem>>) attributes {dimension_semantics = [], scalar_prefetch = 0 : i64, scratch_operands = 0 : i64, tpu.core_type = #tpu.core_type<tc>} {
    %c0 = arith.constant 0 : index
    %c0_0 = arith.constant 0 : index
    %0 = vector.load %arg0[%c0, %c0_0] : memref<12x512xf32, #tpu.memory_space<vmem>>, vector<12x512xf32>
    %cst = arith.constant 0.000000e+00 : f32
    %1 = vector.broadcast %cst : f32 to vector<12x512xf32>
    %2 = arith.maximumf %0, %1 : vector<12x512xf32>
    %c0_1 = arith.constant 0 : index
    %c0_2 = arith.constant 0 : index
    %3 = vector.load %arg1[%c0_1, %c0_2] : memref<8x12xf32, #tpu.memory_space<vmem>>, vector<8x12xf32>
    %cst_3 = arith.constant dense<0.000000e+00> : vector<8x512xf32>
    %4 = tpu.matmul %3, %2, %cst_3 {dimension_numbers = #tpu.dot_dimension_numbers<[1], [0], [0], [1], [0, 0, 1, 1], [], []>} : vector<8x12xf32>, vector<12x512xf32>, vector<8x512xf32> -> vector<8x512xf32>
    %c0_4 = arith.constant 0 : index
    %c0_5 = arith.constant 0 : index
    %5 = vector.load %arg2[%c0_4, %c0_5] : memref<8x1xf32, #tpu.memory_space<vmem>>, vector<8x1xf32>
    %6 = vector.broadcast %5 : vector<8x1xf32> to vector<8x512xf32>
    %7 = arith.addf %4, %6 : vector<8x512xf32>
    %c0_6 = arith.constant 0 : index
    %c0_7 = arith.constant 0 : index
    %8 = vector.load %arg3[%c0_6, %c0_7] : memref<8x512xf32, #tpu.memory_space<vmem>>, vector<8x512xf32>
    tpu.vector_store %arg3[%c0_6, %c0_7], %7 {strides = array<i32>} : memref<8x512xf32, #tpu.memory_space<vmem>>, vector<8x512xf32>,
    return
  }
}

module attributes {stable_mosaic.version = 11 : i64} {
  func.func @_sep_stage_kernel(%arg0: memref<9x8x128xf32, #tpu.memory_space<vmem>>, %arg1: memref<9x8x1xf32, #tpu.memory_space<vmem>>, %arg2: memref<8x8xf32, #tpu.memory_space<vmem>>, %arg3: memref<8x1xf32, #tpu.memory_space<vmem>>, %arg4: memref<8x128xf32, #tpu.memory_space<vmem>>) attributes {dimension_semantics = [], scalar_prefetch = 0 : i64, scratch_operands = 0 : i64, tpu.core_type = #tpu.core_type<tc>} {
    %c0 = arith.constant 0 : index
    %c0_0 = arith.constant 0 : index
    %c0_1 = arith.constant 0 : index
    %0 = vector.load %arg1[%c0, %c0_0, %c0_1] : memref<9x8x1xf32, #tpu.memory_space<vmem>>, vector<1x8x1xf32>
    %1 = vector.shape_cast %0 : vector<1x8x1xf32> to vector<8x1xf32>
    %c0_2 = arith.constant 0 : index
    %c0_3 = arith.constant 0 : index
    %c0_4 = arith.constant 0 : index
    %2 = vector.load %arg0[%c0_2, %c0_3, %c0_4] : memref<9x8x128xf32, #tpu.memory_space<vmem>>, vector<1x8x128xf32>
    %3 = vector.shape_cast %2 : vector<1x8x128xf32> to vector<8x128xf32>
    %cst = arith.constant 0.000000e+00 : f32
    %4 = vector.broadcast %cst : f32 to vector<8x128xf32>
    %5 = arith.maximumf %3, %4 : vector<8x128xf32>
    %6 = vector.broadcast %1 : vector<8x1xf32> to vector<8x128xf32>
    %7 = arith.mulf %6, %5 : vector<8x128xf32>
    %c1 = arith.constant 1 : index
    %c0_5 = arith.constant 0 : index
    %c0_6 = arith.constant 0 : index
    %8 = vector.load %arg1[%c1, %c0_5, %c0_6] : memref<9x8x1xf32, #tpu.memory_space<vmem>>, vector<1x8x1xf32>
    %9 = vector.shape_cast %8 : vector<1x8x1xf32> to vector<8x1xf32>
    %c1_7 = arith.constant 1 : index
    %c0_8 = arith.constant 0 : index
    %c0_9 = arith.constant 0 : index
    %10 = vector.load %arg0[%c1_7, %c0_8, %c0_9] : memref<9x8x128xf32, #tpu.memory_space<vmem>>, vector<1x8x128xf32>
    %11 = vector.shape_cast %10 : vector<1x8x128xf32> to vector<8x128xf32>
    %cst_10 = arith.constant 0.000000e+00 : f32
    %12 = vector.broadcast %cst_10 : f32 to vector<8x128xf32>
    %13 = arith.maximumf %11, %12 : vector<8x128xf32>
    %14 = vector.broadcast %9 : vector<8x1xf32> to vector<8x128xf32>
    %15 = arith.mulf %14, %13 : vector<8x128xf32>
    %16 = arith.addf %7, %15 : vector<8x128xf32>
    %c2 = arith.constant 2 : index
    %c0_11 = arith.constant 0 : index
    %c0_12 = arith.constant 0 : index
    %17 = vector.load %arg1[%c2, %c0_11, %c0_12] : memref<9x8x1xf32, #tpu.memory_space<vmem>>, vector<1x8x1xf32>
    %18 = vector.shape_cast %17 : vector<1x8x1xf32> to vector<8x1xf32>
    %c2_13 = arith.constant 2 : index
    %c0_14 = arith.constant 0 : index
    %c0_15 = arith.constant 0 : index
    %19 = vector.load %arg0[%c2_13, %c0_14, %c0_15] : memref<9x8x128xf32, #tpu.memory_space<vmem>>, vector<1x8x128xf32>
    %20 = vector.shape_cast %19 : vector<1x8x128xf32> to vector<8x128xf32>
    %cst_16 = arith.constant 0.000000e+00 : f32
    %21 = vector.broadcast %cst_16 : f32 to vector<8x128xf32>
    %22 = arith.maximumf %20, %21 : vector<8x128xf32>
    %23 = vector.broadcast %18 : vector<8x1xf32> to vector<8x128xf32>
    %24 = arith.mulf %23, %22 : vector<8x128xf32>
    %25 = arith.addf %16, %24 : vector<8x128xf32>
    %c3 = arith.constant 3 : index
    %c0_17 = arith.constant 0 : index
    %c0_18 = arith.constant 0 : index
    %26 = vector.load %arg1[%c3, %c0_17, %c0_18] : memref<9x8x1xf32, #tpu.memory_space<vmem>>, vector<1x8x1xf32>
    %27 = vector.shape_cast %26 : vector<1x8x1xf32> to vector<8x1xf32>
    %c3_19 = arith.constant 3 : index
    %c0_20 = arith.constant 0 : index
    %c0_21 = arith.constant 0 : index
    %28 = vector.load %arg0[%c3_19, %c0_20, %c0_21] : memref<9x8x128xf32, #tpu.memory_space<vmem>>, vector<1x8x128xf32>
    %29 = vector.shape_cast %28 : vector<1x8x128xf32> to vector<8x128xf32>
    %cst_22 = arith.constant 0.000000e+00 : f32
    %30 = vector.broadcast %cst_22 : f32 to vector<8x128xf32>
    %31 = arith.maximumf %29, %30 : vector<8x128xf32>
    %32 = vector.broadcast %27 : vector<8x1xf32> to vector<8x128xf32>
    %33 = arith.mulf %32, %31 : vector<8x128xf32>
    %34 = arith.addf %25, %33 : vector<8x128xf32>
    %c4 = arith.constant 4 : index
    %c0_23 = arith.constant 0 : index
    %c0_24 = arith.constant 0 : index
    %35 = vector.load %arg1[%c4, %c0_23, %c0_24] : memref<9x8x1xf32, #tpu.memory_space<vmem>>, vector<1x8x1xf32>
    %36 = vector.shape_cast %35 : vector<1x8x1xf32> to vector<8x1xf32>
    %c4_25 = arith.constant 4 : index
    %c0_26 = arith.constant 0 : index
    %c0_27 = arith.constant 0 : index
    %37 = vector.load %arg0[%c4_25, %c0_26, %c0_27] : memref<9x8x128xf32, #tpu.memory_space<vmem>>, vector<1x8x128xf32>
    %38 = vector.shape_cast %37 : vector<1x8x128xf32> to vector<8x128xf32>
    %cst_28 = arith.constant 0.000000e+00 : f32
    %39 = vector.broadcast %cst_28 : f32 to vector<8x128xf32>
    %40 = arith.maximumf %38, %39 : vector<8x128xf32>
    %41 = vector.broadcast %36 : vector<8x1xf32> to vector<8x128xf32>
    %42 = arith.mulf %41, %40 : vector<8x128xf32>
    %43 = arith.addf %34, %42 : vector<8x128xf32>
    %c5 = arith.constant 5 : index
    %c0_29 = arith.constant 0 : index
    %c0_30 = arith.constant 0 : index
    %44 = vector.load %arg1[%c5, %c0_29, %c0_30] : memref<9x8x1xf32, #tpu.memory_space<vmem>>, vector<1x8x1xf32>
    %45 = vector.shape_cast %44 : vector<1x8x1xf32> to vector<8x1xf32>
    %c5_31 = arith.constant 5 : index
    %c0_32 = arith.constant 0 : index
    %c0_33 = arith.constant 0 : index
    %46 = vector.load %arg0[%c5_31, %c0_32, %c0_33] : memref<9x8x128xf32, #tpu.memory_space<vmem>>, vector<1x8x128xf32>
    %47 = vector.shape_cast %46 : vector<1x8x128xf32> to vector<8x128xf32>
    %cst_34 = arith.constant 0.000000e+00 : f32
    %48 = vector.broadcast %cst_34 : f32 to vector<8x128xf32>
    %49 = arith.maximumf %47, %48 : vector<8x128xf32>
    %50 = vector.broadcast %45 : vector<8x1xf32> to vector<8x128xf32>
    %51 = arith.mulf %50, %49 : vector<8x128xf32>
    %52 = arith.addf %43, %51 : vector<8x128xf32>
    %c6 = arith.constant 6 : index
    %c0_35 = arith.constant 0 : index
    %c0_36 = arith.constant 0 : index
    %53 = vector.load %arg1[%c6, %c0_35, %c0_36] : memref<9x8x1xf32, #tpu.memory_space<vmem>>, vector<1x8x1xf32>
    %54 = vector.shape_cast %53 : vector<1x8x1xf32> to vector<8x1xf32>
    %c6_37 = arith.constant 6 : index
    %c0_38 = arith.constant 0 : index
    %c0_39 = arith.constant 0 : index
    %55 = vector.load %arg0[%c6_37, %c0_38, %c0_39] : memref<9x8x128xf32, #tpu.memory_space<vmem>>, vector<1x8x128xf32>
    %56 = vector.shape_cast %55 : vector<1x8x128xf32> to vector<8x128xf32>
    %cst_40 = arith.constant 0.000000e+00 : f32
    %57 = vector.broadcast %cst_40 : f32 to vector<8x128xf32>
    %58 = arith.maximumf %56, %57 : vector<8x128xf32>
    %59 = vector.broadcast %54 : vector<8x1xf32> to vector<8x128xf32>
    %60 = arith.mulf %59, %58 : vector<8x128xf32>
    %61 = arith.addf %52, %60 : vector<8x128xf32>
    %c7 = arith.constant 7 : index
    %c0_41 = arith.constant 0 : index
    %c0_42 = arith.constant 0 : index
    %62 = vector.load %arg1[%c7, %c0_41, %c0_42] : memref<9x8x1xf32, #tpu.memory_space<vmem>>, vector<1x8x1xf32>
    %63 = vector.shape_cast %62 : vector<1x8x1xf32> to vector<8x1xf32>
    %c7_43 = arith.constant 7 : index
    %c0_44 = arith.constant 0 : index
    %c0_45 = arith.constant 0 : index
    %64 = vector.load %arg0[%c7_43, %c0_44, %c0_45] : memref<9x8x128xf32, #tpu.memory_space<vmem>>, vector<1x8x128xf32>
    %65 = vector.shape_cast %64 : vector<1x8x128xf32> to vector<8x128xf32>
    %cst_46 = arith.constant 0.000000e+00 : f32
    %66 = vector.broadcast %cst_46 : f32 to vector<8x128xf32>
    %67 = arith.maximumf %65, %66 : vector<8x128xf32>
    %68 = vector.broadcast %63 : vector<8x1xf32> to vector<8x128xf32>
    %69 = arith.mulf %68, %67 : vector<8x128xf32>
    %70 = arith.addf %61, %69 : vector<8x128xf32>
    %c8 = arith.constant 8 : index
    %c0_47 = arith.constant 0 : index
    %c0_48 = arith.constant 0 : index
    %71 = vector.load %arg1[%c8, %c0_47, %c0_48] : memref<9x8x1xf32, #tpu.memory_space<vmem>>, vector<1x8x1xf32>
    %72 = vector.shape_cast %71 : vector<1x8x1xf32> to vector<8x1xf32>
    %c8_49 = arith.constant 8 : index
    %c0_50 = arith.constant 0 : index
    %c0_51 = arith.constant 0 : index
    %73 = vector.load %arg0[%c8_49, %c0_50, %c0_51] : memref<9x8x128xf32, #tpu.memory_space<vmem>>, vector<1x8x128xf32>
    %74 = vector.shape_cast %73 : vector<1x8x128xf32> to vector<8x128xf32>
    %cst_52 = arith.constant 0.000000e+00 : f32
    %75 = vector.broadcast %cst_52 : f32 to vector<8x128xf32>
    %76 = arith.maximumf %74, %75 : vector<8x128xf32>
    %77 = vector.broadcast %72 : vector<8x1xf32> to vector<8x128xf32>
    %78 = arith.mulf %77, %76 : vector<8x128xf32>
    %79 = arith.addf %70, %78 : vector<8x128xf32>
    %c0_53 = arith.constant 0 : index
    %c0_54 = arith.constant 0 : index
    %80 = vector.load %arg2[%c0_53, %c0_54] : memref<8x8xf32, #tpu.memory_space<vmem>>, vector<8x8xf32>
    %cst_55 = arith.constant dense<0.000000e+00> : vector<8x128xf32>
    %81 = tpu.matmul %80, %79, %cst_55 {dimension_numbers = #tpu.dot_dimension_numbers<[1], [0], [0], [1], [0, 0, 1, 1], [], []>} : vector<8x8xf32>, vector<8x128xf32>, vector<8x128xf32> -> vector<8x128xf32>
    %c0_56 = arith.constant 0 : index
    %c0_57 = arith.constant 0 : index
    %82 = vector.load %arg3[%c0_56, %c0_57] : memref<8x1xf32, #tpu.memory_space<vmem>>, vector<8x1xf32>
    %83 = vector.broadcast %82 : vector<8x1xf32> to vector<8x128xf32>
    %84 = arith.addf %81, %83 : vector<8x128xf32>
    %c0_58 = arith.constant 0 : index
    %c0_59 = arith.constant 0 : index
    %85 = vector.load %arg4[%c0_58, %c0_59] : memref<8x128xf32, #tpu.memory_space<vmem>>, vector<8x128xf32>
    tpu.vector_store %arg4[%c0_58, %c0_59], %84 {strides = array<i32>} : memref<8x128xf32, #tpu.memory_space<vmem>>, vector<8x128xf32>,
    return
  }
}

module attributes {stable_mosaic.version = 11 : i64} {
  func.func @_max_pool_kernel(%arg0: memref<9x8x128xf32, #tpu.memory_space<vmem>>, %arg1: memref<8x128xf32, #tpu.memory_space<vmem>>) attributes {dimension_semantics = [], scalar_prefetch = 0 : i64, scratch_operands = 0 : i64, tpu.core_type = #tpu.core_type<tc>} {
    %c0 = arith.constant 0 : index
    %c0_0 = arith.constant 0 : index
    %c0_1 = arith.constant 0 : index
    %0 = vector.load %arg0[%c0, %c0_0, %c0_1] : memref<9x8x128xf32, #tpu.memory_space<vmem>>, vector<1x8x128xf32>
    %1 = vector.shape_cast %0 : vector<1x8x128xf32> to vector<8x128xf32>
    %c1 = arith.constant 1 : index
    %c0_2 = arith.constant 0 : index
    %c0_3 = arith.constant 0 : index
    %2 = vector.load %arg0[%c1, %c0_2, %c0_3] : memref<9x8x128xf32, #tpu.memory_space<vmem>>, vector<1x8x128xf32>
    %3 = vector.shape_cast %2 : vector<1x8x128xf32> to vector<8x128xf32>
    %4 = arith.maximumf %1, %3 : vector<8x128xf32>
    %c2 = arith.constant 2 : index
    %c0_4 = arith.constant 0 : index
    %c0_5 = arith.constant 0 : index
    %5 = vector.load %arg0[%c2, %c0_4, %c0_5] : memref<9x8x128xf32, #tpu.memory_space<vmem>>, vector<1x8x128xf32>
    %6 = vector.shape_cast %5 : vector<1x8x128xf32> to vector<8x128xf32>
    %7 = arith.maximumf %4, %6 : vector<8x128xf32>
    %c3 = arith.constant 3 : index
    %c0_6 = arith.constant 0 : index
    %c0_7 = arith.constant 0 : index
    %8 = vector.load %arg0[%c3, %c0_6, %c0_7] : memref<9x8x128xf32, #tpu.memory_space<vmem>>, vector<1x8x128xf32>
    %9 = vector.shape_cast %8 : vector<1x8x128xf32> to vector<8x128xf32>
    %10 = arith.maximumf %7, %9 : vector<8x128xf32>
    %c4 = arith.constant 4 : index
    %c0_8 = arith.constant 0 : index
    %c0_9 = arith.constant 0 : index
    %11 = vector.load %arg0[%c4, %c0_8, %c0_9] : memref<9x8x128xf32, #tpu.memory_space<vmem>>, vector<1x8x128xf32>
    %12 = vector.shape_cast %11 : vector<1x8x128xf32> to vector<8x128xf32>
    %13 = arith.maximumf %10, %12 : vector<8x128xf32>
    %c5 = arith.constant 5 : index
    %c0_10 = arith.constant 0 : index
    %c0_11 = arith.constant 0 : index
    %14 = vector.load %arg0[%c5, %c0_10, %c0_11] : memref<9x8x128xf32, #tpu.memory_space<vmem>>, vector<1x8x128xf32>
    %15 = vector.shape_cast %14 : vector<1x8x128xf32> to vector<8x128xf32>
    %16 = arith.maximumf %13, %15 : vector<8x128xf32>
    %c6 = arith.constant 6 : index
    %c0_12 = arith.constant 0 : index
    %c0_13 = arith.constant 0 : index
    %17 = vector.load %arg0[%c6, %c0_12, %c0_13] : memref<9x8x128xf32, #tpu.memory_space<vmem>>, vector<1x8x128xf32>
    %18 = vector.shape_cast %17 : vector<1x8x128xf32> to vector<8x128xf32>
    %19 = arith.maximumf %16, %18 : vector<8x128xf32>
    %c7 = arith.constant 7 : index
    %c0_14 = arith.constant 0 : index
    %c0_15 = arith.constant 0 : index
    %20 = vector.load %arg0[%c7, %c0_14, %c0_15] : memref<9x8x128xf32, #tpu.memory_space<vmem>>, vector<1x8x128xf32>
    %21 = vector.shape_cast %20 : vector<1x8x128xf32> to vector<8x128xf32>
    %22 = arith.maximumf %19, %21 : vector<8x128xf32>
    %c8 = arith.constant 8 : index
    %c0_16 = arith.constant 0 : index
    %c0_17 = arith.constant 0 : index
    %23 = vector.load %arg0[%c8, %c0_16, %c0_17] : memref<9x8x128xf32, #tpu.memory_space<vmem>>, vector<1x8x128xf32>
    %24 = vector.shape_cast %23 : vector<1x8x128xf32> to vector<8x128xf32>
    %25 = arith.maximumf %22, %24 : vector<8x128xf32>
    %c0_18 = arith.constant 0 : index
    %c0_19 = arith.constant 0 : index
    %26 = vector.load %arg1[%c0_18, %c0_19] : memref<8x128xf32, #tpu.memory_space<vmem>>, vector<8x128xf32>
    tpu.vector_store %arg1[%c0_18, %c0_19], %25 {strides = array<i32>} : memref<8x128xf32, #tpu.memory_space<vmem>>, vector<8x128xf32>,
    return
  }
}

module attributes {stable_mosaic.version = 11 : i64} {
  func.func @_sep_stage_res_kernel(%arg0: memref<9x8x128xf32, #tpu.memory_space<vmem>>, %arg1: memref<9x8x1xf32, #tpu.memory_space<vmem>>, %arg2: memref<8x8xf32, #tpu.memory_space<vmem>>, %arg3: memref<8x1xf32, #tpu.memory_space<vmem>>, %arg4: memref<8x128xf32, #tpu.memory_space<vmem>>, %arg5: memref<8x128xf32, #tpu.memory_space<vmem>>) attributes {dimension_semantics = [], scalar_prefetch = 0 : i64, scratch_operands = 0 : i64, tpu.core_type = #tpu.core_type<tc>} {
    %c0 = arith.constant 0 : index
    %c0_0 = arith.constant 0 : index
    %c0_1 = arith.constant 0 : index
    %0 = vector.load %arg1[%c0, %c0_0, %c0_1] : memref<9x8x1xf32, #tpu.memory_space<vmem>>, vector<1x8x1xf32>
    %1 = vector.shape_cast %0 : vector<1x8x1xf32> to vector<8x1xf32>
    %c0_2 = arith.constant 0 : index
    %c0_3 = arith.constant 0 : index
    %c0_4 = arith.constant 0 : index
    %2 = vector.load %arg0[%c0_2, %c0_3, %c0_4] : memref<9x8x128xf32, #tpu.memory_space<vmem>>, vector<1x8x128xf32>
    %3 = vector.shape_cast %2 : vector<1x8x128xf32> to vector<8x128xf32>
    %cst = arith.constant 0.000000e+00 : f32
    %4 = vector.broadcast %cst : f32 to vector<8x128xf32>
    %5 = arith.maximumf %3, %4 : vector<8x128xf32>
    %6 = vector.broadcast %1 : vector<8x1xf32> to vector<8x128xf32>
    %7 = arith.mulf %6, %5 : vector<8x128xf32>
    %c1 = arith.constant 1 : index
    %c0_5 = arith.constant 0 : index
    %c0_6 = arith.constant 0 : index
    %8 = vector.load %arg1[%c1, %c0_5, %c0_6] : memref<9x8x1xf32, #tpu.memory_space<vmem>>, vector<1x8x1xf32>
    %9 = vector.shape_cast %8 : vector<1x8x1xf32> to vector<8x1xf32>
    %c1_7 = arith.constant 1 : index
    %c0_8 = arith.constant 0 : index
    %c0_9 = arith.constant 0 : index
    %10 = vector.load %arg0[%c1_7, %c0_8, %c0_9] : memref<9x8x128xf32, #tpu.memory_space<vmem>>, vector<1x8x128xf32>
    %11 = vector.shape_cast %10 : vector<1x8x128xf32> to vector<8x128xf32>
    %cst_10 = arith.constant 0.000000e+00 : f32
    %12 = vector.broadcast %cst_10 : f32 to vector<8x128xf32>
    %13 = arith.maximumf %11, %12 : vector<8x128xf32>
    %14 = vector.broadcast %9 : vector<8x1xf32> to vector<8x128xf32>
    %15 = arith.mulf %14, %13 : vector<8x128xf32>
    %16 = arith.addf %7, %15 : vector<8x128xf32>
    %c2 = arith.constant 2 : index
    %c0_11 = arith.constant 0 : index
    %c0_12 = arith.constant 0 : index
    %17 = vector.load %arg1[%c2, %c0_11, %c0_12] : memref<9x8x1xf32, #tpu.memory_space<vmem>>, vector<1x8x1xf32>
    %18 = vector.shape_cast %17 : vector<1x8x1xf32> to vector<8x1xf32>
    %c2_13 = arith.constant 2 : index
    %c0_14 = arith.constant 0 : index
    %c0_15 = arith.constant 0 : index
    %19 = vector.load %arg0[%c2_13, %c0_14, %c0_15] : memref<9x8x128xf32, #tpu.memory_space<vmem>>, vector<1x8x128xf32>
    %20 = vector.shape_cast %19 : vector<1x8x128xf32> to vector<8x128xf32>
    %cst_16 = arith.constant 0.000000e+00 : f32
    %21 = vector.broadcast %cst_16 : f32 to vector<8x128xf32>
    %22 = arith.maximumf %20, %21 : vector<8x128xf32>
    %23 = vector.broadcast %18 : vector<8x1xf32> to vector<8x128xf32>
    %24 = arith.mulf %23, %22 : vector<8x128xf32>
    %25 = arith.addf %16, %24 : vector<8x128xf32>
    %c3 = arith.constant 3 : index
    %c0_17 = arith.constant 0 : index
    %c0_18 = arith.constant 0 : index
    %26 = vector.load %arg1[%c3, %c0_17, %c0_18] : memref<9x8x1xf32, #tpu.memory_space<vmem>>, vector<1x8x1xf32>
    %27 = vector.shape_cast %26 : vector<1x8x1xf32> to vector<8x1xf32>
    %c3_19 = arith.constant 3 : index
    %c0_20 = arith.constant 0 : index
    %c0_21 = arith.constant 0 : index
    %28 = vector.load %arg0[%c3_19, %c0_20, %c0_21] : memref<9x8x128xf32, #tpu.memory_space<vmem>>, vector<1x8x128xf32>
    %29 = vector.shape_cast %28 : vector<1x8x128xf32> to vector<8x128xf32>
    %cst_22 = arith.constant 0.000000e+00 : f32
    %30 = vector.broadcast %cst_22 : f32 to vector<8x128xf32>
    %31 = arith.maximumf %29, %30 : vector<8x128xf32>
    %32 = vector.broadcast %27 : vector<8x1xf32> to vector<8x128xf32>
    %33 = arith.mulf %32, %31 : vector<8x128xf32>
    %34 = arith.addf %25, %33 : vector<8x128xf32>
    %c4 = arith.constant 4 : index
    %c0_23 = arith.constant 0 : index
    %c0_24 = arith.constant 0 : index
    %35 = vector.load %arg1[%c4, %c0_23, %c0_24] : memref<9x8x1xf32, #tpu.memory_space<vmem>>, vector<1x8x1xf32>
    %36 = vector.shape_cast %35 : vector<1x8x1xf32> to vector<8x1xf32>
    %c4_25 = arith.constant 4 : index
    %c0_26 = arith.constant 0 : index
    %c0_27 = arith.constant 0 : index
    %37 = vector.load %arg0[%c4_25, %c0_26, %c0_27] : memref<9x8x128xf32, #tpu.memory_space<vmem>>, vector<1x8x128xf32>
    %38 = vector.shape_cast %37 : vector<1x8x128xf32> to vector<8x128xf32>
    %cst_28 = arith.constant 0.000000e+00 : f32
    %39 = vector.broadcast %cst_28 : f32 to vector<8x128xf32>
    %40 = arith.maximumf %38, %39 : vector<8x128xf32>
    %41 = vector.broadcast %36 : vector<8x1xf32> to vector<8x128xf32>
    %42 = arith.mulf %41, %40 : vector<8x128xf32>
    %43 = arith.addf %34, %42 : vector<8x128xf32>
    %c5 = arith.constant 5 : index
    %c0_29 = arith.constant 0 : index
    %c0_30 = arith.constant 0 : index
    %44 = vector.load %arg1[%c5, %c0_29, %c0_30] : memref<9x8x1xf32, #tpu.memory_space<vmem>>, vector<1x8x1xf32>
    %45 = vector.shape_cast %44 : vector<1x8x1xf32> to vector<8x1xf32>
    %c5_31 = arith.constant 5 : index
    %c0_32 = arith.constant 0 : index
    %c0_33 = arith.constant 0 : index
    %46 = vector.load %arg0[%c5_31, %c0_32, %c0_33] : memref<9x8x128xf32, #tpu.memory_space<vmem>>, vector<1x8x128xf32>
    %47 = vector.shape_cast %46 : vector<1x8x128xf32> to vector<8x128xf32>
    %cst_34 = arith.constant 0.000000e+00 : f32
    %48 = vector.broadcast %cst_34 : f32 to vector<8x128xf32>
    %49 = arith.maximumf %47, %48 : vector<8x128xf32>
    %50 = vector.broadcast %45 : vector<8x1xf32> to vector<8x128xf32>
    %51 = arith.mulf %50, %49 : vector<8x128xf32>
    %52 = arith.addf %43, %51 : vector<8x128xf32>
    %c6 = arith.constant 6 : index
    %c0_35 = arith.constant 0 : index
    %c0_36 = arith.constant 0 : index
    %53 = vector.load %arg1[%c6, %c0_35, %c0_36] : memref<9x8x1xf32, #tpu.memory_space<vmem>>, vector<1x8x1xf32>
    %54 = vector.shape_cast %53 : vector<1x8x1xf32> to vector<8x1xf32>
    %c6_37 = arith.constant 6 : index
    %c0_38 = arith.constant 0 : index
    %c0_39 = arith.constant 0 : index
    %55 = vector.load %arg0[%c6_37, %c0_38, %c0_39] : memref<9x8x128xf32, #tpu.memory_space<vmem>>, vector<1x8x128xf32>
    %56 = vector.shape_cast %55 : vector<1x8x128xf32> to vector<8x128xf32>
    %cst_40 = arith.constant 0.000000e+00 : f32
    %57 = vector.broadcast %cst_40 : f32 to vector<8x128xf32>
    %58 = arith.maximumf %56, %57 : vector<8x128xf32>
    %59 = vector.broadcast %54 : vector<8x1xf32> to vector<8x128xf32>
    %60 = arith.mulf %59, %58 : vector<8x128xf32>
    %61 = arith.addf %52, %60 : vector<8x128xf32>
    %c7 = arith.constant 7 : index
    %c0_41 = arith.constant 0 : index
    %c0_42 = arith.constant 0 : index
    %62 = vector.load %arg1[%c7, %c0_41, %c0_42] : memref<9x8x1xf32, #tpu.memory_space<vmem>>, vector<1x8x1xf32>
    %63 = vector.shape_cast %62 : vector<1x8x1xf32> to vector<8x1xf32>
    %c7_43 = arith.constant 7 : index
    %c0_44 = arith.constant 0 : index
    %c0_45 = arith.constant 0 : index
    %64 = vector.load %arg0[%c7_43, %c0_44, %c0_45] : memref<9x8x128xf32, #tpu.memory_space<vmem>>, vector<1x8x128xf32>
    %65 = vector.shape_cast %64 : vector<1x8x128xf32> to vector<8x128xf32>
    %cst_46 = arith.constant 0.000000e+00 : f32
    %66 = vector.broadcast %cst_46 : f32 to vector<8x128xf32>
    %67 = arith.maximumf %65, %66 : vector<8x128xf32>
    %68 = vector.broadcast %63 : vector<8x1xf32> to vector<8x128xf32>
    %69 = arith.mulf %68, %67 : vector<8x128xf32>
    %70 = arith.addf %61, %69 : vector<8x128xf32>
    %c8 = arith.constant 8 : index
    %c0_47 = arith.constant 0 : index
    %c0_48 = arith.constant 0 : index
    %71 = vector.load %arg1[%c8, %c0_47, %c0_48] : memref<9x8x1xf32, #tpu.memory_space<vmem>>, vector<1x8x1xf32>
    %72 = vector.shape_cast %71 : vector<1x8x1xf32> to vector<8x1xf32>
    %c8_49 = arith.constant 8 : index
    %c0_50 = arith.constant 0 : index
    %c0_51 = arith.constant 0 : index
    %73 = vector.load %arg0[%c8_49, %c0_50, %c0_51] : memref<9x8x128xf32, #tpu.memory_space<vmem>>, vector<1x8x128xf32>
    %74 = vector.shape_cast %73 : vector<1x8x128xf32> to vector<8x128xf32>
    %cst_52 = arith.constant 0.000000e+00 : f32
    %75 = vector.broadcast %cst_52 : f32 to vector<8x128xf32>
    %76 = arith.maximumf %74, %75 : vector<8x128xf32>
    %77 = vector.broadcast %72 : vector<8x1xf32> to vector<8x128xf32>
    %78 = arith.mulf %77, %76 : vector<8x128xf32>
    %79 = arith.addf %70, %78 : vector<8x128xf32>
    %c0_53 = arith.constant 0 : index
    %c0_54 = arith.constant 0 : index
    %80 = vector.load %arg2[%c0_53, %c0_54] : memref<8x8xf32, #tpu.memory_space<vmem>>, vector<8x8xf32>
    %cst_55 = arith.constant dense<0.000000e+00> : vector<8x128xf32>
    %81 = tpu.matmul %80, %79, %cst_55 {dimension_numbers = #tpu.dot_dimension_numbers<[1], [0], [0], [1], [0, 0, 1, 1], [], []>} : vector<8x8xf32>, vector<8x128xf32>, vector<8x128xf32> -> vector<8x128xf32>
    %c0_56 = arith.constant 0 : index
    %c0_57 = arith.constant 0 : index
    %82 = vector.load %arg3[%c0_56, %c0_57] : memref<8x1xf32, #tpu.memory_space<vmem>>, vector<8x1xf32>
    %83 = vector.broadcast %82 : vector<8x1xf32> to vector<8x128xf32>
    %84 = arith.addf %81, %83 : vector<8x128xf32>
    %c0_58 = arith.constant 0 : index
    %c0_59 = arith.constant 0 : index
    %85 = vector.load %arg4[%c0_58, %c0_59] : memref<8x128xf32, #tpu.memory_space<vmem>>, vector<8x128xf32>
    %86 = arith.addf %84, %85 : vector<8x128xf32>
    %c0_60 = arith.constant 0 : index
    %c0_61 = arith.constant 0 : index
    %87 = vector.load %arg5[%c0_60, %c0_61] : memref<8x128xf32, #tpu.memory_space<vmem>>, vector<8x128xf32>
    tpu.vector_store %arg5[%c0_60, %c0_61], %86 {strides = array<i32>} : memref<8x128xf32, #tpu.memory_space<vmem>>, vector<8x128xf32>,
    return
  }
}

module attributes {stable_mosaic.version = 11 : i64} {
  func.func @_avg_pool_res_kernel(%arg0: memref<9x8x128xf32, #tpu.memory_space<vmem>>, %arg1: memref<1x128xf32, #tpu.memory_space<vmem>>, %arg2: memref<8x128xf32, #tpu.memory_space<vmem>>, %arg3: memref<8x128xf32, #tpu.memory_space<vmem>>) attributes {dimension_semantics = [], scalar_prefetch = 0 : i64, scratch_operands = 0 : i64, tpu.core_type = #tpu.core_type<tc>} {
    %c0 = arith.constant 0 : index
    %c0_0 = arith.constant 0 : index
    %c0_1 = arith.constant 0 : index
    %0 = vector.load %arg0[%c0, %c0_0, %c0_1] : memref<9x8x128xf32, #tpu.memory_space<vmem>>, vector<1x8x128xf32>
    %1 = vector.shape_cast %0 : vector<1x8x128xf32> to vector<8x128xf32>
    %c1 = arith.constant 1 : index
    %c0_2 = arith.constant 0 : index
    %c0_3 = arith.constant 0 : index
    %2 = vector.load %arg0[%c1, %c0_2, %c0_3] : memref<9x8x128xf32, #tpu.memory_space<vmem>>, vector<1x8x128xf32>
    %3 = vector.shape_cast %2 : vector<1x8x128xf32> to vector<8x128xf32>
    %4 = arith.addf %1, %3 : vector<8x128xf32>
    %c2 = arith.constant 2 : index
    %c0_4 = arith.constant 0 : index
    %c0_5 = arith.constant 0 : index
    %5 = vector.load %arg0[%c2, %c0_4, %c0_5] : memref<9x8x128xf32, #tpu.memory_space<vmem>>, vector<1x8x128xf32>
    %6 = vector.shape_cast %5 : vector<1x8x128xf32> to vector<8x128xf32>
    %7 = arith.addf %4, %6 : vector<8x128xf32>
    %c3 = arith.constant 3 : index
    %c0_6 = arith.constant 0 : index
    %c0_7 = arith.constant 0 : index
    %8 = vector.load %arg0[%c3, %c0_6, %c0_7] : memref<9x8x128xf32, #tpu.memory_space<vmem>>, vector<1x8x128xf32>
    %9 = vector.shape_cast %8 : vector<1x8x128xf32> to vector<8x128xf32>
    %10 = arith.addf %7, %9 : vector<8x128xf32>
    %c4 = arith.constant 4 : index
    %c0_8 = arith.constant 0 : index
    %c0_9 = arith.constant 0 : index
    %11 = vector.load %arg0[%c4, %c0_8, %c0_9] : memref<9x8x128xf32, #tpu.memory_space<vmem>>, vector<1x8x128xf32>
    %12 = vector.shape_cast %11 : vector<1x8x128xf32> to vector<8x128xf32>
    %13 = arith.addf %10, %12 : vector<8x128xf32>
    %c5 = arith.constant 5 : index
    %c0_10 = arith.constant 0 : index
    %c0_11 = arith.constant 0 : index
    %14 = vector.load %arg0[%c5, %c0_10, %c0_11] : memref<9x8x128xf32, #tpu.memory_space<vmem>>, vector<1x8x128xf32>
    %15 = vector.shape_cast %14 : vector<1x8x128xf32> to vector<8x128xf32>
    %16 = arith.addf %13, %15 : vector<8x128xf32>
    %c6 = arith.constant 6 : index
    %c0_12 = arith.constant 0 : index
    %c0_13 = arith.constant 0 : index
    %17 = vector.load %arg0[%c6, %c0_12, %c0_13] : memref<9x8x128xf32, #tpu.memory_space<vmem>>, vector<1x8x128xf32>
    %18 = vector.shape_cast %17 : vector<1x8x128xf32> to vector<8x128xf32>
    %19 = arith.addf %16, %18 : vector<8x128xf32>
    %c7 = arith.constant 7 : index
    %c0_14 = arith.constant 0 : index
    %c0_15 = arith.constant 0 : index
    %20 = vector.load %arg0[%c7, %c0_14, %c0_15] : memref<9x8x128xf32, #tpu.memory_space<vmem>>, vector<1x8x128xf32>
    %21 = vector.shape_cast %20 : vector<1x8x128xf32> to vector<8x128xf32>
    %22 = arith.addf %19, %21 : vector<8x128xf32>
    %c8 = arith.constant 8 : index
    %c0_16 = arith.constant 0 : index
    %c0_17 = arith.constant 0 : index
    %23 = vector.load %arg0[%c8, %c0_16, %c0_17] : memref<9x8x128xf32, #tpu.memory_space<vmem>>, vector<1x8x128xf32>
    %24 = vector.shape_cast %23 : vector<1x8x128xf32> to vector<8x128xf32>
    %25 = arith.addf %22, %24 : vector<8x128xf32>
    %c0_18 = arith.constant 0 : index
    %c0_19 = arith.constant 0 : index
    %26 = vector.load %arg1[%c0_18, %c0_19] : memref<1x128xf32, #tpu.memory_space<vmem>>, vector<1x128xf32>
    %27 = vector.broadcast %26 : vector<1x128xf32> to vector<8x128xf32>
    %28 = arith.mulf %25, %27 : vector<8x128xf32>
    %c0_20 = arith.constant 0 : index
    %c0_21 = arith.constant 0 : index
    %29 = vector.load %arg2[%c0_20, %c0_21] : memref<8x128xf32, #tpu.memory_space<vmem>>, vector<8x128xf32>
    %30 = arith.addf %28, %29 : vector<8x128xf32>
    %c0_22 = arith.constant 0 : index
    %c0_23 = arith.constant 0 : index
    %31 = vector.load %arg3[%c0_22, %c0_23] : memref<8x128xf32, #tpu.memory_space<vmem>>, vector<8x128xf32>
    tpu.vector_store %arg3[%c0_22, %c0_23], %30 {strides = array<i32>} : memref<8x128xf32, #tpu.memory_space<vmem>>, vector<8x128xf32>,
    return
  }
}

module attributes {stable_mosaic.version = 11 : i64} {
  func.func @_max_pool_res_kernel(%arg0: memref<9x8x128xf32, #tpu.memory_space<vmem>>, %arg1: memref<8x128xf32, #tpu.memory_space<vmem>>, %arg2: memref<8x128xf32, #tpu.memory_space<vmem>>) attributes {dimension_semantics = [], scalar_prefetch = 0 : i64, scratch_operands = 0 : i64, tpu.core_type = #tpu.core_type<tc>} {
    %c0 = arith.constant 0 : index
    %c0_0 = arith.constant 0 : index
    %c0_1 = arith.constant 0 : index
    %0 = vector.load %arg0[%c0, %c0_0, %c0_1] : memref<9x8x128xf32, #tpu.memory_space<vmem>>, vector<1x8x128xf32>
    %1 = vector.shape_cast %0 : vector<1x8x128xf32> to vector<8x128xf32>
    %c1 = arith.constant 1 : index
    %c0_2 = arith.constant 0 : index
    %c0_3 = arith.constant 0 : index
    %2 = vector.load %arg0[%c1, %c0_2, %c0_3] : memref<9x8x128xf32, #tpu.memory_space<vmem>>, vector<1x8x128xf32>
    %3 = vector.shape_cast %2 : vector<1x8x128xf32> to vector<8x128xf32>
    %4 = arith.maximumf %1, %3 : vector<8x128xf32>
    %c2 = arith.constant 2 : index
    %c0_4 = arith.constant 0 : index
    %c0_5 = arith.constant 0 : index
    %5 = vector.load %arg0[%c2, %c0_4, %c0_5] : memref<9x8x128xf32, #tpu.memory_space<vmem>>, vector<1x8x128xf32>
    %6 = vector.shape_cast %5 : vector<1x8x128xf32> to vector<8x128xf32>
    %7 = arith.maximumf %4, %6 : vector<8x128xf32>
    %c3 = arith.constant 3 : index
    %c0_6 = arith.constant 0 : index
    %c0_7 = arith.constant 0 : index
    %8 = vector.load %arg0[%c3, %c0_6, %c0_7] : memref<9x8x128xf32, #tpu.memory_space<vmem>>, vector<1x8x128xf32>
    %9 = vector.shape_cast %8 : vector<1x8x128xf32> to vector<8x128xf32>
    %10 = arith.maximumf %7, %9 : vector<8x128xf32>
    %c4 = arith.constant 4 : index
    %c0_8 = arith.constant 0 : index
    %c0_9 = arith.constant 0 : index
    %11 = vector.load %arg0[%c4, %c0_8, %c0_9] : memref<9x8x128xf32, #tpu.memory_space<vmem>>, vector<1x8x128xf32>
    %12 = vector.shape_cast %11 : vector<1x8x128xf32> to vector<8x128xf32>
    %13 = arith.maximumf %10, %12 : vector<8x128xf32>
    %c5 = arith.constant 5 : index
    %c0_10 = arith.constant 0 : index
    %c0_11 = arith.constant 0 : index
    %14 = vector.load %arg0[%c5, %c0_10, %c0_11] : memref<9x8x128xf32, #tpu.memory_space<vmem>>, vector<1x8x128xf32>
    %15 = vector.shape_cast %14 : vector<1x8x128xf32> to vector<8x128xf32>
    %16 = arith.maximumf %13, %15 : vector<8x128xf32>
    %c6 = arith.constant 6 : index
    %c0_12 = arith.constant 0 : index
    %c0_13 = arith.constant 0 : index
    %17 = vector.load %arg0[%c6, %c0_12, %c0_13] : memref<9x8x128xf32, #tpu.memory_space<vmem>>, vector<1x8x128xf32>
    %18 = vector.shape_cast %17 : vector<1x8x128xf32> to vector<8x128xf32>
    %19 = arith.maximumf %16, %18 : vector<8x128xf32>
    %c7 = arith.constant 7 : index
    %c0_14 = arith.constant 0 : index
    %c0_15 = arith.constant 0 : index
    %20 = vector.load %arg0[%c7, %c0_14, %c0_15] : memref<9x8x128xf32, #tpu.memory_space<vmem>>, vector<1x8x128xf32>
    %21 = vector.shape_cast %20 : vector<1x8x128xf32> to vector<8x128xf32>
    %22 = arith.maximumf %19, %21 : vector<8x128xf32>
    %c8 = arith.constant 8 : index
    %c0_16 = arith.constant 0 : index
    %c0_17 = arith.constant 0 : index
    %23 = vector.load %arg0[%c8, %c0_16, %c0_17] : memref<9x8x128xf32, #tpu.memory_space<vmem>>, vector<1x8x128xf32>
    %24 = vector.shape_cast %23 : vector<1x8x128xf32> to vector<8x128xf32>
    %25 = arith.maximumf %22, %24 : vector<8x128xf32>
    %c0_18 = arith.constant 0 : index
    %c0_19 = arith.constant 0 : index
    %26 = vector.load %arg1[%c0_18, %c0_19] : memref<8x128xf32, #tpu.memory_space<vmem>>, vector<8x128xf32>
    %27 = arith.addf %25, %26 : vector<8x128xf32>
    %c0_20 = arith.constant 0 : index
    %c0_21 = arith.constant 0 : index
    %28 = vector.load %arg2[%c0_20, %c0_21] : memref<8x128xf32, #tpu.memory_space<vmem>>, vector<8x128xf32>
    tpu.vector_store %arg2[%c0_20, %c0_21], %27 {strides = array<i32>} : memref<8x128xf32, #tpu.memory_space<vmem>>, vector<8x128xf32>,
    return
  }
}

module attributes {stable_mosaic.version = 11 : i64} {
  func.func @_avg_pool_kernel(%arg0: memref<9x8x128xf32, #tpu.memory_space<vmem>>, %arg1: memref<1x128xf32, #tpu.memory_space<vmem>>, %arg2: memref<8x128xf32, #tpu.memory_space<vmem>>) attributes {dimension_semantics = [], scalar_prefetch = 0 : i64, scratch_operands = 0 : i64, tpu.core_type = #tpu.core_type<tc>} {
    %c0 = arith.constant 0 : index
    %c0_0 = arith.constant 0 : index
    %c0_1 = arith.constant 0 : index
    %0 = vector.load %arg0[%c0, %c0_0, %c0_1] : memref<9x8x128xf32, #tpu.memory_space<vmem>>, vector<1x8x128xf32>
    %1 = vector.shape_cast %0 : vector<1x8x128xf32> to vector<8x128xf32>
    %c1 = arith.constant 1 : index
    %c0_2 = arith.constant 0 : index
    %c0_3 = arith.constant 0 : index
    %2 = vector.load %arg0[%c1, %c0_2, %c0_3] : memref<9x8x128xf32, #tpu.memory_space<vmem>>, vector<1x8x128xf32>
    %3 = vector.shape_cast %2 : vector<1x8x128xf32> to vector<8x128xf32>
    %4 = arith.addf %1, %3 : vector<8x128xf32>
    %c2 = arith.constant 2 : index
    %c0_4 = arith.constant 0 : index
    %c0_5 = arith.constant 0 : index
    %5 = vector.load %arg0[%c2, %c0_4, %c0_5] : memref<9x8x128xf32, #tpu.memory_space<vmem>>, vector<1x8x128xf32>
    %6 = vector.shape_cast %5 : vector<1x8x128xf32> to vector<8x128xf32>
    %7 = arith.addf %4, %6 : vector<8x128xf32>
    %c3 = arith.constant 3 : index
    %c0_6 = arith.constant 0 : index
    %c0_7 = arith.constant 0 : index
    %8 = vector.load %arg0[%c3, %c0_6, %c0_7] : memref<9x8x128xf32, #tpu.memory_space<vmem>>, vector<1x8x128xf32>
    %9 = vector.shape_cast %8 : vector<1x8x128xf32> to vector<8x128xf32>
    %10 = arith.addf %7, %9 : vector<8x128xf32>
    %c4 = arith.constant 4 : index
    %c0_8 = arith.constant 0 : index
    %c0_9 = arith.constant 0 : index
    %11 = vector.load %arg0[%c4, %c0_8, %c0_9] : memref<9x8x128xf32, #tpu.memory_space<vmem>>, vector<1x8x128xf32>
    %12 = vector.shape_cast %11 : vector<1x8x128xf32> to vector<8x128xf32>
    %13 = arith.addf %10, %12 : vector<8x128xf32>
    %c5 = arith.constant 5 : index
    %c0_10 = arith.constant 0 : index
    %c0_11 = arith.constant 0 : index
    %14 = vector.load %arg0[%c5, %c0_10, %c0_11] : memref<9x8x128xf32, #tpu.memory_space<vmem>>, vector<1x8x128xf32>
    %15 = vector.shape_cast %14 : vector<1x8x128xf32> to vector<8x128xf32>
    %16 = arith.addf %13, %15 : vector<8x128xf32>
    %c6 = arith.constant 6 : index
    %c0_12 = arith.constant 0 : index
    %c0_13 = arith.constant 0 : index
    %17 = vector.load %arg0[%c6, %c0_12, %c0_13] : memref<9x8x128xf32, #tpu.memory_space<vmem>>, vector<1x8x128xf32>
    %18 = vector.shape_cast %17 : vector<1x8x128xf32> to vector<8x128xf32>
    %19 = arith.addf %16, %18 : vector<8x128xf32>
    %c7 = arith.constant 7 : index
    %c0_14 = arith.constant 0 : index
    %c0_15 = arith.constant 0 : index
    %20 = vector.load %arg0[%c7, %c0_14, %c0_15] : memref<9x8x128xf32, #tpu.memory_space<vmem>>, vector<1x8x128xf32>
    %21 = vector.shape_cast %20 : vector<1x8x128xf32> to vector<8x128xf32>
    %22 = arith.addf %19, %21 : vector<8x128xf32>
    %c8 = arith.constant 8 : index
    %c0_16 = arith.constant 0 : index
    %c0_17 = arith.constant 0 : index
    %23 = vector.load %arg0[%c8, %c0_16, %c0_17] : memref<9x8x128xf32, #tpu.memory_space<vmem>>, vector<1x8x128xf32>
    %24 = vector.shape_cast %23 : vector<1x8x128xf32> to vector<8x128xf32>
    %25 = arith.addf %22, %24 : vector<8x128xf32>
    %c0_18 = arith.constant 0 : index
    %c0_19 = arith.constant 0 : index
    %26 = vector.load %arg1[%c0_18, %c0_19] : memref<1x128xf32, #tpu.memory_space<vmem>>, vector<1x128xf32>
    %27 = vector.broadcast %26 : vector<1x128xf32> to vector<8x128xf32>
    %28 = arith.mulf %25, %27 : vector<8x128xf32>
    %c0_20 = arith.constant 0 : index
    %c0_21 = arith.constant 0 : index
    %29 = vector.load %arg2[%c0_20, %c0_21] : memref<8x128xf32, #tpu.memory_space<vmem>>, vector<8x128xf32>
    tpu.vector_store %arg2[%c0_20, %c0_21], %28 {strides = array<i32>} : memref<8x128xf32, #tpu.memory_space<vmem>>, vector<8x128xf32>,
    return
  }
}

module attributes {stable_mosaic.version = 11 : i64} {
  func.func @_sep_stage_kernel(%arg0: memref<9x16x32xf32, #tpu.memory_space<vmem>>, %arg1: memref<9x16x1xf32, #tpu.memory_space<vmem>>, %arg2: memref<16x16xf32, #tpu.memory_space<vmem>>, %arg3: memref<16x1xf32, #tpu.memory_space<vmem>>, %arg4: memref<16x32xf32, #tpu.memory_space<vmem>>) attributes {dimension_semantics = [], scalar_prefetch = 0 : i64, scratch_operands = 0 : i64, tpu.core_type = #tpu.core_type<tc>} {
    %c0 = arith.constant 0 : index
    %c0_0 = arith.constant 0 : index
    %c0_1 = arith.constant 0 : index
    %0 = vector.load %arg1[%c0, %c0_0, %c0_1] : memref<9x16x1xf32, #tpu.memory_space<vmem>>, vector<1x16x1xf32>
    %1 = vector.shape_cast %0 : vector<1x16x1xf32> to vector<16x1xf32>
    %c0_2 = arith.constant 0 : index
    %c0_3 = arith.constant 0 : index
    %c0_4 = arith.constant 0 : index
    %2 = vector.load %arg0[%c0_2, %c0_3, %c0_4] : memref<9x16x32xf32, #tpu.memory_space<vmem>>, vector<1x16x32xf32>
    %3 = vector.shape_cast %2 : vector<1x16x32xf32> to vector<16x32xf32>
    %cst = arith.constant 0.000000e+00 : f32
    %4 = vector.broadcast %cst : f32 to vector<16x32xf32>
    %5 = arith.maximumf %3, %4 : vector<16x32xf32>
    %6 = vector.broadcast %1 : vector<16x1xf32> to vector<16x32xf32>
    %7 = arith.mulf %6, %5 : vector<16x32xf32>
    %c1 = arith.constant 1 : index
    %c0_5 = arith.constant 0 : index
    %c0_6 = arith.constant 0 : index
    %8 = vector.load %arg1[%c1, %c0_5, %c0_6] : memref<9x16x1xf32, #tpu.memory_space<vmem>>, vector<1x16x1xf32>
    %9 = vector.shape_cast %8 : vector<1x16x1xf32> to vector<16x1xf32>
    %c1_7 = arith.constant 1 : index
    %c0_8 = arith.constant 0 : index
    %c0_9 = arith.constant 0 : index
    %10 = vector.load %arg0[%c1_7, %c0_8, %c0_9] : memref<9x16x32xf32, #tpu.memory_space<vmem>>, vector<1x16x32xf32>
    %11 = vector.shape_cast %10 : vector<1x16x32xf32> to vector<16x32xf32>
    %cst_10 = arith.constant 0.000000e+00 : f32
    %12 = vector.broadcast %cst_10 : f32 to vector<16x32xf32>
    %13 = arith.maximumf %11, %12 : vector<16x32xf32>
    %14 = vector.broadcast %9 : vector<16x1xf32> to vector<16x32xf32>
    %15 = arith.mulf %14, %13 : vector<16x32xf32>
    %16 = arith.addf %7, %15 : vector<16x32xf32>
    %c2 = arith.constant 2 : index
    %c0_11 = arith.constant 0 : index
    %c0_12 = arith.constant 0 : index
    %17 = vector.load %arg1[%c2, %c0_11, %c0_12] : memref<9x16x1xf32, #tpu.memory_space<vmem>>, vector<1x16x1xf32>
    %18 = vector.shape_cast %17 : vector<1x16x1xf32> to vector<16x1xf32>
    %c2_13 = arith.constant 2 : index
    %c0_14 = arith.constant 0 : index
    %c0_15 = arith.constant 0 : index
    %19 = vector.load %arg0[%c2_13, %c0_14, %c0_15] : memref<9x16x32xf32, #tpu.memory_space<vmem>>, vector<1x16x32xf32>
    %20 = vector.shape_cast %19 : vector<1x16x32xf32> to vector<16x32xf32>
    %cst_16 = arith.constant 0.000000e+00 : f32
    %21 = vector.broadcast %cst_16 : f32 to vector<16x32xf32>
    %22 = arith.maximumf %20, %21 : vector<16x32xf32>
    %23 = vector.broadcast %18 : vector<16x1xf32> to vector<16x32xf32>
    %24 = arith.mulf %23, %22 : vector<16x32xf32>
    %25 = arith.addf %16, %24 : vector<16x32xf32>
    %c3 = arith.constant 3 : index
    %c0_17 = arith.constant 0 : index
    %c0_18 = arith.constant 0 : index
    %26 = vector.load %arg1[%c3, %c0_17, %c0_18] : memref<9x16x1xf32, #tpu.memory_space<vmem>>, vector<1x16x1xf32>
    %27 = vector.shape_cast %26 : vector<1x16x1xf32> to vector<16x1xf32>
    %c3_19 = arith.constant 3 : index
    %c0_20 = arith.constant 0 : index
    %c0_21 = arith.constant 0 : index
    %28 = vector.load %arg0[%c3_19, %c0_20, %c0_21] : memref<9x16x32xf32, #tpu.memory_space<vmem>>, vector<1x16x32xf32>
    %29 = vector.shape_cast %28 : vector<1x16x32xf32> to vector<16x32xf32>
    %cst_22 = arith.constant 0.000000e+00 : f32
    %30 = vector.broadcast %cst_22 : f32 to vector<16x32xf32>
    %31 = arith.maximumf %29, %30 : vector<16x32xf32>
    %32 = vector.broadcast %27 : vector<16x1xf32> to vector<16x32xf32>
    %33 = arith.mulf %32, %31 : vector<16x32xf32>
    %34 = arith.addf %25, %33 : vector<16x32xf32>
    %c4 = arith.constant 4 : index
    %c0_23 = arith.constant 0 : index
    %c0_24 = arith.constant 0 : index
    %35 = vector.load %arg1[%c4, %c0_23, %c0_24] : memref<9x16x1xf32, #tpu.memory_space<vmem>>, vector<1x16x1xf32>
    %36 = vector.shape_cast %35 : vector<1x16x1xf32> to vector<16x1xf32>
    %c4_25 = arith.constant 4 : index
    %c0_26 = arith.constant 0 : index
    %c0_27 = arith.constant 0 : index
    %37 = vector.load %arg0[%c4_25, %c0_26, %c0_27] : memref<9x16x32xf32, #tpu.memory_space<vmem>>, vector<1x16x32xf32>
    %38 = vector.shape_cast %37 : vector<1x16x32xf32> to vector<16x32xf32>
    %cst_28 = arith.constant 0.000000e+00 : f32
    %39 = vector.broadcast %cst_28 : f32 to vector<16x32xf32>
    %40 = arith.maximumf %38, %39 : vector<16x32xf32>
    %41 = vector.broadcast %36 : vector<16x1xf32> to vector<16x32xf32>
    %42 = arith.mulf %41, %40 : vector<16x32xf32>
    %43 = arith.addf %34, %42 : vector<16x32xf32>
    %c5 = arith.constant 5 : index
    %c0_29 = arith.constant 0 : index
    %c0_30 = arith.constant 0 : index
    %44 = vector.load %arg1[%c5, %c0_29, %c0_30] : memref<9x16x1xf32, #tpu.memory_space<vmem>>, vector<1x16x1xf32>
    %45 = vector.shape_cast %44 : vector<1x16x1xf32> to vector<16x1xf32>
    %c5_31 = arith.constant 5 : index
    %c0_32 = arith.constant 0 : index
    %c0_33 = arith.constant 0 : index
    %46 = vector.load %arg0[%c5_31, %c0_32, %c0_33] : memref<9x16x32xf32, #tpu.memory_space<vmem>>, vector<1x16x32xf32>
    %47 = vector.shape_cast %46 : vector<1x16x32xf32> to vector<16x32xf32>
    %cst_34 = arith.constant 0.000000e+00 : f32
    %48 = vector.broadcast %cst_34 : f32 to vector<16x32xf32>
    %49 = arith.maximumf %47, %48 : vector<16x32xf32>
    %50 = vector.broadcast %45 : vector<16x1xf32> to vector<16x32xf32>
    %51 = arith.mulf %50, %49 : vector<16x32xf32>
    %52 = arith.addf %43, %51 : vector<16x32xf32>
    %c6 = arith.constant 6 : index
    %c0_35 = arith.constant 0 : index
    %c0_36 = arith.constant 0 : index
    %53 = vector.load %arg1[%c6, %c0_35, %c0_36] : memref<9x16x1xf32, #tpu.memory_space<vmem>>, vector<1x16x1xf32>
    %54 = vector.shape_cast %53 : vector<1x16x1xf32> to vector<16x1xf32>
    %c6_37 = arith.constant 6 : index
    %c0_38 = arith.constant 0 : index
    %c0_39 = arith.constant 0 : index
    %55 = vector.load %arg0[%c6_37, %c0_38, %c0_39] : memref<9x16x32xf32, #tpu.memory_space<vmem>>, vector<1x16x32xf32>
    %56 = vector.shape_cast %55 : vector<1x16x32xf32> to vector<16x32xf32>
    %cst_40 = arith.constant 0.000000e+00 : f32
    %57 = vector.broadcast %cst_40 : f32 to vector<16x32xf32>
    %58 = arith.maximumf %56, %57 : vector<16x32xf32>
    %59 = vector.broadcast %54 : vector<16x1xf32> to vector<16x32xf32>
    %60 = arith.mulf %59, %58 : vector<16x32xf32>
    %61 = arith.addf %52, %60 : vector<16x32xf32>
    %c7 = arith.constant 7 : index
    %c0_41 = arith.constant 0 : index
    %c0_42 = arith.constant 0 : index
    %62 = vector.load %arg1[%c7, %c0_41, %c0_42] : memref<9x16x1xf32, #tpu.memory_space<vmem>>, vector<1x16x1xf32>
    %63 = vector.shape_cast %62 : vector<1x16x1xf32> to vector<16x1xf32>
    %c7_43 = arith.constant 7 : index
    %c0_44 = arith.constant 0 : index
    %c0_45 = arith.constant 0 : index
    %64 = vector.load %arg0[%c7_43, %c0_44, %c0_45] : memref<9x16x32xf32, #tpu.memory_space<vmem>>, vector<1x16x32xf32>
    %65 = vector.shape_cast %64 : vector<1x16x32xf32> to vector<16x32xf32>
    %cst_46 = arith.constant 0.000000e+00 : f32
    %66 = vector.broadcast %cst_46 : f32 to vector<16x32xf32>
    %67 = arith.maximumf %65, %66 : vector<16x32xf32>
    %68 = vector.broadcast %63 : vector<16x1xf32> to vector<16x32xf32>
    %69 = arith.mulf %68, %67 : vector<16x32xf32>
    %70 = arith.addf %61, %69 : vector<16x32xf32>
    %c8 = arith.constant 8 : index
    %c0_47 = arith.constant 0 : index
    %c0_48 = arith.constant 0 : index
    %71 = vector.load %arg1[%c8, %c0_47, %c0_48] : memref<9x16x1xf32, #tpu.memory_space<vmem>>, vector<1x16x1xf32>
    %72 = vector.shape_cast %71 : vector<1x16x1xf32> to vector<16x1xf32>
    %c8_49 = arith.constant 8 : index
    %c0_50 = arith.constant 0 : index
    %c0_51 = arith.constant 0 : index
    %73 = vector.load %arg0[%c8_49, %c0_50, %c0_51] : memref<9x16x32xf32, #tpu.memory_space<vmem>>, vector<1x16x32xf32>
    %74 = vector.shape_cast %73 : vector<1x16x32xf32> to vector<16x32xf32>
    %cst_52 = arith.constant 0.000000e+00 : f32
    %75 = vector.broadcast %cst_52 : f32 to vector<16x32xf32>
    %76 = arith.maximumf %74, %75 : vector<16x32xf32>
    %77 = vector.broadcast %72 : vector<16x1xf32> to vector<16x32xf32>
    %78 = arith.mulf %77, %76 : vector<16x32xf32>
    %79 = arith.addf %70, %78 : vector<16x32xf32>
    %c0_53 = arith.constant 0 : index
    %c0_54 = arith.constant 0 : index
    %80 = vector.load %arg2[%c0_53, %c0_54] : memref<16x16xf32, #tpu.memory_space<vmem>>, vector<16x16xf32>
    %cst_55 = arith.constant dense<0.000000e+00> : vector<16x32xf32>
    %81 = tpu.matmul %80, %79, %cst_55 {dimension_numbers = #tpu.dot_dimension_numbers<[1], [0], [0], [1], [0, 0, 1, 1], [], []>} : vector<16x16xf32>, vector<16x32xf32>, vector<16x32xf32> -> vector<16x32xf32>
    %c0_56 = arith.constant 0 : index
    %c0_57 = arith.constant 0 : index
    %82 = vector.load %arg3[%c0_56, %c0_57] : memref<16x1xf32, #tpu.memory_space<vmem>>, vector<16x1xf32>
    %83 = vector.broadcast %82 : vector<16x1xf32> to vector<16x32xf32>
    %84 = arith.addf %81, %83 : vector<16x32xf32>
    %c0_58 = arith.constant 0 : index
    %c0_59 = arith.constant 0 : index
    %85 = vector.load %arg4[%c0_58, %c0_59] : memref<16x32xf32, #tpu.memory_space<vmem>>, vector<16x32xf32>
    tpu.vector_store %arg4[%c0_58, %c0_59], %84 {strides = array<i32>} : memref<16x32xf32, #tpu.memory_space<vmem>>, vector<16x32xf32>,
    return
  }
}

module attributes {stable_mosaic.version = 11 : i64} {
  func.func @_sep_stage_res_kernel(%arg0: memref<9x16x32xf32, #tpu.memory_space<vmem>>, %arg1: memref<9x16x1xf32, #tpu.memory_space<vmem>>, %arg2: memref<16x16xf32, #tpu.memory_space<vmem>>, %arg3: memref<16x1xf32, #tpu.memory_space<vmem>>, %arg4: memref<16x32xf32, #tpu.memory_space<vmem>>, %arg5: memref<16x32xf32, #tpu.memory_space<vmem>>) attributes {dimension_semantics = [], scalar_prefetch = 0 : i64, scratch_operands = 0 : i64, tpu.core_type = #tpu.core_type<tc>} {
    %c0 = arith.constant 0 : index
    %c0_0 = arith.constant 0 : index
    %c0_1 = arith.constant 0 : index
    %0 = vector.load %arg1[%c0, %c0_0, %c0_1] : memref<9x16x1xf32, #tpu.memory_space<vmem>>, vector<1x16x1xf32>
    %1 = vector.shape_cast %0 : vector<1x16x1xf32> to vector<16x1xf32>
    %c0_2 = arith.constant 0 : index
    %c0_3 = arith.constant 0 : index
    %c0_4 = arith.constant 0 : index
    %2 = vector.load %arg0[%c0_2, %c0_3, %c0_4] : memref<9x16x32xf32, #tpu.memory_space<vmem>>, vector<1x16x32xf32>
    %3 = vector.shape_cast %2 : vector<1x16x32xf32> to vector<16x32xf32>
    %cst = arith.constant 0.000000e+00 : f32
    %4 = vector.broadcast %cst : f32 to vector<16x32xf32>
    %5 = arith.maximumf %3, %4 : vector<16x32xf32>
    %6 = vector.broadcast %1 : vector<16x1xf32> to vector<16x32xf32>
    %7 = arith.mulf %6, %5 : vector<16x32xf32>
    %c1 = arith.constant 1 : index
    %c0_5 = arith.constant 0 : index
    %c0_6 = arith.constant 0 : index
    %8 = vector.load %arg1[%c1, %c0_5, %c0_6] : memref<9x16x1xf32, #tpu.memory_space<vmem>>, vector<1x16x1xf32>
    %9 = vector.shape_cast %8 : vector<1x16x1xf32> to vector<16x1xf32>
    %c1_7 = arith.constant 1 : index
    %c0_8 = arith.constant 0 : index
    %c0_9 = arith.constant 0 : index
    %10 = vector.load %arg0[%c1_7, %c0_8, %c0_9] : memref<9x16x32xf32, #tpu.memory_space<vmem>>, vector<1x16x32xf32>
    %11 = vector.shape_cast %10 : vector<1x16x32xf32> to vector<16x32xf32>
    %cst_10 = arith.constant 0.000000e+00 : f32
    %12 = vector.broadcast %cst_10 : f32 to vector<16x32xf32>
    %13 = arith.maximumf %11, %12 : vector<16x32xf32>
    %14 = vector.broadcast %9 : vector<16x1xf32> to vector<16x32xf32>
    %15 = arith.mulf %14, %13 : vector<16x32xf32>
    %16 = arith.addf %7, %15 : vector<16x32xf32>
    %c2 = arith.constant 2 : index
    %c0_11 = arith.constant 0 : index
    %c0_12 = arith.constant 0 : index
    %17 = vector.load %arg1[%c2, %c0_11, %c0_12] : memref<9x16x1xf32, #tpu.memory_space<vmem>>, vector<1x16x1xf32>
    %18 = vector.shape_cast %17 : vector<1x16x1xf32> to vector<16x1xf32>
    %c2_13 = arith.constant 2 : index
    %c0_14 = arith.constant 0 : index
    %c0_15 = arith.constant 0 : index
    %19 = vector.load %arg0[%c2_13, %c0_14, %c0_15] : memref<9x16x32xf32, #tpu.memory_space<vmem>>, vector<1x16x32xf32>
    %20 = vector.shape_cast %19 : vector<1x16x32xf32> to vector<16x32xf32>
    %cst_16 = arith.constant 0.000000e+00 : f32
    %21 = vector.broadcast %cst_16 : f32 to vector<16x32xf32>
    %22 = arith.maximumf %20, %21 : vector<16x32xf32>
    %23 = vector.broadcast %18 : vector<16x1xf32> to vector<16x32xf32>
    %24 = arith.mulf %23, %22 : vector<16x32xf32>
    %25 = arith.addf %16, %24 : vector<16x32xf32>
    %c3 = arith.constant 3 : index
    %c0_17 = arith.constant 0 : index
    %c0_18 = arith.constant 0 : index
    %26 = vector.load %arg1[%c3, %c0_17, %c0_18] : memref<9x16x1xf32, #tpu.memory_space<vmem>>, vector<1x16x1xf32>
    %27 = vector.shape_cast %26 : vector<1x16x1xf32> to vector<16x1xf32>
    %c3_19 = arith.constant 3 : index
    %c0_20 = arith.constant 0 : index
    %c0_21 = arith.constant 0 : index
    %28 = vector.load %arg0[%c3_19, %c0_20, %c0_21] : memref<9x16x32xf32, #tpu.memory_space<vmem>>, vector<1x16x32xf32>
    %29 = vector.shape_cast %28 : vector<1x16x32xf32> to vector<16x32xf32>
    %cst_22 = arith.constant 0.000000e+00 : f32
    %30 = vector.broadcast %cst_22 : f32 to vector<16x32xf32>
    %31 = arith.maximumf %29, %30 : vector<16x32xf32>
    %32 = vector.broadcast %27 : vector<16x1xf32> to vector<16x32xf32>
    %33 = arith.mulf %32, %31 : vector<16x32xf32>
    %34 = arith.addf %25, %33 : vector<16x32xf32>
    %c4 = arith.constant 4 : index
    %c0_23 = arith.constant 0 : index
    %c0_24 = arith.constant 0 : index
    %35 = vector.load %arg1[%c4, %c0_23, %c0_24] : memref<9x16x1xf32, #tpu.memory_space<vmem>>, vector<1x16x1xf32>
    %36 = vector.shape_cast %35 : vector<1x16x1xf32> to vector<16x1xf32>
    %c4_25 = arith.constant 4 : index
    %c0_26 = arith.constant 0 : index
    %c0_27 = arith.constant 0 : index
    %37 = vector.load %arg0[%c4_25, %c0_26, %c0_27] : memref<9x16x32xf32, #tpu.memory_space<vmem>>, vector<1x16x32xf32>
    %38 = vector.shape_cast %37 : vector<1x16x32xf32> to vector<16x32xf32>
    %cst_28 = arith.constant 0.000000e+00 : f32
    %39 = vector.broadcast %cst_28 : f32 to vector<16x32xf32>
    %40 = arith.maximumf %38, %39 : vector<16x32xf32>
    %41 = vector.broadcast %36 : vector<16x1xf32> to vector<16x32xf32>
    %42 = arith.mulf %41, %40 : vector<16x32xf32>
    %43 = arith.addf %34, %42 : vector<16x32xf32>
    %c5 = arith.constant 5 : index
    %c0_29 = arith.constant 0 : index
    %c0_30 = arith.constant 0 : index
    %44 = vector.load %arg1[%c5, %c0_29, %c0_30] : memref<9x16x1xf32, #tpu.memory_space<vmem>>, vector<1x16x1xf32>
    %45 = vector.shape_cast %44 : vector<1x16x1xf32> to vector<16x1xf32>
    %c5_31 = arith.constant 5 : index
    %c0_32 = arith.constant 0 : index
    %c0_33 = arith.constant 0 : index
    %46 = vector.load %arg0[%c5_31, %c0_32, %c0_33] : memref<9x16x32xf32, #tpu.memory_space<vmem>>, vector<1x16x32xf32>
    %47 = vector.shape_cast %46 : vector<1x16x32xf32> to vector<16x32xf32>
    %cst_34 = arith.constant 0.000000e+00 : f32
    %48 = vector.broadcast %cst_34 : f32 to vector<16x32xf32>
    %49 = arith.maximumf %47, %48 : vector<16x32xf32>
    %50 = vector.broadcast %45 : vector<16x1xf32> to vector<16x32xf32>
    %51 = arith.mulf %50, %49 : vector<16x32xf32>
    %52 = arith.addf %43, %51 : vector<16x32xf32>
    %c6 = arith.constant 6 : index
    %c0_35 = arith.constant 0 : index
    %c0_36 = arith.constant 0 : index
    %53 = vector.load %arg1[%c6, %c0_35, %c0_36] : memref<9x16x1xf32, #tpu.memory_space<vmem>>, vector<1x16x1xf32>
    %54 = vector.shape_cast %53 : vector<1x16x1xf32> to vector<16x1xf32>
    %c6_37 = arith.constant 6 : index
    %c0_38 = arith.constant 0 : index
    %c0_39 = arith.constant 0 : index
    %55 = vector.load %arg0[%c6_37, %c0_38, %c0_39] : memref<9x16x32xf32, #tpu.memory_space<vmem>>, vector<1x16x32xf32>
    %56 = vector.shape_cast %55 : vector<1x16x32xf32> to vector<16x32xf32>
    %cst_40 = arith.constant 0.000000e+00 : f32
    %57 = vector.broadcast %cst_40 : f32 to vector<16x32xf32>
    %58 = arith.maximumf %56, %57 : vector<16x32xf32>
    %59 = vector.broadcast %54 : vector<16x1xf32> to vector<16x32xf32>
    %60 = arith.mulf %59, %58 : vector<16x32xf32>
    %61 = arith.addf %52, %60 : vector<16x32xf32>
    %c7 = arith.constant 7 : index
    %c0_41 = arith.constant 0 : index
    %c0_42 = arith.constant 0 : index
    %62 = vector.load %arg1[%c7, %c0_41, %c0_42] : memref<9x16x1xf32, #tpu.memory_space<vmem>>, vector<1x16x1xf32>
    %63 = vector.shape_cast %62 : vector<1x16x1xf32> to vector<16x1xf32>
    %c7_43 = arith.constant 7 : index
    %c0_44 = arith.constant 0 : index
    %c0_45 = arith.constant 0 : index
    %64 = vector.load %arg0[%c7_43, %c0_44, %c0_45] : memref<9x16x32xf32, #tpu.memory_space<vmem>>, vector<1x16x32xf32>
    %65 = vector.shape_cast %64 : vector<1x16x32xf32> to vector<16x32xf32>
    %cst_46 = arith.constant 0.000000e+00 : f32
    %66 = vector.broadcast %cst_46 : f32 to vector<16x32xf32>
    %67 = arith.maximumf %65, %66 : vector<16x32xf32>
    %68 = vector.broadcast %63 : vector<16x1xf32> to vector<16x32xf32>
    %69 = arith.mulf %68, %67 : vector<16x32xf32>
    %70 = arith.addf %61, %69 : vector<16x32xf32>
    %c8 = arith.constant 8 : index
    %c0_47 = arith.constant 0 : index
    %c0_48 = arith.constant 0 : index
    %71 = vector.load %arg1[%c8, %c0_47, %c0_48] : memref<9x16x1xf32, #tpu.memory_space<vmem>>, vector<1x16x1xf32>
    %72 = vector.shape_cast %71 : vector<1x16x1xf32> to vector<16x1xf32>
    %c8_49 = arith.constant 8 : index
    %c0_50 = arith.constant 0 : index
    %c0_51 = arith.constant 0 : index
    %73 = vector.load %arg0[%c8_49, %c0_50, %c0_51] : memref<9x16x32xf32, #tpu.memory_space<vmem>>, vector<1x16x32xf32>
    %74 = vector.shape_cast %73 : vector<1x16x32xf32> to vector<16x32xf32>
    %cst_52 = arith.constant 0.000000e+00 : f32
    %75 = vector.broadcast %cst_52 : f32 to vector<16x32xf32>
    %76 = arith.maximumf %74, %75 : vector<16x32xf32>
    %77 = vector.broadcast %72 : vector<16x1xf32> to vector<16x32xf32>
    %78 = arith.mulf %77, %76 : vector<16x32xf32>
    %79 = arith.addf %70, %78 : vector<16x32xf32>
    %c0_53 = arith.constant 0 : index
    %c0_54 = arith.constant 0 : index
    %80 = vector.load %arg2[%c0_53, %c0_54] : memref<16x16xf32, #tpu.memory_space<vmem>>, vector<16x16xf32>
    %cst_55 = arith.constant dense<0.000000e+00> : vector<16x32xf32>
    %81 = tpu.matmul %80, %79, %cst_55 {dimension_numbers = #tpu.dot_dimension_numbers<[1], [0], [0], [1], [0, 0, 1, 1], [], []>} : vector<16x16xf32>, vector<16x32xf32>, vector<16x32xf32> -> vector<16x32xf32>
    %c0_56 = arith.constant 0 : index
    %c0_57 = arith.constant 0 : index
    %82 = vector.load %arg3[%c0_56, %c0_57] : memref<16x1xf32, #tpu.memory_space<vmem>>, vector<16x1xf32>
    %83 = vector.broadcast %82 : vector<16x1xf32> to vector<16x32xf32>
    %84 = arith.addf %81, %83 : vector<16x32xf32>
    %c0_58 = arith.constant 0 : index
    %c0_59 = arith.constant 0 : index
    %85 = vector.load %arg4[%c0_58, %c0_59] : memref<16x32xf32, #tpu.memory_space<vmem>>, vector<16x32xf32>
    %86 = arith.addf %84, %85 : vector<16x32xf32>
    %c0_60 = arith.constant 0 : index
    %c0_61 = arith.constant 0 : index
    %87 = vector.load %arg5[%c0_60, %c0_61] : memref<16x32xf32, #tpu.memory_space<vmem>>, vector<16x32xf32>
    tpu.vector_store %arg5[%c0_60, %c0_61], %86 {strides = array<i32>} : memref<16x32xf32, #tpu.memory_space<vmem>>, vector<16x32xf32>,
    return
  }
}

module attributes {stable_mosaic.version = 11 : i64} {
  func.func @_avg_pool_res_kernel(%arg0: memref<9x16x32xf32, #tpu.memory_space<vmem>>, %arg1: memref<1x32xf32, #tpu.memory_space<vmem>>, %arg2: memref<16x32xf32, #tpu.memory_space<vmem>>, %arg3: memref<16x32xf32, #tpu.memory_space<vmem>>) attributes {dimension_semantics = [], scalar_prefetch = 0 : i64, scratch_operands = 0 : i64, tpu.core_type = #tpu.core_type<tc>} {
    %c0 = arith.constant 0 : index
    %c0_0 = arith.constant 0 : index
    %c0_1 = arith.constant 0 : index
    %0 = vector.load %arg0[%c0, %c0_0, %c0_1] : memref<9x16x32xf32, #tpu.memory_space<vmem>>, vector<1x16x32xf32>
    %1 = vector.shape_cast %0 : vector<1x16x32xf32> to vector<16x32xf32>
    %c1 = arith.constant 1 : index
    %c0_2 = arith.constant 0 : index
    %c0_3 = arith.constant 0 : index
    %2 = vector.load %arg0[%c1, %c0_2, %c0_3] : memref<9x16x32xf32, #tpu.memory_space<vmem>>, vector<1x16x32xf32>
    %3 = vector.shape_cast %2 : vector<1x16x32xf32> to vector<16x32xf32>
    %4 = arith.addf %1, %3 : vector<16x32xf32>
    %c2 = arith.constant 2 : index
    %c0_4 = arith.constant 0 : index
    %c0_5 = arith.constant 0 : index
    %5 = vector.load %arg0[%c2, %c0_4, %c0_5] : memref<9x16x32xf32, #tpu.memory_space<vmem>>, vector<1x16x32xf32>
    %6 = vector.shape_cast %5 : vector<1x16x32xf32> to vector<16x32xf32>
    %7 = arith.addf %4, %6 : vector<16x32xf32>
    %c3 = arith.constant 3 : index
    %c0_6 = arith.constant 0 : index
    %c0_7 = arith.constant 0 : index
    %8 = vector.load %arg0[%c3, %c0_6, %c0_7] : memref<9x16x32xf32, #tpu.memory_space<vmem>>, vector<1x16x32xf32>
    %9 = vector.shape_cast %8 : vector<1x16x32xf32> to vector<16x32xf32>
    %10 = arith.addf %7, %9 : vector<16x32xf32>
    %c4 = arith.constant 4 : index
    %c0_8 = arith.constant 0 : index
    %c0_9 = arith.constant 0 : index
    %11 = vector.load %arg0[%c4, %c0_8, %c0_9] : memref<9x16x32xf32, #tpu.memory_space<vmem>>, vector<1x16x32xf32>
    %12 = vector.shape_cast %11 : vector<1x16x32xf32> to vector<16x32xf32>
    %13 = arith.addf %10, %12 : vector<16x32xf32>
    %c5 = arith.constant 5 : index
    %c0_10 = arith.constant 0 : index
    %c0_11 = arith.constant 0 : index
    %14 = vector.load %arg0[%c5, %c0_10, %c0_11] : memref<9x16x32xf32, #tpu.memory_space<vmem>>, vector<1x16x32xf32>
    %15 = vector.shape_cast %14 : vector<1x16x32xf32> to vector<16x32xf32>
    %16 = arith.addf %13, %15 : vector<16x32xf32>
    %c6 = arith.constant 6 : index
    %c0_12 = arith.constant 0 : index
    %c0_13 = arith.constant 0 : index
    %17 = vector.load %arg0[%c6, %c0_12, %c0_13] : memref<9x16x32xf32, #tpu.memory_space<vmem>>, vector<1x16x32xf32>
    %18 = vector.shape_cast %17 : vector<1x16x32xf32> to vector<16x32xf32>
    %19 = arith.addf %16, %18 : vector<16x32xf32>
    %c7 = arith.constant 7 : index
    %c0_14 = arith.constant 0 : index
    %c0_15 = arith.constant 0 : index
    %20 = vector.load %arg0[%c7, %c0_14, %c0_15] : memref<9x16x32xf32, #tpu.memory_space<vmem>>, vector<1x16x32xf32>
    %21 = vector.shape_cast %20 : vector<1x16x32xf32> to vector<16x32xf32>
    %22 = arith.addf %19, %21 : vector<16x32xf32>
    %c8 = arith.constant 8 : index
    %c0_16 = arith.constant 0 : index
    %c0_17 = arith.constant 0 : index
    %23 = vector.load %arg0[%c8, %c0_16, %c0_17] : memref<9x16x32xf32, #tpu.memory_space<vmem>>, vector<1x16x32xf32>
    %24 = vector.shape_cast %23 : vector<1x16x32xf32> to vector<16x32xf32>
    %25 = arith.addf %22, %24 : vector<16x32xf32>
    %c0_18 = arith.constant 0 : index
    %c0_19 = arith.constant 0 : index
    %26 = vector.load %arg1[%c0_18, %c0_19] : memref<1x32xf32, #tpu.memory_space<vmem>>, vector<1x32xf32>
    %27 = vector.broadcast %26 : vector<1x32xf32> to vector<16x32xf32>
    %28 = arith.mulf %25, %27 : vector<16x32xf32>
    %c0_20 = arith.constant 0 : index
    %c0_21 = arith.constant 0 : index
    %29 = vector.load %arg2[%c0_20, %c0_21] : memref<16x32xf32, #tpu.memory_space<vmem>>, vector<16x32xf32>
    %30 = arith.addf %28, %29 : vector<16x32xf32>
    %c0_22 = arith.constant 0 : index
    %c0_23 = arith.constant 0 : index
    %31 = vector.load %arg3[%c0_22, %c0_23] : memref<16x32xf32, #tpu.memory_space<vmem>>, vector<16x32xf32>
    tpu.vector_store %arg3[%c0_22, %c0_23], %30 {strides = array<i32>} : memref<16x32xf32, #tpu.memory_space<vmem>>, vector<16x32xf32>,
    return
  }
}

module attributes {stable_mosaic.version = 11 : i64} {
  func.func @_max_pool_res_kernel(%arg0: memref<9x16x32xf32, #tpu.memory_space<vmem>>, %arg1: memref<16x32xf32, #tpu.memory_space<vmem>>, %arg2: memref<16x32xf32, #tpu.memory_space<vmem>>) attributes {dimension_semantics = [], scalar_prefetch = 0 : i64, scratch_operands = 0 : i64, tpu.core_type = #tpu.core_type<tc>} {
    %c0 = arith.constant 0 : index
    %c0_0 = arith.constant 0 : index
    %c0_1 = arith.constant 0 : index
    %0 = vector.load %arg0[%c0, %c0_0, %c0_1] : memref<9x16x32xf32, #tpu.memory_space<vmem>>, vector<1x16x32xf32>
    %1 = vector.shape_cast %0 : vector<1x16x32xf32> to vector<16x32xf32>
    %c1 = arith.constant 1 : index
    %c0_2 = arith.constant 0 : index
    %c0_3 = arith.constant 0 : index
    %2 = vector.load %arg0[%c1, %c0_2, %c0_3] : memref<9x16x32xf32, #tpu.memory_space<vmem>>, vector<1x16x32xf32>
    %3 = vector.shape_cast %2 : vector<1x16x32xf32> to vector<16x32xf32>
    %4 = arith.maximumf %1, %3 : vector<16x32xf32>
    %c2 = arith.constant 2 : index
    %c0_4 = arith.constant 0 : index
    %c0_5 = arith.constant 0 : index
    %5 = vector.load %arg0[%c2, %c0_4, %c0_5] : memref<9x16x32xf32, #tpu.memory_space<vmem>>, vector<1x16x32xf32>
    %6 = vector.shape_cast %5 : vector<1x16x32xf32> to vector<16x32xf32>
    %7 = arith.maximumf %4, %6 : vector<16x32xf32>
    %c3 = arith.constant 3 : index
    %c0_6 = arith.constant 0 : index
    %c0_7 = arith.constant 0 : index
    %8 = vector.load %arg0[%c3, %c0_6, %c0_7] : memref<9x16x32xf32, #tpu.memory_space<vmem>>, vector<1x16x32xf32>
    %9 = vector.shape_cast %8 : vector<1x16x32xf32> to vector<16x32xf32>
    %10 = arith.maximumf %7, %9 : vector<16x32xf32>
    %c4 = arith.constant 4 : index
    %c0_8 = arith.constant 0 : index
    %c0_9 = arith.constant 0 : index
    %11 = vector.load %arg0[%c4, %c0_8, %c0_9] : memref<9x16x32xf32, #tpu.memory_space<vmem>>, vector<1x16x32xf32>
    %12 = vector.shape_cast %11 : vector<1x16x32xf32> to vector<16x32xf32>
    %13 = arith.maximumf %10, %12 : vector<16x32xf32>
    %c5 = arith.constant 5 : index
    %c0_10 = arith.constant 0 : index
    %c0_11 = arith.constant 0 : index
    %14 = vector.load %arg0[%c5, %c0_10, %c0_11] : memref<9x16x32xf32, #tpu.memory_space<vmem>>, vector<1x16x32xf32>
    %15 = vector.shape_cast %14 : vector<1x16x32xf32> to vector<16x32xf32>
    %16 = arith.maximumf %13, %15 : vector<16x32xf32>
    %c6 = arith.constant 6 : index
    %c0_12 = arith.constant 0 : index
    %c0_13 = arith.constant 0 : index
    %17 = vector.load %arg0[%c6, %c0_12, %c0_13] : memref<9x16x32xf32, #tpu.memory_space<vmem>>, vector<1x16x32xf32>
    %18 = vector.shape_cast %17 : vector<1x16x32xf32> to vector<16x32xf32>
    %19 = arith.maximumf %16, %18 : vector<16x32xf32>
    %c7 = arith.constant 7 : index
    %c0_14 = arith.constant 0 : index
    %c0_15 = arith.constant 0 : index
    %20 = vector.load %arg0[%c7, %c0_14, %c0_15] : memref<9x16x32xf32, #tpu.memory_space<vmem>>, vector<1x16x32xf32>
    %21 = vector.shape_cast %20 : vector<1x16x32xf32> to vector<16x32xf32>
    %22 = arith.maximumf %19, %21 : vector<16x32xf32>
    %c8 = arith.constant 8 : index
    %c0_16 = arith.constant 0 : index
    %c0_17 = arith.constant 0 : index
    %23 = vector.load %arg0[%c8, %c0_16, %c0_17] : memref<9x16x32xf32, #tpu.memory_space<vmem>>, vector<1x16x32xf32>
    %24 = vector.shape_cast %23 : vector<1x16x32xf32> to vector<16x32xf32>
    %25 = arith.maximumf %22, %24 : vector<16x32xf32>
    %c0_18 = arith.constant 0 : index
    %c0_19 = arith.constant 0 : index
    %26 = vector.load %arg1[%c0_18, %c0_19] : memref<16x32xf32, #tpu.memory_space<vmem>>, vector<16x32xf32>
    %27 = arith.addf %25, %26 : vector<16x32xf32>
    %c0_20 = arith.constant 0 : index
    %c0_21 = arith.constant 0 : index
    %28 = vector.load %arg2[%c0_20, %c0_21] : memref<16x32xf32, #tpu.memory_space<vmem>>, vector<16x32xf32>
    tpu.vector_store %arg2[%c0_20, %c0_21], %27 {strides = array<i32>} : memref<16x32xf32, #tpu.memory_space<vmem>>, vector<16x32xf32>,
    return
  }
}

module attributes {stable_mosaic.version = 11 : i64} {
  func.func @_avg_pool_kernel(%arg0: memref<9x16x32xf32, #tpu.memory_space<vmem>>, %arg1: memref<1x32xf32, #tpu.memory_space<vmem>>, %arg2: memref<16x32xf32, #tpu.memory_space<vmem>>) attributes {dimension_semantics = [], scalar_prefetch = 0 : i64, scratch_operands = 0 : i64, tpu.core_type = #tpu.core_type<tc>} {
    %c0 = arith.constant 0 : index
    %c0_0 = arith.constant 0 : index
    %c0_1 = arith.constant 0 : index
    %0 = vector.load %arg0[%c0, %c0_0, %c0_1] : memref<9x16x32xf32, #tpu.memory_space<vmem>>, vector<1x16x32xf32>
    %1 = vector.shape_cast %0 : vector<1x16x32xf32> to vector<16x32xf32>
    %c1 = arith.constant 1 : index
    %c0_2 = arith.constant 0 : index
    %c0_3 = arith.constant 0 : index
    %2 = vector.load %arg0[%c1, %c0_2, %c0_3] : memref<9x16x32xf32, #tpu.memory_space<vmem>>, vector<1x16x32xf32>
    %3 = vector.shape_cast %2 : vector<1x16x32xf32> to vector<16x32xf32>
    %4 = arith.addf %1, %3 : vector<16x32xf32>
    %c2 = arith.constant 2 : index
    %c0_4 = arith.constant 0 : index
    %c0_5 = arith.constant 0 : index
    %5 = vector.load %arg0[%c2, %c0_4, %c0_5] : memref<9x16x32xf32, #tpu.memory_space<vmem>>, vector<1x16x32xf32>
    %6 = vector.shape_cast %5 : vector<1x16x32xf32> to vector<16x32xf32>
    %7 = arith.addf %4, %6 : vector<16x32xf32>
    %c3 = arith.constant 3 : index
    %c0_6 = arith.constant 0 : index
    %c0_7 = arith.constant 0 : index
    %8 = vector.load %arg0[%c3, %c0_6, %c0_7] : memref<9x16x32xf32, #tpu.memory_space<vmem>>, vector<1x16x32xf32>
    %9 = vector.shape_cast %8 : vector<1x16x32xf32> to vector<16x32xf32>
    %10 = arith.addf %7, %9 : vector<16x32xf32>
    %c4 = arith.constant 4 : index
    %c0_8 = arith.constant 0 : index
    %c0_9 = arith.constant 0 : index
    %11 = vector.load %arg0[%c4, %c0_8, %c0_9] : memref<9x16x32xf32, #tpu.memory_space<vmem>>, vector<1x16x32xf32>
    %12 = vector.shape_cast %11 : vector<1x16x32xf32> to vector<16x32xf32>
    %13 = arith.addf %10, %12 : vector<16x32xf32>
    %c5 = arith.constant 5 : index
    %c0_10 = arith.constant 0 : index
    %c0_11 = arith.constant 0 : index
    %14 = vector.load %arg0[%c5, %c0_10, %c0_11] : memref<9x16x32xf32, #tpu.memory_space<vmem>>, vector<1x16x32xf32>
    %15 = vector.shape_cast %14 : vector<1x16x32xf32> to vector<16x32xf32>
    %16 = arith.addf %13, %15 : vector<16x32xf32>
    %c6 = arith.constant 6 : index
    %c0_12 = arith.constant 0 : index
    %c0_13 = arith.constant 0 : index
    %17 = vector.load %arg0[%c6, %c0_12, %c0_13] : memref<9x16x32xf32, #tpu.memory_space<vmem>>, vector<1x16x32xf32>
    %18 = vector.shape_cast %17 : vector<1x16x32xf32> to vector<16x32xf32>
    %19 = arith.addf %16, %18 : vector<16x32xf32>
    %c7 = arith.constant 7 : index
    %c0_14 = arith.constant 0 : index
    %c0_15 = arith.constant 0 : index
    %20 = vector.load %arg0[%c7, %c0_14, %c0_15] : memref<9x16x32xf32, #tpu.memory_space<vmem>>, vector<1x16x32xf32>
    %21 = vector.shape_cast %20 : vector<1x16x32xf32> to vector<16x32xf32>
    %22 = arith.addf %19, %21 : vector<16x32xf32>
    %c8 = arith.constant 8 : index
    %c0_16 = arith.constant 0 : index
    %c0_17 = arith.constant 0 : index
    %23 = vector.load %arg0[%c8, %c0_16, %c0_17] : memref<9x16x32xf32, #tpu.memory_space<vmem>>, vector<1x16x32xf32>
    %24 = vector.shape_cast %23 : vector<1x16x32xf32> to vector<16x32xf32>
    %25 = arith.addf %22, %24 : vector<16x32xf32>
    %c0_18 = arith.constant 0 : index
    %c0_19 = arith.constant 0 : index
    %26 = vector.load %arg1[%c0_18, %c0_19] : memref<1x32xf32, #tpu.memory_space<vmem>>, vector<1x32xf32>
    %27 = vector.broadcast %26 : vector<1x32xf32> to vector<16x32xf32>
    %28 = arith.mulf %25, %27 : vector<16x32xf32>
    %c0_20 = arith.constant 0 : index
    %c0_21 = arith.constant 0 : index
    %29 = vector.load %arg2[%c0_20, %c0_21] : memref<16x32xf32, #tpu.memory_space<vmem>>, vector<16x32xf32>
    tpu.vector_store %arg2[%c0_20, %c0_21], %28 {strides = array<i32>} : memref<16x32xf32, #tpu.memory_space<vmem>>, vector<16x32xf32>,
    return
  }
}

module attributes {stable_mosaic.version = 11 : i64} {
  func.func @_pool_fc_kernel(%arg0: memref<64x32xf32, #tpu.memory_space<vmem>>, %arg1: memref<32x2xf32, #tpu.memory_space<vmem>>, %arg2: memref<10x64xf32, #tpu.memory_space<vmem>>, %arg3: memref<10x1xf32, #tpu.memory_space<vmem>>, %arg4: memref<10x2xf32, #tpu.memory_space<vmem>>) attributes {dimension_semantics = [], scalar_prefetch = 0 : i64, scratch_operands = 0 : i64, tpu.core_type = #tpu.core_type<tc>} {
    %c0 = arith.constant 0 : index
    %c0_0 = arith.constant 0 : index
    %0 = vector.load %arg0[%c0, %c0_0] : memref<64x32xf32, #tpu.memory_space<vmem>>, vector<64x32xf32>
    %c0_1 = arith.constant 0 : index
    %c0_2 = arith.constant 0 : index
    %1 = vector.load %arg1[%c0_1, %c0_2] : memref<32x2xf32, #tpu.memory_space<vmem>>, vector<32x2xf32>
    %cst = arith.constant dense<0.000000e+00> : vector<64x2xf32>
    %2 = tpu.matmul %0, %1, %cst {dimension_numbers = #tpu.dot_dimension_numbers<[1], [0], [0], [1], [0, 0, 1, 1], [], []>} : vector<64x32xf32>, vector<32x2xf32>, vector<64x2xf32> -> vector<64x2xf32>
    %c0_3 = arith.constant 0 : index
    %c0_4 = arith.constant 0 : index
    %3 = vector.load %arg2[%c0_3, %c0_4] : memref<10x64xf32, #tpu.memory_space<vmem>>, vector<10x64xf32>
    %cst_5 = arith.constant dense<0.000000e+00> : vector<10x2xf32>
    %4 = tpu.matmul %3, %2, %cst_5 {dimension_numbers = #tpu.dot_dimension_numbers<[1], [0], [0], [1], [0, 0, 1, 1], [], []>} : vector<10x64xf32>, vector<64x2xf32>, vector<10x2xf32> -> vector<10x2xf32>
    %c0_6 = arith.constant 0 : index
    %c0_7 = arith.constant 0 : index
    %5 = vector.load %arg3[%c0_6, %c0_7] : memref<10x1xf32, #tpu.memory_space<vmem>>, vector<10x1xf32>
    %6 = vector.broadcast %5 : vector<10x1xf32> to vector<10x2xf32>
    %7 = arith.addf %4, %6 : vector<10x2xf32>
    %c0_8 = arith.constant 0 : index
    %c0_9 = arith.constant 0 : index
    %8 = vector.load %arg4[%c0_8, %c0_9] : memref<10x2xf32, #tpu.memory_space<vmem>>, vector<10x2xf32>
    tpu.vector_store %arg4[%c0_8, %c0_9], %7 {strides = array<i32>} : memref<10x2xf32, #tpu.memory_space<vmem>>, vector<10x2xf32>,
    return
  }
}

</mosaic_0001>

<llo_original>
// kernel: tpu_custom_call.1
$region0: #{tpu_custom_call.1}
  #allocation0 [shape = 'u32[]', space=smem, size = 0x4, offset = 0x4, fixed_abs, tag = 'smem constant byte address 0x4 - core index']
  #allocation1 [shape = 'u32[72,128]{1,0:T(1,128)}', space=vmem, size = 0x9000, scoped, tag = 'internal scratch']
  %s0 = inlined_call_operand.hbm [shape: f32[4,512], index: 0, kind: input, shape index: {}]
  %s1 = inlined_call_operand.hbm [shape: f32[4,512], index: 1, kind: output, shape index: {}]
  %s2 = sld [smem:[#allocation0]]
  $region18: #{tpu_custom_call.1} parent=0
    _
  %s4 = ssub.s32 1, %s2
  %s5 = scalar_select 0, %s4, %s2
  $region1: #{tpu_custom_call.1} parent=0
    #allocation2 [shape = 'u8[8192]{0}', space=vmem, size = 0x2000, scoped, tag = 'input window, operand 0, single buffered']
    #allocation3 [shape = 's32[1]{0}', space=sflag, size = 0x4, scoped, tag = 'scoped memory for tpu_custom_call.1']
    #allocation4 [shape = 's32[1]{0}', space=sflag, size = 0x4, scoped, tag = 'scoped memory for tpu_custom_call.1']
    #allocation5 [shape = 'u8[8192]{0}', space=vmem, size = 0x2000, scoped, tag = 'output window, operand 0, single buffered']
    %6 = vsyncpa [#allocation3], 0
    %7 = vsyncpa [#allocation4], 0
    // Predicated region
    $region2: #{tpu_custom_call.1} parent=1 // pred_check
      _
    $region3: #{tpu_custom_call.1} parent=1 // pred_check_branch
      %9 = sbr.rel (0) target = $region5
    $region4: #{tpu_custom_call.1} parent=1 // pred_region
      %11 = vsyncadd [#allocation3], 0
      %s13 = sshll.u32 %s0, 4
      %s14 = int_to_ptr.hbm [resolvable:$true] %s13
      %s15 = sshll.u32 [#allocation2], 4
      %s16 = int_to_ptr.vmem [resolvable:$true] %s15
      %18 = dma.hbm_to_vmem [thread:$0]  %s14, 256, %s16, [#allocation3]
    $region5: #{tpu_custom_call.1} parent=1 // pred_fallthru
      _
    // Predicated region
    $region6: #{tpu_custom_call.1} parent=1 // pred_check
      _
    $region7: #{tpu_custom_call.1} parent=1 // pred_check_branch
      %20 = sbr.rel (0) target = $region9
    $region8: #{tpu_custom_call.1} parent=1 // pred_region
      %22 = dma.done [#allocation3], 256
    $region9: #{tpu_custom_call.1} parent=1 // pred_fallthru
      _
    %v23 = vld [vmem:[#allocation2] sm:$0xff]
    %v24 = vld [vmem:[#allocation2 + $0x8] sm:$0xff]
    %27 = vst [vmem:[#allocation1] ss:$2 sm:$0xff] %v23
    %s28 = scalar_lea.vmem [#allocation1], 16
    %29 = vst [vmem:[%s28] ss:$2 sm:$0xff] %v24
    %v30 = vld.sshfl [vmem:[#allocation1] sm:$0xff pattern:$0x75316420]
    %v31 = vld.sshfl [vmem:[#allocation1 + $0x8] sm:$0xff pattern:$0x75316420]
    %v32 = vld.sshfl [vmem:[#allocation1 + $0x10] sm:$0xff pattern:$0x75316420]
    %v33 = vld.sshfl [vmem:[#allocation1 + $0x18] sm:$0xff pattern:$0x75316420]
    %38 = vrot.lane.b32.xlu0 %v30, 17
    %v39 = vpop.permute.xlu0 %38
    %40 = vrot.lane.b32.xlu0 %v31, 17
    %v41 = vpop.permute.xlu0 %40
    %42 = vrot.lane.b32.xlu0 %v32, 17
    %v43 = vpop.permute.xlu0 %42
    %44 = vrot.lane.b32.xlu0 %v33, 17
    %v45 = vpop.permute.xlu0 %44
    %v46 = vlaneseq
    %v47 = vand.u32 %v46, 127
    %vm48 = vcmp.lt.s32.totalorder %v47, 17
    %v49 = vsel %vm48, %v43, %v45
    %v50 = vsel %vm48, %v41, %v43
    %v51 = vsel %vm48, %v39, %v41
    %v52 = vsel %vm48, %v45, %v39
    %v57 = vrot.slane %v51, 4
    %v58 = vrot.slane %v49, 4
    %vm59 = vcmask 1043456
    %v60 = vsel %vm59, %v52, %v57
    %v61 = vsel %vm59, %v50, %v58
    %64 = vst [vmem:[#allocation5] sm:$0xff] %v60
    %65 = vst [vmem:[#allocation5 + $0x8] sm:$0xff] %v61
    // Predicated region
    $region10: #{tpu_custom_call.1} parent=1 // pred_check
      _
    $region11: #{tpu_custom_call.1} parent=1 // pred_check_branch
      %67 = sbr.rel (0) target = $region13
    $region12: #{tpu_custom_call.1} parent=1 // pred_region
      %69 = vsyncadd [#allocation4], 0
      %s71 = sshll.u32 [#allocation5], 4
      %s72 = int_to_ptr.vmem [resolvable:$true] %s71
      %s73 = sshll.u32 %s1, 4
      %s74 = int_to_ptr.hbm [resolvable:$true] %s73
      %76 = dma.vmem_to_hbm [thread:$0]  %s72, 256, %s74, [#allocation4]
    $region13: #{tpu_custom_call.1} parent=1 // pred_fallthru
      _
    // Predicated region
    $region14: #{tpu_custom_call.1} parent=1 // pred_check
      _
    $region15: #{tpu_custom_call.1} parent=1 // pred_check_branch
      %78 = sbr.rel (0) target = $region17
    $region16: #{tpu_custom_call.1} parent=1 // pred_region
      %80 = dma.done [#allocation4], 256
    $region17: #{tpu_custom_call.1} parent=1 // pred_fallthru
      _
    %81 = vsyncpa [#allocation3], 1
    %82 = vsyncpa [#allocation4], 1

// kernel: _lambda_.32
$region0: #{_lambda_.32}
  #allocation0 [shape = 'u32[]', space=smem, size = 0x4, offset = 0x4, fixed_abs, tag = 'smem constant byte address 0x4 - core index']
  #allocation1 [shape = 'u32[72,128]{1,0:T(1,128)}', space=vmem, size = 0x9000, scoped, tag = 'internal scratch']
  %s0 = inlined_call_operand.vmem [shape: f32[27,512], index: 0, kind: input, shape index: {}]
  %s1 = inlined_call_operand.vmem [shape: f32[12,27], index: 1, kind: input, shape index: {}]
  %s2 = inlined_call_operand.vmem [shape: f32[12,1], index: 2, kind: input, shape index: {}]
  %s3 = inlined_call_operand.vmem [shape: f32[12,512], index: 3, kind: output, shape index: {}]
  %s4 = sld [smem:[#allocation0]]
  $region22: #{_lambda_.32} parent=0
    _
  %s6 = ssub.s32 1, %s4
  %s7 = scalar_select 0, %s6, %s4
  // Predicated region
  $region2: #{_lambda_.32} parent=0 // pred_check
    _
  $region3: #{_lambda_.32} parent=0 // pred_check_branch
    %9 = sbr.rel (0) target = $region5
  $region4: #{_lambda_.32} parent=0 // pred_region
    _
  $region5: #{_lambda_.32} parent=0 // pred_fallthru
    _
  // Predicated region
  $region6: #{_lambda_.32} parent=0 // pred_check
    _
  $region7: #{_lambda_.32} parent=0 // pred_check_branch
    %11 = sbr.rel (0) target = $region9
  $region8: #{_lambda_.32} parent=0 // pred_region
    _
  $region9: #{_lambda_.32} parent=0 // pred_fallthru
    _
  // Predicated region
  $region10: #{_lambda_.32} parent=0 // pred_check
    _
  $region11: #{_lambda_.32} parent=0 // pred_check_branch
    %13 = sbr.rel (0) target = $region13
  $region12: #{_lambda_.32} parent=0 // pred_region
    _
  $region13: #{_lambda_.32} parent=0 // pred_fallthru
    _
  %v14 = vld [vmem:[%s1] sm:$0xff]
  %v15 = vld [vmem:[%s1 + $0x8] sm:$0xf]
  %v16 = vld [vmem:[%s0] sm:$0xff]
  %v17 = vld [vmem:[%s0 + $0x8] sm:$0xff]
  %v18 = vld [vmem:[%s0 + $0x10] sm:$0xff]
  %v19 = vld [vmem:[%s0 + $0x18] sm:$0xff]
  %v20 = vld [vmem:[%s0 + $0x20] sm:$0xff]
  %v21 = vld [vmem:[%s0 + $0x28] sm:$0xff]
  %v22 = vld [vmem:[%s0 + $0x30] sm:$0xff]
  %v23 = vld [vmem:[%s0 + $0x38] sm:$0xff]
  %v24 = vld [vmem:[%s0 + $0x40] sm:$0xff]
  %v25 = vld [vmem:[%s0 + $0x48] sm:$0xff]
  %v26 = vld [vmem:[%s0 + $0x50] sm:$0xff]
  %v27 = vld [vmem:[%s0 + $0x58] sm:$0xff]
  %v28 = vld [vmem:[%s0 + $0x60] sm:$0x7]
  %v29 = vld [vmem:[%s0 + $0x68] sm:$0x7]
  %v30 = vld [vmem:[%s0 + $0x70] sm:$0x7]
  %v31 = vld [vmem:[%s0 + $0x78] sm:$0x7]
  %v32 = vld [vmem:[%s2] sm:$0xff]
  %v33 = vld [vmem:[%s2 + $0x8] sm:$0xf]
  %35 = vset.pattern.permute.xlu0 0
  %36 = vperm.xlu0 %35, %v32
  %v37 = vpop.permute.xlu0 %36
  %40 = vset.pattern.permute.xlu0 0
  %41 = vperm.xlu0 %40, %v33
  %v42 = vpop.permute.xlu0 %41
  %vm44 = vcmask 220160
  %v46 = vsel %vm44, %v14, 0
  %v49 = vsel %vm44, %v15, 0
  %vm51 = vcmask 1042432
  %v53 = vsel %vm51, %v28, 0
  %v56 = vsel %vm51, %v29, 0
  %v59 = vsel %vm51, %v30, 0
  %v62 = vsel %vm51, %v31, 0
  %64 = vmatpush.msra.mxu0 0.0
  %65 = vmatpush.msra.mxu0 0.0
  %66 = vmatpush.msra.mxu0 0.0
  %67 = vmatpush.msra.mxu0 0.0
  %68 = vmatpush.msra.mxu0 0.0
  %69 = vmatpush.msra.mxu0 0.0
  %70 = vmatpush.msra.mxu0 0.0
  %71 = vmatpush.msra.mxu0 0.0
  %72 = vmatpush.msra.mxu0 0.0
  %73 = vmatpush.msra.mxu0 0.0
  %74 = vmatpush.msra.mxu0 0.0
  %75 = vmatpush.msra.mxu0 0.0
  %76 = vmatpush.msra.mxu0 %v53
  %77 = vmatpush.msra.mxu0 %v24
  %78 = vmatpush.msra.mxu0 %v20
  %79 = vmatpush.msra.mxu0 %v16
  %80 = vmatmul.f32.gmra.mxu0 %v46
  %v81 = vpop.f32.mrf.mxu0
  %v82 = vadd.f32 %v37, %v81
  %83 = vmatmul.f32.gmra.mxu0 %v49
  %v84 = vpop.f32.mrf.mxu0
  %v85 = vadd.f32 %v42, %v84
  %86 = vdwg.mxu0
  %87 = vmatpush.msra.mxu0 0.0
  %88 = vmatpush.msra.mxu0 0.0
  %89 = vmatpush.msra.mxu0 0.0
  %90 = vmatpush.msra.mxu0 0.0
  %91 = vmatpush.msra.mxu0 0.0
  %92 = vmatpush.msra.mxu0 0.0
  %93 = vmatpush.msra.mxu0 0.0
  %94 = vmatpush.msra.mxu0 0.0
  %95 = vmatpush.msra.mxu0 0.0
  %96 = vmatpush.msra.mxu0 0.0
  %97 = vmatpush.msra.mxu0 0.0
  %98 = vmatpush.msra.mxu0 0.0
  %99 = vmatpush.msra.mxu0 %v56
  %100 = vmatpush.msra.mxu0 %v25
  %101 = vmatpush.msra.mxu0 %v21
  %102 = vmatpush.msra.mxu0 %v17
  %103 = vmatmul.f32.gmra.mxu0 %v46
  %v104 = vpop.f32.mrf.mxu0
  %v105 = vadd.f32 %v37, %v104
  %106 = vmatmul.f32.gmra.mxu0 %v49
  %v107 = vpop.f32.mrf.mxu0
  %v108 = vadd.f32 %v42, %v107
  %109 = vdwg.mxu0
  %110 = vmatpush.msra.mxu0 0.0
  %111 = vmatpush.msra.mxu0 0.0
  %112 = vmatpush.msra.mxu0 0.0
  %113 = vmatpush.msra.mxu0 0.0
  %114 = vmatpush.msra.mxu0 0.0
  %115 = vmatpush.msra.mxu0 0.0
  %116 = vmatpush.msra.mxu0 0.0
  %117 = vmatpush.msra.mxu0 0.0
  %118 = vmatpush.msra.mxu0 0.0
  %119 = vmatpush.msra.mxu0 0.0
  %120 = vmatpush.msra.mxu0 0.0
  %121 = vmatpush.msra.mxu0 0.0
  %122 = vmatpush.msra.mxu0 %v59
  %123 = vmatpush.msra.mxu0 %v26
  %124 = vmatpush.msra.mxu0 %v22
  %125 = vmatpush.msra.mxu0 %v18
  %126 = vmatmul.f32.gmra.mxu0 %v46
  %v127 = vpop.f32.mrf.mxu0
  %v128 = vadd.f32 %v37, %v127
  %129 = vmatmul.f32.gmra.mxu0 %v49
  %v130 = vpop.f32.mrf.mxu0
  %v131 = vadd.f32 %v42, %v130
  %132 = vdwg.mxu0
  %133 = vmatpush.msra.mxu0 0.0
  %134 = vmatpush.msra.mxu0 0.0
  %135 = vmatpush.msra.mxu0 0.0
  %136 = vmatpush.msra.mxu0 0.0
  %137 = vmatpush.msra.mxu0 0.0
  %138 = vmatpush.msra.mxu0 0.0
  %139 = vmatpush.msra.mxu0 0.0
  %140 = vmatpush.msra.mxu0 0.0
  %141 = vmatpush.msra.mxu0 0.0
  %142 = vmatpush.msra.mxu0 0.0
  %143 = vmatpush.msra.mxu0 0.0
  %144 = vmatpush.msra.mxu0 0.0
  %145 = vmatpush.msra.mxu0 %v62
  %146 = vmatpush.msra.mxu0 %v27
  %147 = vmatpush.msra.mxu0 %v23
  %148 = vmatpush.msra.mxu0 %v19
  %149 = vmatmul.f32.gmra.mxu0 %v46
  %v150 = vpop.f32.mrf.mxu0
  %v151 = vadd.f32 %v37, %v150
  %152 = vmatmul.f32.gmra.mxu0 %v49
  %v153 = vpop.f32.mrf.mxu0
  %v154 = vadd.f32 %v42, %v153
  %155 = vdwg.mxu0
  %156 = vst [vmem:[%s3] sm:$0xff] %v82
  %157 = vst [vmem:[%s3 + $0x8] sm:$0xff] %v105
  %158 = vst [vmem:[%s3 + $0x10] sm:$0xff] %v128
  %159 = vst [vmem:[%s3 + $0x18] sm:$0xff] %v151
  %160 = vst [vmem:[%s3 + $0x20] sm:$0xf] %v85
  %161 = vst [vmem:[%s3 + $0x28] sm:$0xf] %v108
  %162 = vst [vmem:[%s3 + $0x30] sm:$0xf] %v131
  %163 = vst [vmem:[%s3 + $0x38] sm:$0xf] %v154
  // Predicated region
  $region14: #{_lambda_.32} parent=0 // pred_check
    _
  $region15: #{_lambda_.32} parent=0 // pred_check_branch
    %165 = sbr.rel (0) target = $region17
  $region16: #{_lambda_.32} parent=0 // pred_region
    _
  $region17: #{_lambda_.32} parent=0 // pred_fallthru
    _
  // Predicated region
  $region18: #{_lambda_.32} parent=0 // pred_check
    _
  $region19: #{_lambda_.32} parent=0 // pred_check_branch
    %167 = sbr.rel (0) target = $region21
  $region20: #{_lambda_.32} parent=0 // pred_region
    _
  $region21: #{_lambda_.32} parent=0 // pred_fallthru
    _

// kernel: _lambda_.33
$region0: #{_lambda_.33}
  #allocation0 [shape = 'u32[]', space=smem, size = 0x4, offset = 0x4, fixed_abs, tag = 'smem constant byte address 0x4 - core index']
  #allocation1 [shape = 'u32[72,128]{1,0:T(1,128)}', space=vmem, size = 0x9000, scoped, tag = 'internal scratch']
  %s0 = inlined_call_operand.vmem [shape: f32[12,512], index: 0, kind: input, shape index: {}]
  %s1 = inlined_call_operand.vmem [shape: f32[4,12], index: 1, kind: input, shape index: {}]
  %s2 = inlined_call_operand.vmem [shape: f32[4,1], index: 2, kind: input, shape index: {}]
  %s3 = inlined_call_operand.vmem [shape: f32[4,512], index: 3, kind: output, shape index: {}]
  %s4 = sld [smem:[#allocation0]]
  $region22: #{_lambda_.33} parent=0
    _
  %s6 = ssub.s32 1, %s4
  %s7 = scalar_select 0, %s6, %s4
  // Predicated region
  $region2: #{_lambda_.33} parent=0 // pred_check
    _
  $region3: #{_lambda_.33} parent=0 // pred_check_branch
    %9 = sbr.rel (0) target = $region5
  $region4: #{_lambda_.33} parent=0 // pred_region
    _
  $region5: #{_lambda_.33} parent=0 // pred_fallthru
    _
  // Predicated region
  $region6: #{_lambda_.33} parent=0 // pred_check
    _
  $region7: #{_lambda_.33} parent=0 // pred_check_branch
    %11 = sbr.rel (0) target = $region9
  $region8: #{_lambda_.33} parent=0 // pred_region
    _
  $region9: #{_lambda_.33} parent=0 // pred_fallthru
    _
  // Predicated region
  $region10: #{_lambda_.33} parent=0 // pred_check
    _
  $region11: #{_lambda_.33} parent=0 // pred_check_branch
    %13 = sbr.rel (0) target = $region13
  $region12: #{_lambda_.33} parent=0 // pred_region
    _
  $region13: #{_lambda_.33} parent=0 // pred_fallthru
    _
  %v14 = vld [vmem:[%s0] sm:$0xff]
  %v15 = vld [vmem:[%s0 + $0x8] sm:$0xff]
  %v16 = vld [vmem:[%s0 + $0x10] sm:$0xff]
  %v17 = vld [vmem:[%s0 + $0x18] sm:$0xff]
  %v18 = vld [vmem:[%s0 + $0x20] sm:$0xf]
  %v19 = vld [vmem:[%s0 + $0x28] sm:$0xf]
  %v20 = vld [vmem:[%s0 + $0x30] sm:$0xf]
  %v21 = vld [vmem:[%s0 + $0x38] sm:$0xf]
  %v22 = vmax.f32 %v14, 0.0
  %v23 = vmax.f32 %v15, 0.0
  %v24 = vmax.f32 %v16, 0.0
  %v25 = vmax.f32 %v17, 0.0
  %v26 = vmax.f32 %v18, 0.0
  %v27 = vmax.f32 %v19, 0.0
  %v28 = vmax.f32 %v20, 0.0
  %v29 = vmax.f32 %v21, 0.0
  %v30 = vld [vmem:[%s1] sm:$0xf]
  %v31 = vld [vmem:[%s2] sm:$0xf]
  %33 = vset.pattern.permute.xlu0 0
  %34 = vperm.xlu0 %33, %v31
  %v35 = vpop.permute.xlu0 %34
  %vm37 = vcmask 97280
  %v39 = vsel %vm37, %v30, 0
  %vm41 = vcmask 1043456
  %v43 = vsel %vm41, %v26, 0
  %v46 = vsel %vm41, %v27, 0
  %v49 = vsel %vm41, %v28, 0
  %v52 = vsel %vm41, %v29, 0
  %54 = vmatpush.msra.mxu0 0.0
  %55 = vmatpush.msra.mxu0 0.0
  %56 = vmatpush.msra.mxu0 0.0
  %57 = vmatpush.msra.mxu0 0.0
  %58 = vmatpush.msra.mxu0 0.0
  %59 = vmatpush.msra.mxu0 0.0
  %60 = vmatpush.msra.mxu0 0.0
  %61 = vmatpush.msra.mxu0 0.0
  %62 = vmatpush.msra.mxu0 0.0
  %63 = vmatpush.msra.mxu0 0.0
  %64 = vmatpush.msra.mxu0 0.0
  %65 = vmatpush.msra.mxu0 0.0
  %66 = vmatpush.msra.mxu0 0.0
  %67 = vmatpush.msra.mxu0 0.0
  %68 = vmatpush.msra.mxu0 %v43
  %69 = vmatpush.msra.mxu0 %v22
  %70 = vmatmul.f32.gmra.mxu0 %v39
  %v71 = vpop.f32.mrf.mxu0
  %v72 = vadd.f32 %v35, %v71
  %73 = vdwg.mxu0
  %74 = vmatpush.msra.mxu0 0.0
  %75 = vmatpush.msra.mxu0 0.0
  %76 = vmatpush.msra.mxu0 0.0
  %77 = vmatpush.msra.mxu0 0.0
  %78 = vmatpush.msra.mxu0 0.0
  %79 = vmatpush.msra.mxu0 0.0
  %80 = vmatpush.msra.mxu0 0.0
  %81 = vmatpush.msra.mxu0 0.0
  %82 = vmatpush.msra.mxu0 0.0
  %83 = vmatpush.msra.mxu0 0.0
  %84 = vmatpush.msra.mxu0 0.0
  %85 = vmatpush.msra.mxu0 0.0
  %86 = vmatpush.msra.mxu0 0.0
  %87 = vmatpush.msra.mxu0 0.0
  %88 = vmatpush.msra.mxu0 %v46
  %89 = vmatpush.msra.mxu0 %v23
  %90 = vmatmul.f32.gmra.mxu0 %v39
  %v91 = vpop.f32.mrf.mxu0
  %v92 = vadd.f32 %v35, %v91
  %93 = vdwg.mxu0
  %94 = vmatpush.msra.mxu0 0.0
  %95 = vmatpush.msra.mxu0 0.0
  %96 = vmatpush.msra.mxu0 0.0
  %97 = vmatpush.msra.mxu0 0.0
  %98 = vmatpush.msra.mxu0 0.0
  %99 = vmatpush.msra.mxu0 0.0
  %100 = vmatpush.msra.mxu0 0.0
  %101 = vmatpush.msra.mxu0 0.0
  %102 = vmatpush.msra.mxu0 0.0
  %103 = vmatpush.msra.mxu0 0.0
  %104 = vmatpush.msra.mxu0 0.0
  %105 = vmatpush.msra.mxu0 0.0
  %106 = vmatpush.msra.mxu0 0.0
  %107 = vmatpush.msra.mxu0 0.0
  %108 = vmatpush.msra.mxu0 %v49
  %109 = vmatpush.msra.mxu0 %v24
  %110 = vmatmul.f32.gmra.mxu0 %v39
  %v111 = vpop.f32.mrf.mxu0
  %v112 = vadd.f32 %v35, %v111
  %113 = vdwg.mxu0
  %114 = vmatpush.msra.mxu0 0.0
  %115 = vmatpush.msra.mxu0 0.0
  %116 = vmatpush.msra.mxu0 0.0
  %117 = vmatpush.msra.mxu0 0.0
  %118 = vmatpush.msra.mxu0 0.0
  %119 = vmatpush.msra.mxu0 0.0
  %120 = vmatpush.msra.mxu0 0.0
  %121 = vmatpush.msra.mxu0 0.0
  %122 = vmatpush.msra.mxu0 0.0
  %123 = vmatpush.msra.mxu0 0.0
  %124 = vmatpush.msra.mxu0 0.0
  %125 = vmatpush.msra.mxu0 0.0
  %126 = vmatpush.msra.mxu0 0.0
  %127 = vmatpush.msra.mxu0 0.0
  %128 = vmatpush.msra.mxu0 %v52
  %129 = vmatpush.msra.mxu0 %v25
  %130 = vmatmul.f32.gmra.mxu0 %v39
  %v131 = vpop.f32.mrf.mxu0
  %v132 = vadd.f32 %v35, %v131
  %133 = vdwg.mxu0
  %v138 = vrot.slane %v92, 4
  %v139 = vrot.slane %v132, 4
  %v140 = vsel %vm41, %v72, %v138
  %v141 = vsel %vm41, %v112, %v139
  %144 = vst [vmem:[%s3] sm:$0xff] %v140
  %145 = vst [vmem:[%s3 + $0x8] sm:$0xff] %v141
  // Predicated region
  $region14: #{_lambda_.33} parent=0 // pred_check
    _
  $region15: #{_lambda_.33} parent=0 // pred_check_branch
    %147 = sbr.rel (0) target = $region17
  $region16: #{_lambda_.33} parent=0 // pred_region
    _
  $region17: #{_lambda_.33} parent=0 // pred_fallthru
    _
  // Predicated region
  $region18: #{_lambda_.33} parent=0 // pred_check
    _
  $region19: #{_lambda_.33} parent=0 // pred_check_branch
    %149 = sbr.rel (0) target = $region21
  $region20: #{_lambda_.33} parent=0 // pred_region
    _
  $region21: #{_lambda_.33} parent=0 // pred_fallthru
    _

// kernel: _lambda_.35
$region0: #{_lambda_.35}
  #allocation0 [shape = 'u32[]', space=smem, size = 0x4, offset = 0x4, fixed_abs, tag = 'smem constant byte address 0x4 - core index']
  #allocation1 [shape = 'u32[72,128]{1,0:T(1,128)}', space=vmem, size = 0x9000, scoped, tag = 'internal scratch']
  %s0 = inlined_call_operand.vmem [shape: f32[9,4,512], index: 0, kind: input, shape index: {}]
  %s1 = inlined_call_operand.vmem [shape: f32[9,4,1], index: 1, kind: input, shape index: {}]
  %s2 = inlined_call_operand.vmem [shape: f32[4,4], index: 2, kind: input, shape index: {}]
  %s3 = inlined_call_operand.vmem [shape: f32[4,1], index: 3, kind: input, shape index: {}]
  %s4 = inlined_call_operand.vmem [shape: f32[4,512], index: 4, kind: output, shape index: {}]
  %s5 = sld [smem:[#allocation0]]
  $region26: #{_lambda_.35} parent=0
    _
  %s7 = ssub.s32 1, %s5
  %s8 = scalar_select 0, %s7, %s5
  // Predicated region
  $region2: #{_lambda_.35} parent=0 // pred_check
    _
  $region3: #{_lambda_.35} parent=0 // pred_check_branch
    %10 = sbr.rel (0) target = $region5
  $region4: #{_lambda_.35} parent=0 // pred_region
    _
  $region5: #{_lambda_.35} parent=0 // pred_fallthru
    _
  // Predicated region
  $region6: #{_lambda_.35} parent=0 // pred_check
    _
  $region7: #{_lambda_.35} parent=0 // pred_check_branch
    %12 = sbr.rel (0) target = $region9
  $region8: #{_lambda_.35} parent=0 // pred_region
    _
  $region9: #{_lambda_.35} parent=0 // pred_fallthru
    _
  // Predicated region
  $region10: #{_lambda_.35} parent=0 // pred_check
    _
  $region11: #{_lambda_.35} parent=0 // pred_check_branch
    %14 = sbr.rel (0) target = $region13
  $region12: #{_lambda_.35} parent=0 // pred_region
    _
  $region13: #{_lambda_.35} parent=0 // pred_fallthru
    _
  // Predicated region
  $region14: #{_lambda_.35} parent=0 // pred_check
    _
  $region15: #{_lambda_.35} parent=0 // pred_check_branch
    %16 = sbr.rel (0) target = $region17
  $region16: #{_lambda_.35} parent=0 // pred_region
    _
  $region17: #{_lambda_.35} parent=0 // pred_fallthru
    _
  %v17 = vld [vmem:[%s1] sm:$0xf]
  %v18 = vld [vmem:[%s0] sm:$0xff]
  %v19 = vld [vmem:[%s0 + $0x8] sm:$0xff]
  %v20 = vmax.f32 %v18, 0.0
  %v21 = vmax.f32 %v19, 0.0
  %23 = vset.pattern.permute.xlu0 0
  %24 = vperm.xlu0 %23, %v17
  %v25 = vpop.permute.xlu0 %24
  %29 = vst [vmem:[#allocation1] ss:$2 sm:$0xff] %v20
  %s30 = scalar_lea.vmem [#allocation1], 16
  %31 = vst [vmem:[%s30] ss:$2 sm:$0xff] %v21
  %v32 = vld.sshfl [vmem:[#allocation1] sm:$0xff pattern:$0x75316420]
  %v33 = vld.sshfl [vmem:[#allocation1 + $0x8] sm:$0xff pattern:$0x75316420]
  %v34 = vld.sshfl [vmem:[#allocation1 + $0x10] sm:$0xff pattern:$0x75316420]
  %v35 = vld.sshfl [vmem:[#allocation1 + $0x18] sm:$0xff pattern:$0x75316420]
  %v40 = vmul.f32 %v25, %v32
  %v41 = vmul.f32 %v25, %v33
  %v42 = vmul.f32 %v25, %v34
  %v43 = vmul.f32 %v25, %v35
  %s44 = scalar_lea.vmem %s1, 4
  %v45 = vld [vmem:[%s44] sm:$0xf]
  %s46 = scalar_lea.vmem %s0, 16
  %v47 = vld [vmem:[%s46] sm:$0xff]
  %v48 = vld [vmem:[%s46 + $0x8] sm:$0xff]
  %v49 = vmax.f32 %v47, 0.0
  %v50 = vmax.f32 %v48, 0.0
  %52 = vset.pattern.permute.xlu0 0
  %53 = vperm.xlu0 %52, %v45
  %v54 = vpop.permute.xlu0 %53
  %58 = vst [vmem:[#allocation1] ss:$2 sm:$0xff] %v49
  %s59 = scalar_lea.vmem [#allocation1], 16
  %60 = vst [vmem:[%s59] ss:$2 sm:$0xff] %v50
  %v61 = vld.sshfl [vmem:[#allocation1] sm:$0xff pattern:$0x75316420]
  %v62 = vld.sshfl [vmem:[#allocation1 + $0x8] sm:$0xff pattern:$0x75316420]
  %v63 = vld.sshfl [vmem:[#allocation1 + $0x10] sm:$0xff pattern:$0x75316420]
  %v64 = vld.sshfl [vmem:[#allocation1 + $0x18] sm:$0xff pattern:$0x75316420]
  %v69 = vmul.f32 %v54, %v61
  %v70 = vmul.f32 %v54, %v62
  %v71 = vmul.f32 %v54, %v63
  %v72 = vmul.f32 %v54, %v64
  %v73 = vadd.f32 %v40, %v69
  %v74 = vadd.f32 %v41, %v70
  %v75 = vadd.f32 %v42, %v71
  %v76 = vadd.f32 %v43, %v72
  %s77 = scalar_lea.vmem %s1, 8
  %v78 = vld [vmem:[%s77] sm:$0xf]
  %s79 = scalar_lea.vmem %s0, 32
  %v80 = vld [vmem:[%s79] sm:$0xff]
  %v81 = vld [vmem:[%s79 + $0x8] sm:$0xff]
  %v82 = vmax.f32 %v80, 0.0
  %v83 = vmax.f32 %v81, 0.0
  %85 = vset.pattern.permute.xlu0 0
  %86 = vperm.xlu0 %85, %v78
  %v87 = vpop.permute.xlu0 %86
  %91 = vst [vmem:[#allocation1] ss:$2 sm:$0xff] %v82
  %s92 = scalar_lea.vmem [#allocation1], 16
  %93 = vst [vmem:[%s92] ss:$2 sm:$0xff] %v83
  %v94 = vld.sshfl [vmem:[#allocation1] sm:$0xff pattern:$0x75316420]
  %v95 = vld.sshfl [vmem:[#allocation1 + $0x8] sm:$0xff pattern:$0x75316420]
  %v96 = vld.sshfl [vmem:[#allocation1 + $0x10] sm:$0xff pattern:$0x75316420]
  %v97 = vld.sshfl [vmem:[#allocation1 + $0x18] sm:$0xff pattern:$0x75316420]
  %v102 = vmul.f32 %v87, %v94
  %v103 = vmul.f32 %v87, %v95
  %v104 = vmul.f32 %v87, %v96
  %v105 = vmul.f32 %v87, %v97
  %v106 = vadd.f32 %v73, %v102
  %v107 = vadd.f32 %v74, %v103
  %v108 = vadd.f32 %v75, %v104
  %v109 = vadd.f32 %v76, %v105
  %s110 = scalar_lea.vmem %s1, 12
  %v111 = vld [vmem:[%s110] sm:$0xf]
  %s112 = scalar_lea.vmem %s0, 48
  %v113 = vld [vmem:[%s112] sm:$0xff]
  %v114 = vld [vmem:[%s112 + $0x8] sm:$0xff]
  %v115 = vmax.f32 %v113, 0.0
  %v116 = vmax.f32 %v114, 0.0
  %118 = vset.pattern.permute.xlu0 0
  %119 = vperm.xlu0 %118, %v111
  %v120 = vpop.permute.xlu0 %119
  %124 = vst [vmem:[#allocation1] ss:$2 sm:$0xff] %v115
  %s125 = scalar_lea.vmem [#allocation1], 16
  %126 = vst [vmem:[%s125] ss:$2 sm:$0xff] %v116
  %v127 = vld.sshfl [vmem:[#allocation1] sm:$0xff pattern:$0x75316420]
  %v128 = vld.sshfl [vmem:[#allocation1 + $0x8] sm:$0xff pattern:$0x75316420]
  %v129 = vld.sshfl [vmem:[#allocation1 + $0x10] sm:$0xff pattern:$0x75316420]
  %v130 = vld.sshfl [vmem:[#allocation1 + $0x18] sm:$0xff pattern:$0x75316420]
  %v135 = vmul.f32 %v120, %v127
  %v136 = vmul.f32 %v120, %v128
  %v137 = vmul.f32 %v120, %v129
  %v138 = vmul.f32 %v120, %v130
  %v139 = vadd.f32 %v106, %v135
  %v140 = vadd.f32 %v107, %v136
  %v141 = vadd.f32 %v108, %v137
  %v142 = vadd.f32 %v109, %v138
  %s143 = scalar_lea.vmem %s1, 16
  %v144 = vld [vmem:[%s143] sm:$0xf]
  %s145 = scalar_lea.vmem %s0, 64
  %v146 = vld [vmem:[%s145] sm:$0xff]
  %v147 = vld [vmem:[%s145 + $0x8] sm:$0xff]
  %v148 = vmax.f32 %v146, 0.0
  %v149 = vmax.f32 %v147, 0.0
  %151 = vset.pattern.permute.xlu0 0
  %152 = vperm.xlu0 %151, %v144
  %v153 = vpop.permute.xlu0 %152
  %157 = vst [vmem:[#allocation1] ss:$2 sm:$0xff] %v148
  %s158 = scalar_lea.vmem [#allocation1], 16
  %159 = vst [vmem:[%s158] ss:$2 sm:$0xff] %v149
  %v160 = vld.sshfl [vmem:[#allocation1] sm:$0xff pattern:$0x75316420]
  %v161 = vld.sshfl [vmem:[#allocation1 + $0x8] sm:$0xff pattern:$0x75316420]
  %v162 = vld.sshfl [vmem:[#allocation1 + $0x10] sm:$0xff pattern:$0x75316420]
  %v163 = vld.sshfl [vmem:[#allocation1 + $0x18] sm:$0xff pattern:$0x75316420]
  %v168 = vmul.f32 %v153, %v160
  %v169 = vmul.f32 %v153, %v161
  %v170 = vmul.f32 %v153, %v162
  %v171 = vmul.f32 %v153, %v163
  %v172 = vadd.f32 %v139, %v168
  %v173 = vadd.f32 %v140, %v169
  %v174 = vadd.f32 %v141, %v170
  %v175 = vadd.f32 %v142, %v171
  %s176 = scalar_lea.vmem %s1, 20
  %v177 = vld [vmem:[%s176] sm:$0xf]
  %s178 = scalar_lea.vmem %s0, 80
  %v179 = vld [vmem:[%s178] sm:$0xff]
  %v180 = vld [vmem:[%s178 + $0x8] sm:$0xff]
  %v181 = vmax.f32 %v179, 0.0
  %v182 = vmax.f32 %v180, 0.0
  %184 = vset.pattern.permute.xlu0 0
  %185 = vperm.xlu0 %184, %v177
  %v186 = vpop.permute.xlu0 %185
  %190 = vst [vmem:[#allocation1] ss:$2 sm:$0xff] %v181
  %s191 = scalar_lea.vmem [#allocation1], 16
  %192 = vst [vmem:[%s191] ss:$2 sm:$0xff] %v182
  %v193 = vld.sshfl [vmem:[#allocation1] sm:$0xff pattern:$0x75316420]
  %v194 = vld.sshfl [vmem:[#allocation1 + $0x8] sm:$0xff pattern:$0x75316420]
  %v195 = vld.sshfl [vmem:[#allocation1 + $0x10] sm:$0xff pattern:$0x75316420]
  %v196 = vld.sshfl [vmem:[#allocation1 + $0x18] sm:$0xff pattern:$0x75316420]
  %v201 = vmul.f32 %v186, %v193
  %v202 = vmul.f32 %v186, %v194
  %v203 = vmul.f32 %v186, %v195
  %v204 = vmul.f32 %v186, %v196
  %v205 = vadd.f32 %v172, %v201
  %v206 = vadd.f32 %v173, %v202
  %v207 = vadd.f32 %v174, %v203
  %v208 = vadd.f32 %v175, %v204
  %s209 = scalar_lea.vmem %s1, 24
  %v210 = vld [vmem:[%s209] sm:$0xf]
  %s211 = scalar_lea.vmem %s0, 96
  %v212 = vld [vmem:[%s211] sm:$0xff]
  %v213 = vld [vmem:[%s211 + $0x8] sm:$0xff]
  %v214 = vmax.f32 %v212, 0.0
  %v215 = vmax.f32 %v213, 0.0
  %217 = vset.pattern.permute.xlu0 0
  %218 = vperm.xlu0 %217, %v210
  %v219 = vpop.permute.xlu0 %218
  %223 = vst [vmem:[#allocation1] ss:$2 sm:$0xff] %v214
  %s224 = scalar_lea.vmem [#allocation1], 16
  %225 = vst [vmem:[%s224] ss:$2 sm:$0xff] %v215
  %v226 = vld.sshfl [vmem:[#allocation1] sm:$0xff pattern:$0x75316420]
  %v227 = vld.sshfl [vmem:[#allocation1 + $0x8] sm:$0xff pattern:$0x75316420]
  %v228 = vld.sshfl [vmem:[#allocation1 + $0x10] sm:$0xff pattern:$0x75316420]
  %v229 = vld.sshfl [vmem:[#allocation1 + $0x18] sm:$0xff pattern:$0x75316420]
  %v234 = vmul.f32 %v219, %v226
  %v235 = vmul.f32 %v219, %v227
  %v236 = vmul.f32 %v219, %v228
  %v237 = vmul.f32 %v219, %v229
  %v238 = vadd.f32 %v205, %v234
  %v239 = vadd.f32 %v206, %v235
  %v240 = vadd.f32 %v207, %v236
  %v241 = vadd.f32 %v208, %v237
  %s242 = scalar_lea.vmem %s1, 28
  %v243 = vld [vmem:[%s242] sm:$0xf]
  %s244 = scalar_lea.vmem %s0, 112
  %v245 = vld [vmem:[%s244] sm:$0xff]
  %v246 = vld [vmem:[%s244 + $0x8] sm:$0xff]
  %v247 = vmax.f32 %v245, 0.0
  %v248 = vmax.f32 %v246, 0.0
  %250 = vset.pattern.permute.xlu0 0
  %251 = vperm.xlu0 %250, %v243
  %v252 = vpop.permute.xlu0 %251
  %256 = vst [vmem:[#allocation1] ss:$2 sm:$0xff] %v247
  %s257 = scalar_lea.vmem [#allocation1], 16
  %258 = vst [vmem:[%s257] ss:$2 sm:$0xff] %v248
  %v259 = vld.sshfl [vmem:[#allocation1] sm:$0xff pattern:$0x75316420]
  %v260 = vld.sshfl [vmem:[#allocation1 + $0x8] sm:$0xff pattern:$0x75316420]
  %v261 = vld.sshfl [vmem:[#allocation1 + $0x10] sm:$0xff pattern:$0x75316420]
  %v262 = vld.sshfl [vmem:[#allocation1 + $0x18] sm:$0xff pattern:$0x75316420]
  %v267 = vmul.f32 %v252, %v259
  %v268 = vmul.f32 %v252, %v260
  %v269 = vmul.f32 %v252, %v261
  %v270 = vmul.f32 %v252, %v262
  %v271 = vadd.f32 %v238, %v267
  %v272 = vadd.f32 %v239, %v268
  %v273 = vadd.f32 %v240, %v269
  %v274 = vadd.f32 %v241, %v270
  %s275 = scalar_lea.vmem %s1, 32
  %v276 = vld [vmem:[%s275] sm:$0xf]
  %s277 = scalar_lea.vmem %s0, 128
  %v278 = vld [vmem:[%s277] sm:$0xff]
  %v279 = vld [vmem:[%s277 + $0x8] sm:$0xff]
  %v280 = vmax.f32 %v278, 0.0
  %v281 = vmax.f32 %v279, 0.0
  %283 = vset.pattern.permute.xlu0 0
  %284 = vperm.xlu0 %283, %v276
  %v285 = vpop.permute.xlu0 %284
  %289 = vst [vmem:[#allocation1] ss:$2 sm:$0xff] %v280
  %s290 = scalar_lea.vmem [#allocation1], 16
  %291 = vst [vmem:[%s290] ss:$2 sm:$0xff] %v281
  %v292 = vld.sshfl [vmem:[#allocation1] sm:$0xff pattern:$0x75316420]
  %v293 = vld.sshfl [vmem:[#allocation1 + $0x8] sm:$0xff pattern:$0x75316420]
  %v294 = vld.sshfl [vmem:[#allocation1 + $0x10] sm:$0xff pattern:$0x75316420]
  %v295 = vld.sshfl [vmem:[#allocation1 + $0x18] sm:$0xff pattern:$0x75316420]
  %v300 = vmul.f32 %v285, %v292
  %v301 = vmul.f32 %v285, %v293
  %v302 = vmul.f32 %v285, %v294
  %v303 = vmul.f32 %v285, %v295
  %v304 = vadd.f32 %v271, %v300
  %v305 = vadd.f32 %v272, %v301
  %v306 = vadd.f32 %v273, %v302
  %v307 = vadd.f32 %v274, %v303
  %v308 = vld [vmem:[%s2] sm:$0xf]
  %v309 = vld [vmem:[%s3] sm:$0xf]
  %311 = vset.pattern.permute.xlu0 0
  %312 = vperm.xlu0 %311, %v309
  %v313 = vpop.permute.xlu0 %312
  %vm315 = vcmask 31744
  %v317 = vsel %vm315, %v308, 0
  %vm319 = vcmask 1043456
  %v321 = vsel %vm319, %v304, 0
  %v324 = vsel %vm319, %v305, 0
  %v327 = vsel %vm319, %v306, 0
  %v330 = vsel %vm319, %v307, 0
  %332 = vmatpush.msra.mxu0 0.0
  %333 = vmatpush.msra.mxu0 0.0
  %334 = vmatpush.msra.mxu0 0.0
  %335 = vmatpush.msra.mxu0 0.0
  %336 = vmatpush.msra.mxu0 0.0
  %337 = vmatpush.msra.mxu0 0.0
  %338 = vmatpush.msra.mxu0 0.0
  %339 = vmatpush.msra.mxu0 0.0
  %340 = vmatpush.msra.mxu0 0.0
  %341 = vmatpush.msra.mxu0 0.0
  %342 = vmatpush.msra.mxu0 0.0
  %343 = vmatpush.msra.mxu0 0.0
  %344 = vmatpush.msra.mxu0 0.0
  %345 = vmatpush.msra.mxu0 0.0
  %346 = vmatpush.msra.mxu0 0.0
  %347 = vmatpush.msra.mxu0 %v321
  %348 = vmatmul.f32.gmra.mxu0 %v317
  %v349 = vpop.f32.mrf.mxu0
  %v350 = vadd.f32 %v313, %v349
  %351 = vdwg.mxu0
  %352 = vmatpush.msra.mxu0 0.0
  %353 = vmatpush.msra.mxu0 0.0
  %354 = vmatpush.msra.mxu0 0.0
  %355 = vmatpush.msra.mxu0 0.0
  %356 = vmatpush.msra.mxu0 0.0
  %357 = vmatpush.msra.mxu0 0.0
  %358 = vmatpush.msra.mxu0 0.0
  %359 = vmatpush.msra.mxu0 0.0
  %360 = vmatpush.msra.mxu0 0.0
  %361 = vmatpush.msra.mxu0 0.0
  %362 = vmatpush.msra.mxu0 0.0
  %363 = vmatpush.msra.mxu0 0.0
  %364 = vmatpush.msra.mxu0 0.0
  %365 = vmatpush.msra.mxu0 0.0
  %366 = vmatpush.msra.mxu0 0.0
  %367 = vmatpush.msra.mxu0 %v324
  %368 = vmatmul.f32.gmra.mxu0 %v317
  %v369 = vpop.f32.mrf.mxu0
  %v370 = vadd.f32 %v313, %v369
  %371 = vdwg.mxu0
  %372 = vmatpush.msra.mxu0 0.0
  %373 = vmatpush.msra.mxu0 0.0
  %374 = vmatpush.msra.mxu0 0.0
  %375 = vmatpush.msra.mxu0 0.0
  %376 = vmatpush.msra.mxu0 0.0
  %377 = vmatpush.msra.mxu0 0.0
  %378 = vmatpush.msra.mxu0 0.0
  %379 = vmatpush.msra.mxu0 0.0
  %380 = vmatpush.msra.mxu0 0.0
  %381 = vmatpush.msra.mxu0 0.0
  %382 = vmatpush.msra.mxu0 0.0
  %383 = vmatpush.msra.mxu0 0.0
  %384 = vmatpush.msra.mxu0 0.0
  %385 = vmatpush.msra.mxu0 0.0
  %386 = vmatpush.msra.mxu0 0.0
  %387 = vmatpush.msra.mxu0 %v327
  %388 = vmatmul.f32.gmra.mxu0 %v317
  %v389 = vpop.f32.mrf.mxu0
  %v390 = vadd.f32 %v313, %v389
  %391 = vdwg.mxu0
  %392 = vmatpush.msra.mxu0 0.0
  %393 = vmatpush.msra.mxu0 0.0
  %394 = vmatpush.msra.mxu0 0.0
  %395 = vmatpush.msra.mxu0 0.0
  %396 = vmatpush.msra.mxu0 0.0
  %397 = vmatpush.msra.mxu0 0.0
  %398 = vmatpush.msra.mxu0 0.0
  %399 = vmatpush.msra.mxu0 0.0
  %400 = vmatpush.msra.mxu0 0.0
  %401 = vmatpush.msra.mxu0 0.0
  %402 = vmatpush.msra.mxu0 0.0
  %403 = vmatpush.msra.mxu0 0.0
  %404 = vmatpush.msra.mxu0 0.0
  %405 = vmatpush.msra.mxu0 0.0
  %406 = vmatpush.msra.mxu0 0.0
  %407 = vmatpush.msra.mxu0 %v330
  %408 = vmatmul.f32.gmra.mxu0 %v317
  %v409 = vpop.f32.mrf.mxu0
  %v410 = vadd.f32 %v313, %v409
  %411 = vdwg.mxu0
  %v416 = vrot.slane %v370, 4
  %v417 = vrot.slane %v410, 4
  %v418 = vsel %vm319, %v350, %v416
  %v419 = vsel %vm319, %v390, %v417
  %422 = vst [vmem:[%s4] sm:$0xff] %v418
  %423 = vst [vmem:[%s4 + $0x8] sm:$0xff] %v419
  // Predicated region
  $region18: #{_lambda_.35} parent=0 // pred_check
    _
  $region19: #{_lambda_.35} parent=0 // pred_check_branch
    %425 = sbr.rel (0) target = $region21
  $region20: #{_lambda_.35} parent=0 // pred_region
    _
  $region21: #{_lambda_.35} parent=0 // pred_fallthru
    _
  // Predicated region
  $region22: #{_lambda_.35} parent=0 // pred_check
    _
  $region23: #{_lambda_.35} parent=0 // pred_check_branch
    %427 = sbr.rel (0) target = $region25
  $region24: #{_lambda_.35} parent=0 // pred_region
    _
  $region25: #{_lambda_.35} parent=0 // pred_fallthru
    _

// kernel: _lambda_.36
$region0: #{_lambda_.36}
  #allocation0 [shape = 'u32[]', space=smem, size = 0x4, offset = 0x4, fixed_abs, tag = 'smem constant byte address 0x4 - core index']
  #allocation1 [shape = 'u32[72,128]{1,0:T(1,128)}', space=vmem, size = 0x9000, scoped, tag = 'internal scratch']
  %s0 = inlined_call_operand.vmem [shape: f32[9,4,512], index: 0, kind: input, shape index: {}]
  %s1 = inlined_call_operand.vmem [shape: f32[9,4,1], index: 1, kind: input, shape index: {}]
  %s2 = inlined_call_operand.vmem [shape: f32[4,4], index: 2, kind: input, shape index: {}]
  %s3 = inlined_call_operand.vmem [shape: f32[4,1], index: 3, kind: input, shape index: {}]
  %s4 = inlined_call_operand.vmem [shape: f32[4,512], index: 4, kind: input, shape index: {}]
  %s5 = inlined_call_operand.vmem [shape: f32[4,512], index: 5, kind: output, shape index: {}]
  %s6 = sld [smem:[#allocation0]]
  $region30: #{_lambda_.36} parent=0
    _
  %s8 = ssub.s32 1, %s6
  %s9 = scalar_select 0, %s8, %s6
  // Predicated region
  $region2: #{_lambda_.36} parent=0 // pred_check
    _
  $region3: #{_lambda_.36} parent=0 // pred_check_branch
    %11 = sbr.rel (0) target = $region5
  $region4: #{_lambda_.36} parent=0 // pred_region
    _
  $region5: #{_lambda_.36} parent=0 // pred_fallthru
    _
  // Predicated region
  $region6: #{_lambda_.36} parent=0 // pred_check
    _
  $region7: #{_lambda_.36} parent=0 // pred_check_branch
    %13 = sbr.rel (0) target = $region9
  $region8: #{_lambda_.36} parent=0 // pred_region
    _
  $region9: #{_lambda_.36} parent=0 // pred_fallthru
    _
  // Predicated region
  $region10: #{_lambda_.36} parent=0 // pred_check
    _
  $region11: #{_lambda_.36} parent=0 // pred_check_branch
    %15 = sbr.rel (0) target = $region13
  $region12: #{_lambda_.36} parent=0 // pred_region
    _
  $region13: #{_lambda_.36} parent=0 // pred_fallthru
    _
  // Predicated region
  $region14: #{_lambda_.36} parent=0 // pred_check
    _
  $region15: #{_lambda_.36} parent=0 // pred_check_branch
    %17 = sbr.rel (0) target = $region17
  $region16: #{_lambda_.36} parent=0 // pred_region
    _
  $region17: #{_lambda_.36} parent=0 // pred_fallthru
    _
  // Predicated region
  $region18: #{_lambda_.36} parent=0 // pred_check
    _
  $region19: #{_lambda_.36} parent=0 // pred_check_branch
    %19 = sbr.rel (0) target = $region21
  $region20: #{_lambda_.36} parent=0 // pred_region
    _
  $region21: #{_lambda_.36} parent=0 // pred_fallthru
    _
  %v20 = vld [vmem:[%s1] sm:$0xf]
  %v21 = vld [vmem:[%s0] sm:$0xff]
  %v22 = vld [vmem:[%s0 + $0x8] sm:$0xff]
  %v23 = vmax.f32 %v21, 0.0
  %v24 = vmax.f32 %v22, 0.0
  %26 = vset.pattern.permute.xlu0 0
  %27 = vperm.xlu0 %26, %v20
  %v28 = vpop.permute.xlu0 %27
  %32 = vst [vmem:[#allocation1] ss:$2 sm:$0xff] %v23
  %s33 = scalar_lea.vmem [#allocation1], 16
  %34 = vst [vmem:[%s33] ss:$2 sm:$0xff] %v24
  %v35 = vld.sshfl [vmem:[#allocation1] sm:$0xff pattern:$0x75316420]
  %v36 = vld.sshfl [vmem:[#allocation1 + $0x8] sm:$0xff pattern:$0x75316420]
  %v37 = vld.sshfl [vmem:[#allocation1 + $0x10] sm:$0xff pattern:$0x75316420]
  %v38 = vld.sshfl [vmem:[#allocation1 + $0x18] sm:$0xff pattern:$0x75316420]
  %v43 = vmul.f32 %v28, %v35
  %v44 = vmul.f32 %v28, %v36
  %v45 = vmul.f32 %v28, %v37
  %v46 = vmul.f32 %v28, %v38
  %s47 = scalar_lea.vmem %s1, 4
  %v48 = vld [vmem:[%s47] sm:$0xf]
  %s49 = scalar_lea.vmem %s0, 16
  %v50 = vld [vmem:[%s49] sm:$0xff]
  %v51 = vld [vmem:[%s49 + $0x8] sm:$0xff]
  %v52 = vmax.f32 %v50, 0.0
  %v53 = vmax.f32 %v51, 0.0
  %55 = vset.pattern.permute.xlu0 0
  %56 = vperm.xlu0 %55, %v48
  %v57 = vpop.permute.xlu0 %56
  %61 = vst [vmem:[#allocation1] ss:$2 sm:$0xff] %v52
  %s62 = scalar_lea.vmem [#allocation1], 16
  %63 = vst [vmem:[%s62] ss:$2 sm:$0xff] %v53
  %v64 = vld.sshfl [vmem:[#allocation1] sm:$0xff pattern:$0x75316420]
  %v65 = vld.sshfl [vmem:[#allocation1 + $0x8] sm:$0xff pattern:$0x75316420]
  %v66 = vld.sshfl [vmem:[#allocation1 + $0x10] sm:$0xff pattern:$0x75316420]
  %v67 = vld.sshfl [vmem:[#allocation1 + $0x18] sm:$0xff pattern:$0x75316420]
  %v72 = vmul.f32 %v57, %v64
  %v73 = vmul.f32 %v57, %v65
  %v74 = vmul.f32 %v57, %v66
  %v75 = vmul.f32 %v57, %v67
  %v76 = vadd.f32 %v43, %v72
  %v77 = vadd.f32 %v44, %v73
  %v78 = vadd.f32 %v45, %v74
  %v79 = vadd.f32 %v46, %v75
  %s80 = scalar_lea.vmem %s1, 8
  %v81 = vld [vmem:[%s80] sm:$0xf]
  %s82 = scalar_lea.vmem %s0, 32
  %v83 = vld [vmem:[%s82] sm:$0xff]
  %v84 = vld [vmem:[%s82 + $0x8] sm:$0xff]
  %v85 = vmax.f32 %v83, 0.0
  %v86 = vmax.f32 %v84, 0.0
  %88 = vset.pattern.permute.xlu0 0
  %89 = vperm.xlu0 %88, %v81
  %v90 = vpop.permute.xlu0 %89
  %94 = vst [vmem:[#allocation1] ss:$2 sm:$0xff] %v85
  %s95 = scalar_lea.vmem [#allocation1], 16
  %96 = vst [vmem:[%s95] ss:$2 sm:$0xff] %v86
  %v97 = vld.sshfl [vmem:[#allocation1] sm:$0xff pattern:$0x75316420]
  %v98 = vld.sshfl [vmem:[#allocation1 + $0x8] sm:$0xff pattern:$0x75316420]
  %v99 = vld.sshfl [vmem:[#allocation1 + $0x10] sm:$0xff pattern:$0x75316420]
  %v100 = vld.sshfl [vmem:[#allocation1 + $0x18] sm:$0xff pattern:$0x75316420]
  %v105 = vmul.f32 %v90, %v97
  %v106 = vmul.f32 %v90, %v98
  %v107 = vmul.f32 %v90, %v99
  %v108 = vmul.f32 %v90, %v100
  %v109 = vadd.f32 %v76, %v105
  %v110 = vadd.f32 %v77, %v106
  %v111 = vadd.f32 %v78, %v107
  %v112 = vadd.f32 %v79, %v108
  %s113 = scalar_lea.vmem %s1, 12
  %v114 = vld [vmem:[%s113] sm:$0xf]
  %s115 = scalar_lea.vmem %s0, 48
  %v116 = vld [vmem:[%s115] sm:$0xff]
  %v117 = vld [vmem:[%s115 + $0x8] sm:$0xff]
  %v118 = vmax.f32 %v116, 0.0
  %v119 = vmax.f32 %v117, 0.0
  %121 = vset.pattern.permute.xlu0 0
  %122 = vperm.xlu0 %121, %v114
  %v123 = vpop.permute.xlu0 %122
  %127 = vst [vmem:[#allocation1] ss:$2 sm:$0xff] %v118
  %s128 = scalar_lea.vmem [#allocation1], 16
  %129 = vst [vmem:[%s128] ss:$2 sm:$0xff] %v119
  %v130 = vld.sshfl [vmem:[#allocation1] sm:$0xff pattern:$0x75316420]
  %v131 = vld.sshfl [vmem:[#allocation1 + $0x8] sm:$0xff pattern:$0x75316420]
  %v132 = vld.sshfl [vmem:[#allocation1 + $0x10] sm:$0xff pattern:$0x75316420]
  %v133 = vld.sshfl [vmem:[#allocation1 + $0x18] sm:$0xff pattern:$0x75316420]
  %v138 = vmul.f32 %v123, %v130
  %v139 = vmul.f32 %v123, %v131
  %v140 = vmul.f32 %v123, %v132
  %v141 = vmul.f32 %v123, %v133
  %v142 = vadd.f32 %v109, %v138
  %v143 = vadd.f32 %v110, %v139
  %v144 = vadd.f32 %v111, %v140
  %v145 = vadd.f32 %v112, %v141
  %s146 = scalar_lea.vmem %s1, 16
  %v147 = vld [vmem:[%s146] sm:$0xf]
  %s148 = scalar_lea.vmem %s0, 64
  %v149 = vld [vmem:[%s148] sm:$0xff]
  %v150 = vld [vmem:[%s148 + $0x8] sm:$0xff]
  %v151 = vmax.f32 %v149, 0.0
  %v152 = vmax.f32 %v150, 0.0
  %154 = vset.pattern.permute.xlu0 0
  %155 = vperm.xlu0 %154, %v147
  %v156 = vpop.permute.xlu0 %155
  %160 = vst [vmem:[#allocation1] ss:$2 sm:$0xff] %v151
  %s161 = scalar_lea.vmem [#allocation1], 16
  %162 = vst [vmem:[%s161] ss:$2 sm:$0xff] %v152
  %v163 = vld.sshfl [vmem:[#allocation1] sm:$0xff pattern:$0x75316420]
  %v164 = vld.sshfl [vmem:[#allocation1 + $0x8] sm:$0xff pattern:$0x75316420]
  %v165 = vld.sshfl [vmem:[#allocation1 + $0x10] sm:$0xff pattern:$0x75316420]
  %v166 = vld.sshfl [vmem:[#allocation1 + $0x18] sm:$0xff pattern:$0x75316420]
  %v171 = vmul.f32 %v156, %v163
  %v172 = vmul.f32 %v156, %v164
  %v173 = vmul.f32 %v156, %v165
  %v174 = vmul.f32 %v156, %v166
  %v175 = vadd.f32 %v142, %v171
  %v176 = vadd.f32 %v143, %v172
  %v177 = vadd.f32 %v144, %v173
  %v178 = vadd.f32 %v145, %v174
  %s179 = scalar_lea.vmem %s1, 20
  %v180 = vld [vmem:[%s179] sm:$0xf]
  %s181 = scalar_lea.vmem %s0, 80
  %v182 = vld [vmem:[%s181] sm:$0xff]
  %v183 = vld [vmem:[%s181 + $0x8] sm:$0xff]
  %v184 = vmax.f32 %v182, 0.0
  %v185 = vmax.f32 %v183, 0.0
  %187 = vset.pattern.permute.xlu0 0
  %188 = vperm.xlu0 %187, %v180
  %v189 = vpop.permute.xlu0 %188
  %193 = vst [vmem:[#allocation1] ss:$2 sm:$0xff] %v184
  %s194 = scalar_lea.vmem [#allocation1], 16
  %195 = vst [vmem:[%s194] ss:$2 sm:$0xff] %v185
  %v196 = vld.sshfl [vmem:[#allocation1] sm:$0xff pattern:$0x75316420]
  %v197 = vld.sshfl [vmem:[#allocation1 + $0x8] sm:$0xff pattern:$0x75316420]
  %v198 = vld.sshfl [vmem:[#allocation1 + $0x10] sm:$0xff pattern:$0x75316420]
  %v199 = vld.sshfl [vmem:[#allocation1 + $0x18] sm:$0xff pattern:$0x75316420]
  %v204 = vmul.f32 %v189, %v196
  %v205 = vmul.f32 %v189, %v197
  %v206 = vmul.f32 %v189, %v198
  %v207 = vmul.f32 %v189, %v199
  %v208 = vadd.f32 %v175, %v204
  %v209 = vadd.f32 %v176, %v205
  %v210 = vadd.f32 %v177, %v206
  %v211 = vadd.f32 %v178, %v207
  %s212 = scalar_lea.vmem %s1, 24
  %v213 = vld [vmem:[%s212] sm:$0xf]
  %s214 = scalar_lea.vmem %s0, 96
  %v215 = vld [vmem:[%s214] sm:$0xff]
  %v216 = vld [vmem:[%s214 + $0x8] sm:$0xff]
  %v217 = vmax.f32 %v215, 0.0
  %v218 = vmax.f32 %v216, 0.0
  %220 = vset.pattern.permute.xlu0 0
  %221 = vperm.xlu0 %220, %v213
  %v222 = vpop.permute.xlu0 %221
  %226 = vst [vmem:[#allocation1] ss:$2 sm:$0xff] %v217
  %s227 = scalar_lea.vmem [#allocation1], 16
  %228 = vst [vmem:[%s227] ss:$2 sm:$0xff] %v218
  %v229 = vld.sshfl [vmem:[#allocation1] sm:$0xff pattern:$0x75316420]
  %v230 = vld.sshfl [vmem:[#allocation1 + $0x8] sm:$0xff pattern:$0x75316420]
  %v231 = vld.sshfl [vmem:[#allocation1 + $0x10] sm:$0xff pattern:$0x75316420]
  %v232 = vld.sshfl [vmem:[#allocation1 + $0x18] sm:$0xff pattern:$0x75316420]
  %v237 = vmul.f32 %v222, %v229
  %v238 = vmul.f32 %v222, %v230
  %v239 = vmul.f32 %v222, %v231
  %v240 = vmul.f32 %v222, %v232
  %v241 = vadd.f32 %v208, %v237
  %v242 = vadd.f32 %v209, %v238
  %v243 = vadd.f32 %v210, %v239
  %v244 = vadd.f32 %v211, %v240
  %s245 = scalar_lea.vmem %s1, 28
  %v246 = vld [vmem:[%s245] sm:$0xf]
  %s247 = scalar_lea.vmem %s0, 112
  %v248 = vld [vmem:[%s247] sm:$0xff]
  %v249 = vld [vmem:[%s247 + $0x8] sm:$0xff]
  %v250 = vmax.f32 %v248, 0.0
  %v251 = vmax.f32 %v249, 0.0
  %253 = vset.pattern.permute.xlu0 0
  %254 = vperm.xlu0 %253, %v246
  %v255 = vpop.permute.xlu0 %254
  %259 = vst [vmem:[#allocation1] ss:$2 sm:$0xff] %v250
  %s260 = scalar_lea.vmem [#allocation1], 16
  %261 = vst [vmem:[%s260] ss:$2 sm:$0xff] %v251
  %v262 = vld.sshfl [vmem:[#allocation1] sm:$0xff pattern:$0x75316420]
  %v263 = vld.sshfl [vmem:[#allocation1 + $0x8] sm:$0xff pattern:$0x75316420]
  %v264 = vld.sshfl [vmem:[#allocation1 + $0x10] sm:$0xff pattern:$0x75316420]
  %v265 = vld.sshfl [vmem:[#allocation1 + $0x18] sm:$0xff pattern:$0x75316420]
  %v270 = vmul.f32 %v255, %v262
  %v271 = vmul.f32 %v255, %v263
  %v272 = vmul.f32 %v255, %v264
  %v273 = vmul.f32 %v255, %v265
  %v274 = vadd.f32 %v241, %v270
  %v275 = vadd.f32 %v242, %v271
  %v276 = vadd.f32 %v243, %v272
  %v277 = vadd.f32 %v244, %v273
  %s278 = scalar_lea.vmem %s1, 32
  %v279 = vld [vmem:[%s278] sm:$0xf]
  %s280 = scalar_lea.vmem %s0, 128
  %v281 = vld [vmem:[%s280] sm:$0xff]
  %v282 = vld [vmem:[%s280 + $0x8] sm:$0xff]
  %v283 = vmax.f32 %v281, 0.0
  %v284 = vmax.f32 %v282, 0.0
  %286 = vset.pattern.permute.xlu0 0
  %287 = vperm.xlu0 %286, %v279
  %v288 = vpop.permute.xlu0 %287
  %292 = vst [vmem:[#allocation1] ss:$2 sm:$0xff] %v283
  %s293 = scalar_lea.vmem [#allocation1], 16
  %294 = vst [vmem:[%s293] ss:$2 sm:$0xff] %v284
  %v295 = vld.sshfl [vmem:[#allocation1] sm:$0xff pattern:$0x75316420]
  %v296 = vld.sshfl [vmem:[#allocation1 + $0x8] sm:$0xff pattern:$0x75316420]
  %v297 = vld.sshfl [vmem:[#allocation1 + $0x10] sm:$0xff pattern:$0x75316420]
  %v298 = vld.sshfl [vmem:[#allocation1 + $0x18] sm:$0xff pattern:$0x75316420]
  %v303 = vmul.f32 %v288, %v295
  %v304 = vmul.f32 %v288, %v296
  %v305 = vmul.f32 %v288, %v297
  %v306 = vmul.f32 %v288, %v298
  %v307 = vadd.f32 %v274, %v303
  %v308 = vadd.f32 %v275, %v304
  %v309 = vadd.f32 %v276, %v305
  %v310 = vadd.f32 %v277, %v306
  %v311 = vld [vmem:[%s2] sm:$0xf]
  %v312 = vld [vmem:[%s3] sm:$0xf]
  %314 = vset.pattern.permute.xlu0 0
  %315 = vperm.xlu0 %314, %v312
  %v316 = vpop.permute.xlu0 %315
  %vm318 = vcmask 31744
  %v320 = vsel %vm318, %v311, 0
  %vm322 = vcmask 1043456
  %v324 = vsel %vm322, %v307, 0
  %v327 = vsel %vm322, %v308, 0
  %v330 = vsel %vm322, %v309, 0
  %v333 = vsel %vm322, %v310, 0
  %335 = vmatpush.msra.mxu0 0.0
  %336 = vmatpush.msra.mxu0 0.0
  %337 = vmatpush.msra.mxu0 0.0
  %338 = vmatpush.msra.mxu0 0.0
  %339 = vmatpush.msra.mxu0 0.0
  %340 = vmatpush.msra.mxu0 0.0
  %341 = vmatpush.msra.mxu0 0.0
  %342 = vmatpush.msra.mxu0 0.0
  %343 = vmatpush.msra.mxu0 0.0
  %344 = vmatpush.msra.mxu0 0.0
  %345 = vmatpush.msra.mxu0 0.0
  %346 = vmatpush.msra.mxu0 0.0
  %347 = vmatpush.msra.mxu0 0.0
  %348 = vmatpush.msra.mxu0 0.0
  %349 = vmatpush.msra.mxu0 0.0
  %350 = vmatpush.msra.mxu0 %v324
  %351 = vmatmul.f32.gmra.mxu0 %v320
  %v352 = vpop.f32.mrf.mxu0
  %v353 = vadd.f32 %v316, %v352
  %354 = vdwg.mxu0
  %355 = vmatpush.msra.mxu0 0.0
  %356 = vmatpush.msra.mxu0 0.0
  %357 = vmatpush.msra.mxu0 0.0
  %358 = vmatpush.msra.mxu0 0.0
  %359 = vmatpush.msra.mxu0 0.0
  %360 = vmatpush.msra.mxu0 0.0
  %361 = vmatpush.msra.mxu0 0.0
  %362 = vmatpush.msra.mxu0 0.0
  %363 = vmatpush.msra.mxu0 0.0
  %364 = vmatpush.msra.mxu0 0.0
  %365 = vmatpush.msra.mxu0 0.0
  %366 = vmatpush.msra.mxu0 0.0
  %367 = vmatpush.msra.mxu0 0.0
  %368 = vmatpush.msra.mxu0 0.0
  %369 = vmatpush.msra.mxu0 0.0
  %370 = vmatpush.msra.mxu0 %v327
  %371 = vmatmul.f32.gmra.mxu0 %v320
  %v372 = vpop.f32.mrf.mxu0
  %v373 = vadd.f32 %v316, %v372
  %374 = vdwg.mxu0
  %375 = vmatpush.msra.mxu0 0.0
  %376 = vmatpush.msra.mxu0 0.0
  %377 = vmatpush.msra.mxu0 0.0
  %378 = vmatpush.msra.mxu0 0.0
  %379 = vmatpush.msra.mxu0 0.0
  %380 = vmatpush.msra.mxu0 0.0
  %381 = vmatpush.msra.mxu0 0.0
  %382 = vmatpush.msra.mxu0 0.0
  %383 = vmatpush.msra.mxu0 0.0
  %384 = vmatpush.msra.mxu0 0.0
  %385 = vmatpush.msra.mxu0 0.0
  %386 = vmatpush.msra.mxu0 0.0
  %387 = vmatpush.msra.mxu0 0.0
  %388 = vmatpush.msra.mxu0 0.0
  %389 = vmatpush.msra.mxu0 0.0
  %390 = vmatpush.msra.mxu0 %v330
  %391 = vmatmul.f32.gmra.mxu0 %v320
  %v392 = vpop.f32.mrf.mxu0
  %v393 = vadd.f32 %v316, %v392
  %394 = vdwg.mxu0
  %395 = vmatpush.msra.mxu0 0.0
  %396 = vmatpush.msra.mxu0 0.0
  %397 = vmatpush.msra.mxu0 0.0
  %398 = vmatpush.msra.mxu0 0.0
  %399 = vmatpush.msra.mxu0 0.0
  %400 = vmatpush.msra.mxu0 0.0
  %401 = vmatpush.msra.mxu0 0.0
  %402 = vmatpush.msra.mxu0 0.0
  %403 = vmatpush.msra.mxu0 0.0
  %404 = vmatpush.msra.mxu0 0.0
  %405 = vmatpush.msra.mxu0 0.0
  %406 = vmatpush.msra.mxu0 0.0
  %407 = vmatpush.msra.mxu0 0.0
  %408 = vmatpush.msra.mxu0 0.0
  %409 = vmatpush.msra.mxu0 0.0
  %410 = vmatpush.msra.mxu0 %v333
  %411 = vmatmul.f32.gmra.mxu0 %v320
  %v412 = vpop.f32.mrf.mxu0
  %v413 = vadd.f32 %v316, %v412
  %414 = vdwg.mxu0
  %v415 = vld [vmem:[%s4] sm:$0xff]
  %v416 = vld [vmem:[%s4 + $0x8] sm:$0xff]
  %419 = vst [vmem:[#allocation1] ss:$2 sm:$0xff] %v415
  %s420 = scalar_lea.vmem [#allocation1], 16
  %421 = vst [vmem:[%s420] ss:$2 sm:$0xff] %v416
  %v422 = vld.sshfl [vmem:[#allocation1] sm:$0xff pattern:$0x75316420]
  %v423 = vld.sshfl [vmem:[#allocation1 + $0x8] sm:$0xff pattern:$0x75316420]
  %v424 = vld.sshfl [vmem:[#allocation1 + $0x10] sm:$0xff pattern:$0x75316420]
  %v425 = vld.sshfl [vmem:[#allocation1 + $0x18] sm:$0xff pattern:$0x75316420]
  %v430 = vadd.f32 %v353, %v422
  %v431 = vadd.f32 %v373, %v423
  %v432 = vadd.f32 %v393, %v424
  %v433 = vadd.f32 %v413, %v425
  %v438 = vrot.slane %v431, 4
  %v439 = vrot.slane %v433, 4
  %v440 = vsel %vm322, %v430, %v438
  %v441 = vsel %vm322, %v432, %v439
  %444 = vst [vmem:[%s5] sm:$0xff] %v440
  %445 = vst [vmem:[%s5 + $0x8] sm:$0xff] %v441
  // Predicated region
  $region22: #{_lambda_.36} parent=0 // pred_check
    _
  $region23: #{_lambda_.36} parent=0 // pred_check_branch
    %447 = sbr.rel (0) target = $region25
  $region24: #{_lambda_.36} parent=0 // pred_region
    _
  $region25: #{_lambda_.36} parent=0 // pred_fallthru
    _
  // Predicated region
  $region26: #{_lambda_.36} parent=0 // pred_check
    _
  $region27: #{_lambda_.36} parent=0 // pred_check_branch
    %449 = sbr.rel (0) target = $region29
  $region28: #{_lambda_.36} parent=0 // pred_region
    _
  $region29: #{_lambda_.36} parent=0 // pred_fallthru
    _

// kernel: _lambda_.40
$region0: #{_lambda_.40}
  #allocation0 [shape = 'u32[]', space=smem, size = 0x4, offset = 0x4, fixed_abs, tag = 'smem constant byte address 0x4 - core index']
  #allocation1 [shape = 'u32[72,128]{1,0:T(1,128)}', space=vmem, size = 0x9000, scoped, tag = 'internal scratch']
  %s0 = inlined_call_operand.vmem [shape: f32[9,4,512], index: 0, kind: input, shape index: {}]
  %s1 = inlined_call_operand.vmem [shape: f32[4,512], index: 1, kind: input, shape index: {}]
  %s2 = inlined_call_operand.vmem [shape: f32[4,512], index: 2, kind: output, shape index: {}]
  %s3 = sld [smem:[#allocation0]]
  $region18: #{_lambda_.40} parent=0
    _
  %s5 = ssub.s32 1, %s3
  %s6 = scalar_select 0, %s5, %s3
  // Predicated region
  $region2: #{_lambda_.40} parent=0 // pred_check
    _
  $region3: #{_lambda_.40} parent=0 // pred_check_branch
    %8 = sbr.rel (0) target = $region5
  $region4: #{_lambda_.40} parent=0 // pred_region
    _
  $region5: #{_lambda_.40} parent=0 // pred_fallthru
    _
  // Predicated region
  $region6: #{_lambda_.40} parent=0 // pred_check
    _
  $region7: #{_lambda_.40} parent=0 // pred_check_branch
    %10 = sbr.rel (0) target = $region9
  $region8: #{_lambda_.40} parent=0 // pred_region
    _
  $region9: #{_lambda_.40} parent=0 // pred_fallthru
    _
  %v11 = vld [vmem:[%s0] sm:$0xff]
  %v12 = vld [vmem:[%s0 + $0x8] sm:$0xff]
  %s13 = scalar_lea.vmem %s0, 16
  %v14 = vld [vmem:[%s13] sm:$0xff]
  %v15 = vld [vmem:[%s13 + $0x8] sm:$0xff]
  %v16 = vmax.f32 %v11, %v14
  %v17 = vmax.f32 %v12, %v15
  %s18 = scalar_lea.vmem %s0, 32
  %v19 = vld [vmem:[%s18] sm:$0xff]
  %v20 = vld [vmem:[%s18 + $0x8] sm:$0xff]
  %v21 = vmax.f32 %v16, %v19
  %v22 = vmax.f32 %v17, %v20
  %s23 = scalar_lea.vmem %s0, 48
  %v24 = vld [vmem:[%s23] sm:$0xff]
  %v25 = vld [vmem:[%s23 + $0x8] sm:$0xff]
  %v26 = vmax.f32 %v21, %v24
  %v27 = vmax.f32 %v22, %v25
  %s28 = scalar_lea.vmem %s0, 64
  %v29 = vld [vmem:[%s28] sm:$0xff]
  %v30 = vld [vmem:[%s28 + $0x8] sm:$0xff]
  %v31 = vmax.f32 %v26, %v29
  %v32 = vmax.f32 %v27, %v30
  %s33 = scalar_lea.vmem %s0, 80
  %v34 = vld [vmem:[%s33] sm:$0xff]
  %v35 = vld [vmem:[%s33 + $0x8] sm:$0xff]
  %v36 = vmax.f32 %v31, %v34
  %v37 = vmax.f32 %v32, %v35
  %s38 = scalar_lea.vmem %s0, 96
  %v39 = vld [vmem:[%s38] sm:$0xff]
  %v40 = vld [vmem:[%s38 + $0x8] sm:$0xff]
  %v41 = vmax.f32 %v36, %v39
  %v42 = vmax.f32 %v37, %v40
  %s43 = scalar_lea.vmem %s0, 112
  %v44 = vld [vmem:[%s43] sm:$0xff]
  %v45 = vld [vmem:[%s43 + $0x8] sm:$0xff]
  %v46 = vmax.f32 %v41, %v44
  %v47 = vmax.f32 %v42, %v45
  %s48 = scalar_lea.vmem %s0, 128
  %v49 = vld [vmem:[%s48] sm:$0xff]
  %v50 = vld [vmem:[%s48 + $0x8] sm:$0xff]
  %v51 = vmax.f32 %v46, %v49
  %v52 = vmax.f32 %v47, %v50
  %v53 = vld [vmem:[%s1] sm:$0xff]
  %v54 = vld [vmem:[%s1 + $0x8] sm:$0xff]
  %v55 = vadd.f32 %v51, %v53
  %v56 = vadd.f32 %v52, %v54
  %57 = vst [vmem:[%s2] sm:$0xff] %v55
  %58 = vst [vmem:[%s2 + $0x8] sm:$0xff] %v56
  // Predicated region
  $region10: #{_lambda_.40} parent=0 // pred_check
    _
  $region11: #{_lambda_.40} parent=0 // pred_check_branch
    %60 = sbr.rel (0) target = $region13
  $region12: #{_lambda_.40} parent=0 // pred_region
    _
  $region13: #{_lambda_.40} parent=0 // pred_fallthru
    _
  // Predicated region
  $region14: #{_lambda_.40} parent=0 // pred_check
    _
  $region15: #{_lambda_.40} parent=0 // pred_check_branch
    %62 = sbr.rel (0) target = $region17
  $region16: #{_lambda_.40} parent=0 // pred_region
    _
  $region17: #{_lambda_.40} parent=0 // pred_fallthru
    _

// kernel: _lambda_.39
$region0: #{_lambda_.39}
  #allocation0 [shape = 'u32[]', space=smem, size = 0x4, offset = 0x4, fixed_abs, tag = 'smem constant byte address 0x4 - core index']
  #allocation1 [shape = 'u32[72,128]{1,0:T(1,128)}', space=vmem, size = 0x9000, scoped, tag = 'internal scratch']
  %s0 = inlined_call_operand.vmem [shape: f32[9,4,512], index: 0, kind: input, shape index: {}]
  %s1 = inlined_call_operand.vmem [shape: f32[1,512], index: 1, kind: input, shape index: {}]
  %s2 = inlined_call_operand.vmem [shape: f32[4,512], index: 2, kind: input, shape index: {}]
  %s3 = inlined_call_operand.vmem [shape: f32[4,512], index: 3, kind: output, shape index: {}]
  %s4 = sld [smem:[#allocation0]]
  $region22: #{_lambda_.39} parent=0
    _
  %s6 = ssub.s32 1, %s4
  %s7 = scalar_select 0, %s6, %s4
  // Predicated region
  $region2: #{_lambda_.39} parent=0 // pred_check
    _
  $region3: #{_lambda_.39} parent=0 // pred_check_branch
    %9 = sbr.rel (0) target = $region5
  $region4: #{_lambda_.39} parent=0 // pred_region
    _
  $region5: #{_lambda_.39} parent=0 // pred_fallthru
    _
  // Predicated region
  $region6: #{_lambda_.39} parent=0 // pred_check
    _
  $region7: #{_lambda_.39} parent=0 // pred_check_branch
    %11 = sbr.rel (0) target = $region9
  $region8: #{_lambda_.39} parent=0 // pred_region
    _
  $region9: #{_lambda_.39} parent=0 // pred_fallthru
    _
  // Predicated region
  $region10: #{_lambda_.39} parent=0 // pred_check
    _
  $region11: #{_lambda_.39} parent=0 // pred_check_branch
    %13 = sbr.rel (0) target = $region13
  $region12: #{_lambda_.39} parent=0 // pred_region
    _
  $region13: #{_lambda_.39} parent=0 // pred_fallthru
    _
  %v14 = vld [vmem:[%s0] sm:$0xff]
  %v15 = vld [vmem:[%s0 + $0x8] sm:$0xff]
  %s16 = scalar_lea.vmem %s0, 16
  %v17 = vld [vmem:[%s16] sm:$0xff]
  %v18 = vld [vmem:[%s16 + $0x8] sm:$0xff]
  %v19 = vadd.f32 %v14, %v17
  %v20 = vadd.f32 %v15, %v18
  %s21 = scalar_lea.vmem %s0, 32
  %v22 = vld [vmem:[%s21] sm:$0xff]
  %v23 = vld [vmem:[%s21 + $0x8] sm:$0xff]
  %v24 = vadd.f32 %v19, %v22
  %v25 = vadd.f32 %v20, %v23
  %s26 = scalar_lea.vmem %s0, 48
  %v27 = vld [vmem:[%s26] sm:$0xff]
  %v28 = vld [vmem:[%s26 + $0x8] sm:$0xff]
  %v29 = vadd.f32 %v24, %v27
  %v30 = vadd.f32 %v25, %v28
  %s31 = scalar_lea.vmem %s0, 64
  %v32 = vld [vmem:[%s31] sm:$0xff]
  %v33 = vld [vmem:[%s31 + $0x8] sm:$0xff]
  %v34 = vadd.f32 %v29, %v32
  %v35 = vadd.f32 %v30, %v33
  %s36 = scalar_lea.vmem %s0, 80
  %v37 = vld [vmem:[%s36] sm:$0xff]
  %v38 = vld [vmem:[%s36 + $0x8] sm:$0xff]
  %v39 = vadd.f32 %v34, %v37
  %v40 = vadd.f32 %v35, %v38
  %s41 = scalar_lea.vmem %s0, 96
  %v42 = vld [vmem:[%s41] sm:$0xff]
  %v43 = vld [vmem:[%s41 + $0x8] sm:$0xff]
  %v44 = vadd.f32 %v39, %v42
  %v45 = vadd.f32 %v40, %v43
  %s46 = scalar_lea.vmem %s0, 112
  %v47 = vld [vmem:[%s46] sm:$0xff]
  %v48 = vld [vmem:[%s46 + $0x8] sm:$0xff]
  %v49 = vadd.f32 %v44, %v47
  %v50 = vadd.f32 %v45, %v48
  %s51 = scalar_lea.vmem %s0, 128
  %v52 = vld [vmem:[%s51] sm:$0xff]
  %v53 = vld [vmem:[%s51 + $0x8] sm:$0xff]
  %v54 = vadd.f32 %v49, %v52
  %v55 = vadd.f32 %v50, %v53
  %v56 = vld [vmem:[%s1] sm:$0xf]
  %v58 = vperm.slane %v56, 0
  %v59 = vperm.slane %v56, 1
  %v60 = vperm.slane %v56, 2
  %v61 = vperm.slane %v56, 3
  %v62 = vrot.slane %v59, 4
  %v63 = vrot.slane %v61, 4
  %vm64 = vcmask 1043456
  %v65 = vsel %vm64, %v58, %v62
  %v66 = vsel %vm64, %v60, %v63
  %v69 = vmul.f32 %v54, %v65
  %v70 = vmul.f32 %v55, %v66
  %v71 = vld [vmem:[%s2] sm:$0xff]
  %v72 = vld [vmem:[%s2 + $0x8] sm:$0xff]
  %v73 = vadd.f32 %v69, %v71
  %v74 = vadd.f32 %v70, %v72
  %75 = vst [vmem:[%s3] sm:$0xff] %v73
  %76 = vst [vmem:[%s3 + $0x8] sm:$0xff] %v74
  // Predicated region
  $region14: #{_lambda_.39} parent=0 // pred_check
    _
  $region15: #{_lambda_.39} parent=0 // pred_check_branch
    %78 = sbr.rel (0) target = $region17
  $region16: #{_lambda_.39} parent=0 // pred_region
    _
  $region17: #{_lambda_.39} parent=0 // pred_fallthru
    _
  // Predicated region
  $region18: #{_lambda_.39} parent=0 // pred_check
    _
  $region19: #{_lambda_.39} parent=0 // pred_check_branch
    %80 = sbr.rel (0) target = $region21
  $region20: #{_lambda_.39} parent=0 // pred_region
    _
  $region21: #{_lambda_.39} parent=0 // pred_fallthru
    _

// kernel: _lambda_.53
$region0: #{_lambda_.53}
  #allocation0 [shape = 'u32[]', space=smem, size = 0x4, offset = 0x4, fixed_abs, tag = 'smem constant byte address 0x4 - core index']
  #allocation1 [shape = 'u32[72,128]{1,0:T(1,128)}', space=vmem, size = 0x9000, scoped, tag = 'internal scratch']
  %s0 = inlined_call_operand.vmem [shape: f32[32,128], index: 0, kind: input, shape index: {}]
  %s1 = inlined_call_operand.vmem [shape: f32[16,32], index: 1, kind: input, shape index: {}]
  %s2 = inlined_call_operand.vmem [shape: f32[16,1], index: 2, kind: input, shape index: {}]
  %s3 = inlined_call_operand.vmem [shape: f32[16,128], index: 3, kind: output, shape index: {}]
  %s4 = sld [smem:[#allocation0]]
  $region22: #{_lambda_.53} parent=0
    _
  %s6 = ssub.s32 1, %s4
  %s7 = scalar_select 0, %s6, %s4
  // Predicated region
  $region2: #{_lambda_.53} parent=0 // pred_check
    _
  $region3: #{_lambda_.53} parent=0 // pred_check_branch
    %9 = sbr.rel (0) target = $region5
  $region4: #{_lambda_.53} parent=0 // pred_region
    _
  $region5: #{_lambda_.53} parent=0 // pred_fallthru
    _
  // Predicated region
  $region6: #{_lambda_.53} parent=0 // pred_check
    _
  $region7: #{_lambda_.53} parent=0 // pred_check_branch
    %11 = sbr.rel (0) target = $region9
  $region8: #{_lambda_.53} parent=0 // pred_region
    _
  $region9: #{_lambda_.53} parent=0 // pred_fallthru
    _
  // Predicated region
  $region10: #{_lambda_.53} parent=0 // pred_check
    _
  $region11: #{_lambda_.53} parent=0 // pred_check_branch
    %13 = sbr.rel (0) target = $region13
  $region12: #{_lambda_.53} parent=0 // pred_region
    _
  $region13: #{_lambda_.53} parent=0 // pred_fallthru
    _
  %v14 = vld [vmem:[%s0] sm:$0xff]
  %v15 = vld [vmem:[%s0 + $0x8] sm:$0xff]
  %v16 = vld [vmem:[%s0 + $0x10] sm:$0xff]
  %v17 = vld [vmem:[%s0 + $0x18] sm:$0xff]
  %v18 = vmax.f32 %v14, 0.0
  %v19 = vmax.f32 %v15, 0.0
  %v20 = vmax.f32 %v16, 0.0
  %v21 = vmax.f32 %v17, 0.0
  %v22 = vld [vmem:[%s1] sm:$0xff]
  %v23 = vld [vmem:[%s1 + $0x8] sm:$0xff]
  %v24 = vld [vmem:[%s2] sm:$0xff]
  %v25 = vld [vmem:[%s2 + $0x8] sm:$0xff]
  %27 = vset.pattern.permute.xlu0 0
  %28 = vperm.xlu0 %27, %v24
  %v29 = vpop.permute.xlu0 %28
  %32 = vset.pattern.permute.xlu0 0
  %33 = vperm.xlu0 %32, %v25
  %v34 = vpop.permute.xlu0 %33
  %vm36 = vcmask 261120
  %v38 = vsel %vm36, %v22, 0
  %v41 = vsel %vm36, %v23, 0
  %43 = vmatpush.msra.mxu0 0.0
  %44 = vmatpush.msra.mxu0 0.0
  %45 = vmatpush.msra.mxu0 0.0
  %46 = vmatpush.msra.mxu0 0.0
  %47 = vmatpush.msra.mxu0 0.0
  %48 = vmatpush.msra.mxu0 0.0
  %49 = vmatpush.msra.mxu0 0.0
  %50 = vmatpush.msra.mxu0 0.0
  %51 = vmatpush.msra.mxu0 0.0
  %52 = vmatpush.msra.mxu0 0.0
  %53 = vmatpush.msra.mxu0 0.0
  %54 = vmatpush.msra.mxu0 0.0
  %55 = vmatpush.msra.mxu0 %v21
  %56 = vmatpush.msra.mxu0 %v20
  %57 = vmatpush.msra.mxu0 %v19
  %58 = vmatpush.msra.mxu0 %v18
  %59 = vmatmul.f32.gmra.mxu0 %v38
  %v60 = vpop.f32.mrf.mxu0
  %v61 = vadd.f32 %v29, %v60
  %62 = vmatmul.f32.gmra.mxu0 %v41
  %v63 = vpop.f32.mrf.mxu0
  %v64 = vadd.f32 %v34, %v63
  %65 = vdwg.mxu0
  %66 = vst [vmem:[%s3] sm:$0xff] %v61
  %67 = vst [vmem:[%s3 + $0x8] sm:$0xff] %v64
  // Predicated region
  $region14: #{_lambda_.53} parent=0 // pred_check
    _
  $region15: #{_lambda_.53} parent=0 // pred_check_branch
    %69 = sbr.rel (0) target = $region17
  $region16: #{_lambda_.53} parent=0 // pred_region
    _
  $region17: #{_lambda_.53} parent=0 // pred_fallthru
    _
  // Predicated region
  $region18: #{_lambda_.53} parent=0 // pred_check
    _
  $region19: #{_lambda_.53} parent=0 // pred_check_branch
    %71 = sbr.rel (0) target = $region21
  $region20: #{_lambda_.53} parent=0 // pred_region
    _
  $region21: #{_lambda_.53} parent=0 // pred_fallthru
    _

// kernel: _lambda_.55
$region0: #{_lambda_.55}
  #allocation0 [shape = 'u32[]', space=smem, size = 0x4, offset = 0x4, fixed_abs, tag = 'smem constant byte address 0x4 - core index']
  #allocation1 [shape = 'u32[72,128]{1,0:T(1,128)}', space=vmem, size = 0x9000, scoped, tag = 'internal scratch']
  %s0 = inlined_call_operand.vmem [shape: f32[9,16,32], index: 0, kind: input, shape index: {}]
  %s1 = inlined_call_operand.vmem [shape: f32[16,32], index: 1, kind: output, shape index: {}]
  %s2 = sld [smem:[#allocation0]]
  $region14: #{_lambda_.55} parent=0
    _
  %s4 = ssub.s32 1, %s2
  %s5 = scalar_select 0, %s4, %s2
  // Predicated region
  $region2: #{_lambda_.55} parent=0 // pred_check
    _
  $region3: #{_lambda_.55} parent=0 // pred_check_branch
    %7 = sbr.rel (0) target = $region5
  $region4: #{_lambda_.55} parent=0 // pred_region
    _
  $region5: #{_lambda_.55} parent=0 // pred_fallthru
    _
  %v8 = vld [vmem:[%s0] sm:$0xff]
  %v9 = vld [vmem:[%s0 + $0x8] sm:$0xff]
  %s10 = scalar_lea.vmem %s0, 16
  %v11 = vld [vmem:[%s10] sm:$0xff]
  %v12 = vld [vmem:[%s10 + $0x8] sm:$0xff]
  %v13 = vmax.f32 %v8, %v11
  %v14 = vmax.f32 %v9, %v12
  %s15 = scalar_lea.vmem %s0, 32
  %v16 = vld [vmem:[%s15] sm:$0xff]
  %v17 = vld [vmem:[%s15 + $0x8] sm:$0xff]
  %v18 = vmax.f32 %v13, %v16
  %v19 = vmax.f32 %v14, %v17
  %s20 = scalar_lea.vmem %s0, 48
  %v21 = vld [vmem:[%s20] sm:$0xff]
  %v22 = vld [vmem:[%s20 + $0x8] sm:$0xff]
  %v23 = vmax.f32 %v18, %v21
  %v24 = vmax.f32 %v19, %v22
  %s25 = scalar_lea.vmem %s0, 64
  %v26 = vld [vmem:[%s25] sm:$0xff]
  %v27 = vld [vmem:[%s25 + $0x8] sm:$0xff]
  %v28 = vmax.f32 %v23, %v26
  %v29 = vmax.f32 %v24, %v27
  %s30 = scalar_lea.vmem %s0, 80
  %v31 = vld [vmem:[%s30] sm:$0xff]
  %v32 = vld [vmem:[%s30 + $0x8] sm:$0xff]
  %v33 = vmax.f32 %v28, %v31
  %v34 = vmax.f32 %v29, %v32
  %s35 = scalar_lea.vmem %s0, 96
  %v36 = vld [vmem:[%s35] sm:$0xff]
  %v37 = vld [vmem:[%s35 + $0x8] sm:$0xff]
  %v38 = vmax.f32 %v33, %v36
  %v39 = vmax.f32 %v34, %v37
  %s40 = scalar_lea.vmem %s0, 112
  %v41 = vld [vmem:[%s40] sm:$0xff]
  %v42 = vld [vmem:[%s40 + $0x8] sm:$0xff]
  %v43 = vmax.f32 %v38, %v41
  %v44 = vmax.f32 %v39, %v42
  %s45 = scalar_lea.vmem %s0, 128
  %v46 = vld [vmem:[%s45] sm:$0xff]
  %v47 = vld [vmem:[%s45 + $0x8] sm:$0xff]
  %v48 = vmax.f32 %v43, %v46
  %v49 = vmax.f32 %v44, %v47
  %vm50 = vcmask 261120
  %51 = vst.msk [vmem:[%s1] sm:$0xff] %vm50, %v48
  %52 = vst.msk [vmem:[%s1 + $0x8] sm:$0xff] %vm50, %v49
  // Predicated region
  $region6: #{_lambda_.55} parent=0 // pred_check
    _
  $region7: #{_lambda_.55} parent=0 // pred_check_branch
    %54 = sbr.rel (0) target = $region9
  $region8: #{_lambda_.55} parent=0 // pred_region
    _
  $region9: #{_lambda_.55} parent=0 // pred_fallthru
    _
  // Predicated region
  $region10: #{_lambda_.55} parent=0 // pred_check
    _
  $region11: #{_lambda_.55} parent=0 // pred_check_branch
    %56 = sbr.rel (0) target = $region13
  $region12: #{_lambda_.55} parent=0 // pred_region
    _
  $region13: #{_lambda_.55} parent=0 // pred_fallthru
    _

// kernel: _lambda_.44
$region0: #{_lambda_.44}
  #allocation0 [shape = 'u32[]', space=smem, size = 0x4, offset = 0x4, fixed_abs, tag = 'smem constant byte address 0x4 - core index']
  #allocation1 [shape = 'u32[72,128]{1,0:T(1,128)}', space=vmem, size = 0x9000, scoped, tag = 'internal scratch']
  %s0 = inlined_call_operand.vmem [shape: f32[16,512], index: 0, kind: input, shape index: {}]
  %s1 = inlined_call_operand.vmem [shape: f32[8,16], index: 1, kind: input, shape index: {}]
  %s2 = inlined_call_operand.vmem [shape: f32[8,1], index: 2, kind: input, shape index: {}]
  %s3 = inlined_call_operand.vmem [shape: f32[8,512], index: 3, kind: output, shape index: {}]
  %s4 = sld [smem:[#allocation0]]
  $region22: #{_lambda_.44} parent=0
    _
  %s6 = ssub.s32 1, %s4
  %s7 = scalar_select 0, %s6, %s4
  // Predicated region
  $region2: #{_lambda_.44} parent=0 // pred_check
    _
  $region3: #{_lambda_.44} parent=0 // pred_check_branch
    %9 = sbr.rel (0) target = $region5
  $region4: #{_lambda_.44} parent=0 // pred_region
    _
  $region5: #{_lambda_.44} parent=0 // pred_fallthru
    _
  // Predicated region
  $region6: #{_lambda_.44} parent=0 // pred_check
    _
  $region7: #{_lambda_.44} parent=0 // pred_check_branch
    %11 = sbr.rel (0) target = $region9
  $region8: #{_lambda_.44} parent=0 // pred_region
    _
  $region9: #{_lambda_.44} parent=0 // pred_fallthru
    _
  // Predicated region
  $region10: #{_lambda_.44} parent=0 // pred_check
    _
  $region11: #{_lambda_.44} parent=0 // pred_check_branch
    %13 = sbr.rel (0) target = $region13
  $region12: #{_lambda_.44} parent=0 // pred_region
    _
  $region13: #{_lambda_.44} parent=0 // pred_fallthru
    _
  %v14 = vld [vmem:[%s0] sm:$0xff]
  %v15 = vld [vmem:[%s0 + $0x8] sm:$0xff]
  %v16 = vld [vmem:[%s0 + $0x10] sm:$0xff]
  %v17 = vld [vmem:[%s0 + $0x18] sm:$0xff]
  %v18 = vld [vmem:[%s0 + $0x20] sm:$0xff]
  %v19 = vld [vmem:[%s0 + $0x28] sm:$0xff]
  %v20 = vld [vmem:[%s0 + $0x30] sm:$0xff]
  %v21 = vld [vmem:[%s0 + $0x38] sm:$0xff]
  %v22 = vmax.f32 %v14, 0.0
  %v23 = vmax.f32 %v15, 0.0
  %v24 = vmax.f32 %v16, 0.0
  %v25 = vmax.f32 %v17, 0.0
  %v26 = vmax.f32 %v18, 0.0
  %v27 = vmax.f32 %v19, 0.0
  %v28 = vmax.f32 %v20, 0.0
  %v29 = vmax.f32 %v21, 0.0
  %v30 = vld [vmem:[%s1] sm:$0xff]
  %v31 = vld [vmem:[%s2] sm:$0xff]
  %33 = vset.pattern.permute.xlu0 0
  %34 = vperm.xlu0 %33, %v31
  %v35 = vpop.permute.xlu0 %34
  %vm37 = vcmask 130048
  %v39 = vsel %vm37, %v30, 0
  %41 = vmatpush.msra.mxu0 0.0
  %42 = vmatpush.msra.mxu0 0.0
  %43 = vmatpush.msra.mxu0 0.0
  %44 = vmatpush.msra.mxu0 0.0
  %45 = vmatpush.msra.mxu0 0.0
  %46 = vmatpush.msra.mxu0 0.0
  %47 = vmatpush.msra.mxu0 0.0
  %48 = vmatpush.msra.mxu0 0.0
  %49 = vmatpush.msra.mxu0 0.0
  %50 = vmatpush.msra.mxu0 0.0
  %51 = vmatpush.msra.mxu0 0.0
  %52 = vmatpush.msra.mxu0 0.0
  %53 = vmatpush.msra.mxu0 0.0
  %54 = vmatpush.msra.mxu0 0.0
  %55 = vmatpush.msra.mxu0 %v26
  %56 = vmatpush.msra.mxu0 %v22
  %57 = vmatmul.f32.gmra.mxu0 %v39
  %v58 = vpop.f32.mrf.mxu0
  %v59 = vadd.f32 %v35, %v58
  %60 = vdwg.mxu0
  %61 = vmatpush.msra.mxu0 0.0
  %62 = vmatpush.msra.mxu0 0.0
  %63 = vmatpush.msra.mxu0 0.0
  %64 = vmatpush.msra.mxu0 0.0
  %65 = vmatpush.msra.mxu0 0.0
  %66 = vmatpush.msra.mxu0 0.0
  %67 = vmatpush.msra.mxu0 0.0
  %68 = vmatpush.msra.mxu0 0.0
  %69 = vmatpush.msra.mxu0 0.0
  %70 = vmatpush.msra.mxu0 0.0
  %71 = vmatpush.msra.mxu0 0.0
  %72 = vmatpush.msra.mxu0 0.0
  %73 = vmatpush.msra.mxu0 0.0
  %74 = vmatpush.msra.mxu0 0.0
  %75 = vmatpush.msra.mxu0 %v27
  %76 = vmatpush.msra.mxu0 %v23
  %77 = vmatmul.f32.gmra.mxu0 %v39
  %v78 = vpop.f32.mrf.mxu0
  %v79 = vadd.f32 %v35, %v78
  %80 = vdwg.mxu0
  %81 = vmatpush.msra.mxu0 0.0
  %82 = vmatpush.msra.mxu0 0.0
  %83 = vmatpush.msra.mxu0 0.0
  %84 = vmatpush.msra.mxu0 0.0
  %85 = vmatpush.msra.mxu0 0.0
  %86 = vmatpush.msra.mxu0 0.0
  %87 = vmatpush.msra.mxu0 0.0
  %88 = vmatpush.msra.mxu0 0.0
  %89 = vmatpush.msra.mxu0 0.0
  %90 = vmatpush.msra.mxu0 0.0
  %91 = vmatpush.msra.mxu0 0.0
  %92 = vmatpush.msra.mxu0 0.0
  %93 = vmatpush.msra.mxu0 0.0
  %94 = vmatpush.msra.mxu0 0.0
  %95 = vmatpush.msra.mxu0 %v28
  %96 = vmatpush.msra.mxu0 %v24
  %97 = vmatmul.f32.gmra.mxu0 %v39
  %v98 = vpop.f32.mrf.mxu0
  %v99 = vadd.f32 %v35, %v98
  %100 = vdwg.mxu0
  %101 = vmatpush.msra.mxu0 0.0
  %102 = vmatpush.msra.mxu0 0.0
  %103 = vmatpush.msra.mxu0 0.0
  %104 = vmatpush.msra.mxu0 0.0
  %105 = vmatpush.msra.mxu0 0.0
  %106 = vmatpush.msra.mxu0 0.0
  %107 = vmatpush.msra.mxu0 0.0
  %108 = vmatpush.msra.mxu0 0.0
  %109 = vmatpush.msra.mxu0 0.0
  %110 = vmatpush.msra.mxu0 0.0
  %111 = vmatpush.msra.mxu0 0.0
  %112 = vmatpush.msra.mxu0 0.0
  %113 = vmatpush.msra.mxu0 0.0
  %114 = vmatpush.msra.mxu0 0.0
  %115 = vmatpush.msra.mxu0 %v29
  %116 = vmatpush.msra.mxu0 %v25
  %117 = vmatmul.f32.gmra.mxu0 %v39
  %v118 = vpop.f32.mrf.mxu0
  %v119 = vadd.f32 %v35, %v118
  %120 = vdwg.mxu0
  %121 = vst [vmem:[%s3] sm:$0xff] %v59
  %122 = vst [vmem:[%s3 + $0x8] sm:$0xff] %v79
  %123 = vst [vmem:[%s3 + $0x10] sm:$0xff] %v99
  %124 = vst [vmem:[%s3 + $0x18] sm:$0xff] %v119
  // Predicated region
  $region14: #{_lambda_.44} parent=0 // pred_check
    _
  $region15: #{_lambda_.44} parent=0 // pred_check_branch
    %126 = sbr.rel (0) target = $region17
  $region16: #{_lambda_.44} parent=0 // pred_region
    _
  $region17: #{_lambda_.44} parent=0 // pred_fallthru
    _
  // Predicated region
  $region18: #{_lambda_.44} parent=0 // pred_check
    _
  $region19: #{_lambda_.44} parent=0 // pred_check_branch
    %128 = sbr.rel (0) target = $region21
  $region20: #{_lambda_.44} parent=0 // pred_region
    _
  $region21: #{_lambda_.44} parent=0 // pred_fallthru
    _

// kernel: _lambda_.43
$region0: #{_lambda_.43}
  #allocation0 [shape = 'u32[]', space=smem, size = 0x4, offset = 0x4, fixed_abs, tag = 'smem constant byte address 0x4 - core index']
  #allocation1 [shape = 'u32[72,128]{1,0:T(1,128)}', space=vmem, size = 0x9000, scoped, tag = 'internal scratch']
  %s0 = inlined_call_operand.vmem [shape: f32[12,512], index: 0, kind: input, shape index: {}]
  %s1 = inlined_call_operand.vmem [shape: f32[8,12], index: 1, kind: input, shape index: {}]
  %s2 = inlined_call_operand.vmem [shape: f32[8,1], index: 2, kind: input, shape index: {}]
  %s3 = inlined_call_operand.vmem [shape: f32[8,512], index: 3, kind: output, shape index: {}]
  %s4 = sld [smem:[#allocation0]]
  $region22: #{_lambda_.43} parent=0
    _
  %s6 = ssub.s32 1, %s4
  %s7 = scalar_select 0, %s6, %s4
  // Predicated region
  $region2: #{_lambda_.43} parent=0 // pred_check
    _
  $region3: #{_lambda_.43} parent=0 // pred_check_branch
    %9 = sbr.rel (0) target = $region5
  $region4: #{_lambda_.43} parent=0 // pred_region
    _
  $region5: #{_lambda_.43} parent=0 // pred_fallthru
    _
  // Predicated region
  $region6: #{_lambda_.43} parent=0 // pred_check
    _
  $region7: #{_lambda_.43} parent=0 // pred_check_branch
    %11 = sbr.rel (0) target = $region9
  $region8: #{_lambda_.43} parent=0 // pred_region
    _
  $region9: #{_lambda_.43} parent=0 // pred_fallthru
    _
  // Predicated region
  $region10: #{_lambda_.43} parent=0 // pred_check
    _
  $region11: #{_lambda_.43} parent=0 // pred_check_branch
    %13 = sbr.rel (0) target = $region13
  $region12: #{_lambda_.43} parent=0 // pred_region
    _
  $region13: #{_lambda_.43} parent=0 // pred_fallthru
    _
  %v14 = vld [vmem:[%s0] sm:$0xff]
  %v15 = vld [vmem:[%s0 + $0x8] sm:$0xff]
  %v16 = vld [vmem:[%s0 + $0x10] sm:$0xff]
  %v17 = vld [vmem:[%s0 + $0x18] sm:$0xff]
  %v18 = vld [vmem:[%s0 + $0x20] sm:$0xf]
  %v19 = vld [vmem:[%s0 + $0x28] sm:$0xf]
  %v20 = vld [vmem:[%s0 + $0x30] sm:$0xf]
  %v21 = vld [vmem:[%s0 + $0x38] sm:$0xf]
  %v22 = vmax.f32 %v14, 0.0
  %v23 = vmax.f32 %v15, 0.0
  %v24 = vmax.f32 %v16, 0.0
  %v25 = vmax.f32 %v17, 0.0
  %v26 = vmax.f32 %v18, 0.0
  %v27 = vmax.f32 %v19, 0.0
  %v28 = vmax.f32 %v20, 0.0
  %v29 = vmax.f32 %v21, 0.0
  %v30 = vld [vmem:[%s1] sm:$0xff]
  %v31 = vld [vmem:[%s2] sm:$0xff]
  %33 = vset.pattern.permute.xlu0 0
  %34 = vperm.xlu0 %33, %v31
  %v35 = vpop.permute.xlu0 %34
  %vm37 = vcmask 97280
  %v39 = vsel %vm37, %v30, 0
  %vm41 = vcmask 1043456
  %v43 = vsel %vm41, %v26, 0
  %v46 = vsel %vm41, %v27, 0
  %v49 = vsel %vm41, %v28, 0
  %v52 = vsel %vm41, %v29, 0
  %54 = vmatpush.msra.mxu0 0.0
  %55 = vmatpush.msra.mxu0 0.0
  %56 = vmatpush.msra.mxu0 0.0
  %57 = vmatpush.msra.mxu0 0.0
  %58 = vmatpush.msra.mxu0 0.0
  %59 = vmatpush.msra.mxu0 0.0
  %60 = vmatpush.msra.mxu0 0.0
  %61 = vmatpush.msra.mxu0 0.0
  %62 = vmatpush.msra.mxu0 0.0
  %63 = vmatpush.msra.mxu0 0.0
  %64 = vmatpush.msra.mxu0 0.0
  %65 = vmatpush.msra.mxu0 0.0
  %66 = vmatpush.msra.mxu0 0.0
  %67 = vmatpush.msra.mxu0 0.0
  %68 = vmatpush.msra.mxu0 %v43
  %69 = vmatpush.msra.mxu0 %v22
  %70 = vmatmul.f32.gmra.mxu0 %v39
  %v71 = vpop.f32.mrf.mxu0
  %v72 = vadd.f32 %v35, %v71
  %73 = vdwg.mxu0
  %74 = vmatpush.msra.mxu0 0.0
  %75 = vmatpush.msra.mxu0 0.0
  %76 = vmatpush.msra.mxu0 0.0
  %77 = vmatpush.msra.mxu0 0.0
  %78 = vmatpush.msra.mxu0 0.0
  %79 = vmatpush.msra.mxu0 0.0
  %80 = vmatpush.msra.mxu0 0.0
  %81 = vmatpush.msra.mxu0 0.0
  %82 = vmatpush.msra.mxu0 0.0
  %83 = vmatpush.msra.mxu0 0.0
  %84 = vmatpush.msra.mxu0 0.0
  %85 = vmatpush.msra.mxu0 0.0
  %86 = vmatpush.msra.mxu0 0.0
  %87 = vmatpush.msra.mxu0 0.0
  %88 = vmatpush.msra.mxu0 %v46
  %89 = vmatpush.msra.mxu0 %v23
  %90 = vmatmul.f32.gmra.mxu0 %v39
  %v91 = vpop.f32.mrf.mxu0
  %v92 = vadd.f32 %v35, %v91
  %93 = vdwg.mxu0
  %94 = vmatpush.msra.mxu0 0.0
  %95 = vmatpush.msra.mxu0 0.0
  %96 = vmatpush.msra.mxu0 0.0
  %97 = vmatpush.msra.mxu0 0.0
  %98 = vmatpush.msra.mxu0 0.0
  %99 = vmatpush.msra.mxu0 0.0
  %100 = vmatpush.msra.mxu0 0.0
  %101 = vmatpush.msra.mxu0 0.0
  %102 = vmatpush.msra.mxu0 0.0
  %103 = vmatpush.msra.mxu0 0.0
  %104 = vmatpush.msra.mxu0 0.0
  %105 = vmatpush.msra.mxu0 0.0
  %106 = vmatpush.msra.mxu0 0.0
  %107 = vmatpush.msra.mxu0 0.0
  %108 = vmatpush.msra.mxu0 %v49
  %109 = vmatpush.msra.mxu0 %v24
  %110 = vmatmul.f32.gmra.mxu0 %v39
  %v111 = vpop.f32.mrf.mxu0
  %v112 = vadd.f32 %v35, %v111
  %113 = vdwg.mxu0
  %114 = vmatpush.msra.mxu0 0.0
  %115 = vmatpush.msra.mxu0 0.0
  %116 = vmatpush.msra.mxu0 0.0
  %117 = vmatpush.msra.mxu0 0.0
  %118 = vmatpush.msra.mxu0 0.0
  %119 = vmatpush.msra.mxu0 0.0
  %120 = vmatpush.msra.mxu0 0.0
  %121 = vmatpush.msra.mxu0 0.0
  %122 = vmatpush.msra.mxu0 0.0
  %123 = vmatpush.msra.mxu0 0.0
  %124 = vmatpush.msra.mxu0 0.0
  %125 = vmatpush.msra.mxu0 0.0
  %126 = vmatpush.msra.mxu0 0.0
  %127 = vmatpush.msra.mxu0 0.0
  %128 = vmatpush.msra.mxu0 %v52
  %129 = vmatpush.msra.mxu0 %v25
  %130 = vmatmul.f32.gmra.mxu0 %v39
  %v131 = vpop.f32.mrf.mxu0
  %v132 = vadd.f32 %v35, %v131
  %133 = vdwg.mxu0
  %134 = vst [vmem:[%s3] sm:$0xff] %v72
  %135 = vst [vmem:[%s3 + $0x8] sm:$0xff] %v92
  %136 = vst [vmem:[%s3 + $0x10] sm:$0xff] %v112
  %137 = vst [vmem:[%s3 + $0x18] sm:$0xff] %v132
  // Predicated region
  $region14: #{_lambda_.43} parent=0 // pred_check
    _
  $region15: #{_lambda_.43} parent=0 // pred_check_branch
    %139 = sbr.rel (0) target = $region17
  $region16: #{_lambda_.43} parent=0 // pred_region
    _
  $region17: #{_lambda_.43} parent=0 // pred_fallthru
    _
  // Predicated region
  $region18: #{_lambda_.43} parent=0 // pred_check
    _
  $region19: #{_lambda_.43} parent=0 // pred_check_branch
    %141 = sbr.rel (0) target = $region21
  $region20: #{_lambda_.43} parent=0 // pred_region
    _
  $region21: #{_lambda_.43} parent=0 // pred_fallthru
    _

// kernel: _lambda_.46
$region0: #{_lambda_.46}
  #allocation0 [shape = 'u32[]', space=smem, size = 0x4, offset = 0x4, fixed_abs, tag = 'smem constant byte address 0x4 - core index']
  #allocation1 [shape = 'u32[72,128]{1,0:T(1,128)}', space=vmem, size = 0x9000, scoped, tag = 'internal scratch']
  %s0 = inlined_call_operand.vmem [shape: f32[9,8,128], index: 0, kind: input, shape index: {}]
  %s1 = inlined_call_operand.vmem [shape: f32[9,8,1], index: 1, kind: input, shape index: {}]
  %s2 = inlined_call_operand.vmem [shape: f32[8,8], index: 2, kind: input, shape index: {}]
  %s3 = inlined_call_operand.vmem [shape: f32[8,1], index: 3, kind: input, shape index: {}]
  %s4 = inlined_call_operand.vmem [shape: f32[8,128], index: 4, kind: output, shape index: {}]
  %s5 = sld [smem:[#allocation0]]
  $region26: #{_lambda_.46} parent=0
    _
  %s7 = ssub.s32 1, %s5
  %s8 = scalar_select 0, %s7, %s5
  // Predicated region
  $region2: #{_lambda_.46} parent=0 // pred_check
    _
  $region3: #{_lambda_.46} parent=0 // pred_check_branch
    %10 = sbr.rel (0) target = $region5
  $region4: #{_lambda_.46} parent=0 // pred_region
    _
  $region5: #{_lambda_.46} parent=0 // pred_fallthru
    _
  // Predicated region
  $region6: #{_lambda_.46} parent=0 // pred_check
    _
  $region7: #{_lambda_.46} parent=0 // pred_check_branch
    %12 = sbr.rel (0) target = $region9
  $region8: #{_lambda_.46} parent=0 // pred_region
    _
  $region9: #{_lambda_.46} parent=0 // pred_fallthru
    _
  // Predicated region
  $region10: #{_lambda_.46} parent=0 // pred_check
    _
  $region11: #{_lambda_.46} parent=0 // pred_check_branch
    %14 = sbr.rel (0) target = $region13
  $region12: #{_lambda_.46} parent=0 // pred_region
    _
  $region13: #{_lambda_.46} parent=0 // pred_fallthru
    _
  // Predicated region
  $region14: #{_lambda_.46} parent=0 // pred_check
    _
  $region15: #{_lambda_.46} parent=0 // pred_check_branch
    %16 = sbr.rel (0) target = $region17
  $region16: #{_lambda_.46} parent=0 // pred_region
    _
  $region17: #{_lambda_.46} parent=0 // pred_fallthru
    _
  %v17 = vld [vmem:[%s1] sm:$0xff]
  %v18 = vld [vmem:[%s0] sm:$0xff]
  %v19 = vmax.f32 %v18, 0.0
  %21 = vset.pattern.permute.xlu0 0
  %22 = vperm.xlu0 %21, %v17
  %v23 = vpop.permute.xlu0 %22
  %v25 = vmul.f32 %v23, %v19
  %s26 = scalar_lea.vmem %s1, 8
  %v27 = vld [vmem:[%s26] sm:$0xff]
  %s28 = scalar_lea.vmem %s0, 8
  %v29 = vld [vmem:[%s28] sm:$0xff]
  %v30 = vmax.f32 %v29, 0.0
  %32 = vset.pattern.permute.xlu0 0
  %33 = vperm.xlu0 %32, %v27
  %v34 = vpop.permute.xlu0 %33
  %v36 = vmul.f32 %v34, %v30
  %v37 = vadd.f32 %v25, %v36
  %s38 = scalar_lea.vmem %s1, 16
  %v39 = vld [vmem:[%s38] sm:$0xff]
  %s40 = scalar_lea.vmem %s0, 16
  %v41 = vld [vmem:[%s40] sm:$0xff]
  %v42 = vmax.f32 %v41, 0.0
  %44 = vset.pattern.permute.xlu0 0
  %45 = vperm.xlu0 %44, %v39
  %v46 = vpop.permute.xlu0 %45
  %v48 = vmul.f32 %v46, %v42
  %v49 = vadd.f32 %v37, %v48
  %s50 = scalar_lea.vmem %s1, 24
  %v51 = vld [vmem:[%s50] sm:$0xff]
  %s52 = scalar_lea.vmem %s0, 24
  %v53 = vld [vmem:[%s52] sm:$0xff]
  %v54 = vmax.f32 %v53, 0.0
  %56 = vset.pattern.permute.xlu0 0
  %57 = vperm.xlu0 %56, %v51
  %v58 = vpop.permute.xlu0 %57
  %v60 = vmul.f32 %v58, %v54
  %v61 = vadd.f32 %v49, %v60
  %s62 = scalar_lea.vmem %s1, 32
  %v63 = vld [vmem:[%s62] sm:$0xff]
  %s64 = scalar_lea.vmem %s0, 32
  %v65 = vld [vmem:[%s64] sm:$0xff]
  %v66 = vmax.f32 %v65, 0.0
  %68 = vset.pattern.permute.xlu0 0
  %69 = vperm.xlu0 %68, %v63
  %v70 = vpop.permute.xlu0 %69
  %v72 = vmul.f32 %v70, %v66
  %v73 = vadd.f32 %v61, %v72
  %s74 = scalar_lea.vmem %s1, 40
  %v75 = vld [vmem:[%s74] sm:$0xff]
  %s76 = scalar_lea.vmem %s0, 40
  %v77 = vld [vmem:[%s76] sm:$0xff]
  %v78 = vmax.f32 %v77, 0.0
  %80 = vset.pattern.permute.xlu0 0
  %81 = vperm.xlu0 %80, %v75
  %v82 = vpop.permute.xlu0 %81
  %v84 = vmul.f32 %v82, %v78
  %v85 = vadd.f32 %v73, %v84
  %s86 = scalar_lea.vmem %s1, 48
  %v87 = vld [vmem:[%s86] sm:$0xff]
  %s88 = scalar_lea.vmem %s0, 48
  %v89 = vld [vmem:[%s88] sm:$0xff]
  %v90 = vmax.f32 %v89, 0.0
  %92 = vset.pattern.permute.xlu0 0
  %93 = vperm.xlu0 %92, %v87
  %v94 = vpop.permute.xlu0 %93
  %v96 = vmul.f32 %v94, %v90
  %v97 = vadd.f32 %v85, %v96
  %s98 = scalar_lea.vmem %s1, 56
  %v99 = vld [vmem:[%s98] sm:$0xff]
  %s100 = scalar_lea.vmem %s0, 56
  %v101 = vld [vmem:[%s100] sm:$0xff]
  %v102 = vmax.f32 %v101, 0.0
  %104 = vset.pattern.permute.xlu0 0
  %105 = vperm.xlu0 %104, %v99
  %v106 = vpop.permute.xlu0 %105
  %v108 = vmul.f32 %v106, %v102
  %v109 = vadd.f32 %v97, %v108
  %s110 = scalar_lea.vmem %s1, 64
  %v111 = vld [vmem:[%s110] sm:$0xff]
  %s112 = scalar_lea.vmem %s0, 64
  %v113 = vld [vmem:[%s112] sm:$0xff]
  %v114 = vmax.f32 %v113, 0.0
  %116 = vset.pattern.permute.xlu0 0
  %117 = vperm.xlu0 %116, %v111
  %v118 = vpop.permute.xlu0 %117
  %v120 = vmul.f32 %v118, %v114
  %v121 = vadd.f32 %v109, %v120
  %v122 = vld [vmem:[%s2] sm:$0xff]
  %v123 = vld [vmem:[%s3] sm:$0xff]
  %125 = vset.pattern.permute.xlu0 0
  %126 = vperm.xlu0 %125, %v123
  %v127 = vpop.permute.xlu0 %126
  %vm129 = vcmask 64512
  %v131 = vsel %vm129, %v122, 0
  %133 = vmatpush.msra.mxu0 0.0
  %134 = vmatpush.msra.mxu0 0.0
  %135 = vmatpush.msra.mxu0 0.0
  %136 = vmatpush.msra.mxu0 0.0
  %137 = vmatpush.msra.mxu0 0.0
  %138 = vmatpush.msra.mxu0 0.0
  %139 = vmatpush.msra.mxu0 0.0
  %140 = vmatpush.msra.mxu0 0.0
  %141 = vmatpush.msra.mxu0 0.0
  %142 = vmatpush.msra.mxu0 0.0
  %143 = vmatpush.msra.mxu0 0.0
  %144 = vmatpush.msra.mxu0 0.0
  %145 = vmatpush.msra.mxu0 0.0
  %146 = vmatpush.msra.mxu0 0.0
  %147 = vmatpush.msra.mxu0 0.0
  %148 = vmatpush.msra.mxu0 %v121
  %149 = vmatmul.f32.gmra.mxu0 %v131
  %v150 = vpop.f32.mrf.mxu0
  %v151 = vadd.f32 %v127, %v150
  %152 = vdwg.mxu0
  %153 = vst [vmem:[%s4] sm:$0xff] %v151
  // Predicated region
  $region18: #{_lambda_.46} parent=0 // pred_check
    _
  $region19: #{_lambda_.46} parent=0 // pred_check_branch
    %155 = sbr.rel (0) target = $region21
  $region20: #{_lambda_.46} parent=0 // pred_region
    _
  $region21: #{_lambda_.46} parent=0 // pred_fallthru
    _
  // Predicated region
  $region22: #{_lambda_.46} parent=0 // pred_check
    _
  $region23: #{_lambda_.46} parent=0 // pred_check_branch
    %157 = sbr.rel (0) target = $region25
  $region24: #{_lambda_.46} parent=0 // pred_region
    _
  $region25: #{_lambda_.46} parent=0 // pred_fallthru
    _

// kernel: _lambda_.45
$region0: #{_lambda_.45}
  #allocation0 [shape = 'u32[]', space=smem, size = 0x4, offset = 0x4, fixed_abs, tag = 'smem constant byte address 0x4 - core index']
  #allocation1 [shape = 'u32[72,128]{1,0:T(1,128)}', space=vmem, size = 0x9000, scoped, tag = 'internal scratch']
  %s0 = inlined_call_operand.vmem [shape: f32[9,8,128], index: 0, kind: input, shape index: {}]
  %s1 = inlined_call_operand.vmem [shape: f32[8,128], index: 1, kind: output, shape index: {}]
  %s2 = sld [smem:[#allocation0]]
  $region14: #{_lambda_.45} parent=0
    _
  %s4 = ssub.s32 1, %s2
  %s5 = scalar_select 0, %s4, %s2
  // Predicated region
  $region2: #{_lambda_.45} parent=0 // pred_check
    _
  $region3: #{_lambda_.45} parent=0 // pred_check_branch
    %7 = sbr.rel (0) target = $region5
  $region4: #{_lambda_.45} parent=0 // pred_region
    _
  $region5: #{_lambda_.45} parent=0 // pred_fallthru
    _
  %v8 = vld [vmem:[%s0] sm:$0xff]
  %s9 = scalar_lea.vmem %s0, 8
  %v10 = vld [vmem:[%s9] sm:$0xff]
  %v11 = vmax.f32 %v8, %v10
  %s12 = scalar_lea.vmem %s0, 16
  %v13 = vld [vmem:[%s12] sm:$0xff]
  %v14 = vmax.f32 %v11, %v13
  %s15 = scalar_lea.vmem %s0, 24
  %v16 = vld [vmem:[%s15] sm:$0xff]
  %v17 = vmax.f32 %v14, %v16
  %s18 = scalar_lea.vmem %s0, 32
  %v19 = vld [vmem:[%s18] sm:$0xff]
  %v20 = vmax.f32 %v17, %v19
  %s21 = scalar_lea.vmem %s0, 40
  %v22 = vld [vmem:[%s21] sm:$0xff]
  %v23 = vmax.f32 %v20, %v22
  %s24 = scalar_lea.vmem %s0, 48
  %v25 = vld [vmem:[%s24] sm:$0xff]
  %v26 = vmax.f32 %v23, %v25
  %s27 = scalar_lea.vmem %s0, 56
  %v28 = vld [vmem:[%s27] sm:$0xff]
  %v29 = vmax.f32 %v26, %v28
  %s30 = scalar_lea.vmem %s0, 64
  %v31 = vld [vmem:[%s30] sm:$0xff]
  %v32 = vmax.f32 %v29, %v31
  %33 = vst [vmem:[%s1] sm:$0xff] %v32
  // Predicated region
  $region6: #{_lambda_.45} parent=0 // pred_check
    _
  $region7: #{_lambda_.45} parent=0 // pred_check_branch
    %35 = sbr.rel (0) target = $region9
  $region8: #{_lambda_.45} parent=0 // pred_region
    _
  $region9: #{_lambda_.45} parent=0 // pred_fallthru
    _
  // Predicated region
  $region10: #{_lambda_.45} parent=0 // pred_check
    _
  $region11: #{_lambda_.45} parent=0 // pred_check_branch
    %37 = sbr.rel (0) target = $region13
  $region12: #{_lambda_.45} parent=0 // pred_region
    _
  $region13: #{_lambda_.45} parent=0 // pred_fallthru
    _

// kernel: _lambda_.48
$region0: #{_lambda_.48}
  #allocation0 [shape = 'u32[]', space=smem, size = 0x4, offset = 0x4, fixed_abs, tag = 'smem constant byte address 0x4 - core index']
  #allocation1 [shape = 'u32[72,128]{1,0:T(1,128)}', space=vmem, size = 0x9000, scoped, tag = 'internal scratch']
  %s0 = inlined_call_operand.vmem [shape: f32[9,8,128], index: 0, kind: input, shape index: {}]
  %s1 = inlined_call_operand.vmem [shape: f32[1,128], index: 1, kind: input, shape index: {}]
  %s2 = inlined_call_operand.vmem [shape: f32[8,128], index: 2, kind: input, shape index: {}]
  %s3 = inlined_call_operand.vmem [shape: f32[8,128], index: 3, kind: output, shape index: {}]
  %s4 = sld [smem:[#allocation0]]
  $region22: #{_lambda_.48} parent=0
    _
  %s6 = ssub.s32 1, %s4
  %s7 = scalar_select 0, %s6, %s4
  // Predicated region
  $region2: #{_lambda_.48} parent=0 // pred_check
    _
  $region3: #{_lambda_.48} parent=0 // pred_check_branch
    %9 = sbr.rel (0) target = $region5
  $region4: #{_lambda_.48} parent=0 // pred_region
    _
  $region5: #{_lambda_.48} parent=0 // pred_fallthru
    _
  // Predicated region
  $region6: #{_lambda_.48} parent=0 // pred_check
    _
  $region7: #{_lambda_.48} parent=0 // pred_check_branch
    %11 = sbr.rel (0) target = $region9
  $region8: #{_lambda_.48} parent=0 // pred_region
    _
  $region9: #{_lambda_.48} parent=0 // pred_fallthru
    _
  // Predicated region
  $region10: #{_lambda_.48} parent=0 // pred_check
    _
  $region11: #{_lambda_.48} parent=0 // pred_check_branch
    %13 = sbr.rel (0) target = $region13
  $region12: #{_lambda_.48} parent=0 // pred_region
    _
  $region13: #{_lambda_.48} parent=0 // pred_fallthru
    _
  %v14 = vld [vmem:[%s0] sm:$0xff]
  %s15 = scalar_lea.vmem %s0, 8
  %v16 = vld [vmem:[%s15] sm:$0xff]
  %v17 = vadd.f32 %v14, %v16
  %s18 = scalar_lea.vmem %s0, 16
  %v19 = vld [vmem:[%s18] sm:$0xff]
  %v20 = vadd.f32 %v17, %v19
  %s21 = scalar_lea.vmem %s0, 24
  %v22 = vld [vmem:[%s21] sm:$0xff]
  %v23 = vadd.f32 %v20, %v22
  %s24 = scalar_lea.vmem %s0, 32
  %v25 = vld [vmem:[%s24] sm:$0xff]
  %v26 = vadd.f32 %v23, %v25
  %s27 = scalar_lea.vmem %s0, 40
  %v28 = vld [vmem:[%s27] sm:$0xff]
  %v29 = vadd.f32 %v26, %v28
  %s30 = scalar_lea.vmem %s0, 48
  %v31 = vld [vmem:[%s30] sm:$0xff]
  %v32 = vadd.f32 %v29, %v31
  %s33 = scalar_lea.vmem %s0, 56
  %v34 = vld [vmem:[%s33] sm:$0xff]
  %v35 = vadd.f32 %v32, %v34
  %s36 = scalar_lea.vmem %s0, 64
  %v37 = vld [vmem:[%s36] sm:$0xff]
  %v38 = vadd.f32 %v35, %v37
  %v39 = vld [vmem:[%s1] sm:$0x1]
  %v41 = vperm.slane %v39, 0
  %v43 = vmul.f32 %v38, %v41
  %v44 = vld [vmem:[%s2] sm:$0xff]
  %v45 = vadd.f32 %v43, %v44
  %46 = vst [vmem:[%s3] sm:$0xff] %v45
  // Predicated region
  $region14: #{_lambda_.48} parent=0 // pred_check
    _
  $region15: #{_lambda_.48} parent=0 // pred_check_branch
    %48 = sbr.rel (0) target = $region17
  $region16: #{_lambda_.48} parent=0 // pred_region
    _
  $region17: #{_lambda_.48} parent=0 // pred_fallthru
    _
  // Predicated region
  $region18: #{_lambda_.48} parent=0 // pred_check
    _
  $region19: #{_lambda_.48} parent=0 // pred_check_branch
    %50 = sbr.rel (0) target = $region21
  $region20: #{_lambda_.48} parent=0 // pred_region
    _
  $region21: #{_lambda_.48} parent=0 // pred_fallthru
    _

// kernel: _lambda_.47
$region0: #{_lambda_.47}
  #allocation0 [shape = 'u32[]', space=smem, size = 0x4, offset = 0x4, fixed_abs, tag = 'smem constant byte address 0x4 - core index']
  #allocation1 [shape = 'u32[72,128]{1,0:T(1,128)}', space=vmem, size = 0x9000, scoped, tag = 'internal scratch']
  %s0 = inlined_call_operand.vmem [shape: f32[9,8,128], index: 0, kind: input, shape index: {}]
  %s1 = inlined_call_operand.vmem [shape: f32[9,8,1], index: 1, kind: input, shape index: {}]
  %s2 = inlined_call_operand.vmem [shape: f32[8,8], index: 2, kind: input, shape index: {}]
  %s3 = inlined_call_operand.vmem [shape: f32[8,1], index: 3, kind: input, shape index: {}]
  %s4 = inlined_call_operand.vmem [shape: f32[8,128], index: 4, kind: input, shape index: {}]
  %s5 = inlined_call_operand.vmem [shape: f32[8,128], index: 5, kind: output, shape index: {}]
  %s6 = sld [smem:[#allocation0]]
  $region30: #{_lambda_.47} parent=0
    _
  %s8 = ssub.s32 1, %s6
  %s9 = scalar_select 0, %s8, %s6
  // Predicated region
  $region2: #{_lambda_.47} parent=0 // pred_check
    _
  $region3: #{_lambda_.47} parent=0 // pred_check_branch
    %11 = sbr.rel (0) target = $region5
  $region4: #{_lambda_.47} parent=0 // pred_region
    _
  $region5: #{_lambda_.47} parent=0 // pred_fallthru
    _
  // Predicated region
  $region6: #{_lambda_.47} parent=0 // pred_check
    _
  $region7: #{_lambda_.47} parent=0 // pred_check_branch
    %13 = sbr.rel (0) target = $region9
  $region8: #{_lambda_.47} parent=0 // pred_region
    _
  $region9: #{_lambda_.47} parent=0 // pred_fallthru
    _
  // Predicated region
  $region10: #{_lambda_.47} parent=0 // pred_check
    _
  $region11: #{_lambda_.47} parent=0 // pred_check_branch
    %15 = sbr.rel (0) target = $region13
  $region12: #{_lambda_.47} parent=0 // pred_region
    _
  $region13: #{_lambda_.47} parent=0 // pred_fallthru
    _
  // Predicated region
  $region14: #{_lambda_.47} parent=0 // pred_check
    _
  $region15: #{_lambda_.47} parent=0 // pred_check_branch
    %17 = sbr.rel (0) target = $region17
  $region16: #{_lambda_.47} parent=0 // pred_region
    _
  $region17: #{_lambda_.47} parent=0 // pred_fallthru
    _
  // Predicated region
  $region18: #{_lambda_.47} parent=0 // pred_check
    _
  $region19: #{_lambda_.47} parent=0 // pred_check_branch
    %19 = sbr.rel (0) target = $region21
  $region20: #{_lambda_.47} parent=0 // pred_region
    _
  $region21: #{_lambda_.47} parent=0 // pred_fallthru
    _
  %v20 = vld [vmem:[%s1] sm:$0xff]
  %v21 = vld [vmem:[%s0] sm:$0xff]
  %v22 = vmax.f32 %v21, 0.0
  %24 = vset.pattern.permute.xlu0 0
  %25 = vperm.xlu0 %24, %v20
  %v26 = vpop.permute.xlu0 %25
  %v28 = vmul.f32 %v26, %v22
  %s29 = scalar_lea.vmem %s1, 8
  %v30 = vld [vmem:[%s29] sm:$0xff]
  %s31 = scalar_lea.vmem %s0, 8
  %v32 = vld [vmem:[%s31] sm:$0xff]
  %v33 = vmax.f32 %v32, 0.0
  %35 = vset.pattern.permute.xlu0 0
  %36 = vperm.xlu0 %35, %v30
  %v37 = vpop.permute.xlu0 %36
  %v39 = vmul.f32 %v37, %v33
  %v40 = vadd.f32 %v28, %v39
  %s41 = scalar_lea.vmem %s1, 16
  %v42 = vld [vmem:[%s41] sm:$0xff]
  %s43 = scalar_lea.vmem %s0, 16
  %v44 = vld [vmem:[%s43] sm:$0xff]
  %v45 = vmax.f32 %v44, 0.0
  %47 = vset.pattern.permute.xlu0 0
  %48 = vperm.xlu0 %47, %v42
  %v49 = vpop.permute.xlu0 %48
  %v51 = vmul.f32 %v49, %v45
  %v52 = vadd.f32 %v40, %v51
  %s53 = scalar_lea.vmem %s1, 24
  %v54 = vld [vmem:[%s53] sm:$0xff]
  %s55 = scalar_lea.vmem %s0, 24
  %v56 = vld [vmem:[%s55] sm:$0xff]
  %v57 = vmax.f32 %v56, 0.0
  %59 = vset.pattern.permute.xlu0 0
  %60 = vperm.xlu0 %59, %v54
  %v61 = vpop.permute.xlu0 %60
  %v63 = vmul.f32 %v61, %v57
  %v64 = vadd.f32 %v52, %v63
  %s65 = scalar_lea.vmem %s1, 32
  %v66 = vld [vmem:[%s65] sm:$0xff]
  %s67 = scalar_lea.vmem %s0, 32
  %v68 = vld [vmem:[%s67] sm:$0xff]
  %v69 = vmax.f32 %v68, 0.0
  %71 = vset.pattern.permute.xlu0 0
  %72 = vperm.xlu0 %71, %v66
  %v73 = vpop.permute.xlu0 %72
  %v75 = vmul.f32 %v73, %v69
  %v76 = vadd.f32 %v64, %v75
  %s77 = scalar_lea.vmem %s1, 40
  %v78 = vld [vmem:[%s77] sm:$0xff]
  %s79 = scalar_lea.vmem %s0, 40
  %v80 = vld [vmem:[%s79] sm:$0xff]
  %v81 = vmax.f32 %v80, 0.0
  %83 = vset.pattern.permute.xlu0 0
  %84 = vperm.xlu0 %83, %v78
  %v85 = vpop.permute.xlu0 %84
  %v87 = vmul.f32 %v85, %v81
  %v88 = vadd.f32 %v76, %v87
  %s89 = scalar_lea.vmem %s1, 48
  %v90 = vld [vmem:[%s89] sm:$0xff]
  %s91 = scalar_lea.vmem %s0, 48
  %v92 = vld [vmem:[%s91] sm:$0xff]
  %v93 = vmax.f32 %v92, 0.0
  %95 = vset.pattern.permute.xlu0 0
  %96 = vperm.xlu0 %95, %v90
  %v97 = vpop.permute.xlu0 %96
  %v99 = vmul.f32 %v97, %v93
  %v100 = vadd.f32 %v88, %v99
  %s101 = scalar_lea.vmem %s1, 56
  %v102 = vld [vmem:[%s101] sm:$0xff]
  %s103 = scalar_lea.vmem %s0, 56
  %v104 = vld [vmem:[%s103] sm:$0xff]
  %v105 = vmax.f32 %v104, 0.0
  %107 = vset.pattern.permute.xlu0 0
  %108 = vperm.xlu0 %107, %v102
  %v109 = vpop.permute.xlu0 %108
  %v111 = vmul.f32 %v109, %v105
  %v112 = vadd.f32 %v100, %v111
  %s113 = scalar_lea.vmem %s1, 64
  %v114 = vld [vmem:[%s113] sm:$0xff]
  %s115 = scalar_lea.vmem %s0, 64
  %v116 = vld [vmem:[%s115] sm:$0xff]
  %v117 = vmax.f32 %v116, 0.0
  %119 = vset.pattern.permute.xlu0 0
  %120 = vperm.xlu0 %119, %v114
  %v121 = vpop.permute.xlu0 %120
  %v123 = vmul.f32 %v121, %v117
  %v124 = vadd.f32 %v112, %v123
  %v125 = vld [vmem:[%s2] sm:$0xff]
  %v126 = vld [vmem:[%s3] sm:$0xff]
  %128 = vset.pattern.permute.xlu0 0
  %129 = vperm.xlu0 %128, %v126
  %v130 = vpop.permute.xlu0 %129
  %vm132 = vcmask 64512
  %v134 = vsel %vm132, %v125, 0
  %136 = vmatpush.msra.mxu0 0.0
  %137 = vmatpush.msra.mxu0 0.0
  %138 = vmatpush.msra.mxu0 0.0
  %139 = vmatpush.msra.mxu0 0.0
  %140 = vmatpush.msra.mxu0 0.0
  %141 = vmatpush.msra.mxu0 0.0
  %142 = vmatpush.msra.mxu0 0.0
  %143 = vmatpush.msra.mxu0 0.0
  %144 = vmatpush.msra.mxu0 0.0
  %145 = vmatpush.msra.mxu0 0.0
  %146 = vmatpush.msra.mxu0 0.0
  %147 = vmatpush.msra.mxu0 0.0
  %148 = vmatpush.msra.mxu0 0.0
  %149 = vmatpush.msra.mxu0 0.0
  %150 = vmatpush.msra.mxu0 0.0
  %151 = vmatpush.msra.mxu0 %v124
  %152 = vmatmul.f32.gmra.mxu0 %v134
  %v153 = vpop.f32.mrf.mxu0
  %v154 = vadd.f32 %v130, %v153
  %155 = vdwg.mxu0
  %v156 = vld [vmem:[%s4] sm:$0xff]
  %v157 = vadd.f32 %v154, %v156
  %158 = vst [vmem:[%s5] sm:$0xff] %v157
  // Predicated region
  $region22: #{_lambda_.47} parent=0 // pred_check
    _
  $region23: #{_lambda_.47} parent=0 // pred_check_branch
    %160 = sbr.rel (0) target = $region25
  $region24: #{_lambda_.47} parent=0 // pred_region
    _
  $region25: #{_lambda_.47} parent=0 // pred_fallthru
    _
  // Predicated region
  $region26: #{_lambda_.47} parent=0 // pred_check
    _
  $region27: #{_lambda_.47} parent=0 // pred_check_branch
    %162 = sbr.rel (0) target = $region29
  $region28: #{_lambda_.47} parent=0 // pred_region
    _
  $region29: #{_lambda_.47} parent=0 // pred_fallthru
    _

// kernel: _lambda_.49
$region0: #{_lambda_.49}
  #allocation0 [shape = 'u32[]', space=smem, size = 0x4, offset = 0x4, fixed_abs, tag = 'smem constant byte address 0x4 - core index']
  #allocation1 [shape = 'u32[72,128]{1,0:T(1,128)}', space=vmem, size = 0x9000, scoped, tag = 'internal scratch']
  %s0 = inlined_call_operand.vmem [shape: f32[9,8,128], index: 0, kind: input, shape index: {}]
  %s1 = inlined_call_operand.vmem [shape: f32[8,128], index: 1, kind: input, shape index: {}]
  %s2 = inlined_call_operand.vmem [shape: f32[8,128], index: 2, kind: output, shape index: {}]
  %s3 = sld [smem:[#allocation0]]
  $region18: #{_lambda_.49} parent=0
    _
  %s5 = ssub.s32 1, %s3
  %s6 = scalar_select 0, %s5, %s3
  // Predicated region
  $region2: #{_lambda_.49} parent=0 // pred_check
    _
  $region3: #{_lambda_.49} parent=0 // pred_check_branch
    %8 = sbr.rel (0) target = $region5
  $region4: #{_lambda_.49} parent=0 // pred_region
    _
  $region5: #{_lambda_.49} parent=0 // pred_fallthru
    _
  // Predicated region
  $region6: #{_lambda_.49} parent=0 // pred_check
    _
  $region7: #{_lambda_.49} parent=0 // pred_check_branch
    %10 = sbr.rel (0) target = $region9
  $region8: #{_lambda_.49} parent=0 // pred_region
    _
  $region9: #{_lambda_.49} parent=0 // pred_fallthru
    _
  %v11 = vld [vmem:[%s0] sm:$0xff]
  %s12 = scalar_lea.vmem %s0, 8
  %v13 = vld [vmem:[%s12] sm:$0xff]
  %v14 = vmax.f32 %v11, %v13
  %s15 = scalar_lea.vmem %s0, 16
  %v16 = vld [vmem:[%s15] sm:$0xff]
  %v17 = vmax.f32 %v14, %v16
  %s18 = scalar_lea.vmem %s0, 24
  %v19 = vld [vmem:[%s18] sm:$0xff]
  %v20 = vmax.f32 %v17, %v19
  %s21 = scalar_lea.vmem %s0, 32
  %v22 = vld [vmem:[%s21] sm:$0xff]
  %v23 = vmax.f32 %v20, %v22
  %s24 = scalar_lea.vmem %s0, 40
  %v25 = vld [vmem:[%s24] sm:$0xff]
  %v26 = vmax.f32 %v23, %v25
  %s27 = scalar_lea.vmem %s0, 48
  %v28 = vld [vmem:[%s27] sm:$0xff]
  %v29 = vmax.f32 %v26, %v28
  %s30 = scalar_lea.vmem %s0, 56
  %v31 = vld [vmem:[%s30] sm:$0xff]
  %v32 = vmax.f32 %v29, %v31
  %s33 = scalar_lea.vmem %s0, 64
  %v34 = vld [vmem:[%s33] sm:$0xff]
  %v35 = vmax.f32 %v32, %v34
  %v36 = vld [vmem:[%s1] sm:$0xff]
  %v37 = vadd.f32 %v35, %v36
  %38 = vst [vmem:[%s2] sm:$0xff] %v37
  // Predicated region
  $region10: #{_lambda_.49} parent=0 // pred_check
    _
  $region11: #{_lambda_.49} parent=0 // pred_check_branch
    %40 = sbr.rel (0) target = $region13
  $region12: #{_lambda_.49} parent=0 // pred_region
    _
  $region13: #{_lambda_.49} parent=0 // pred_fallthru
    _
  // Predicated region
  $region14: #{_lambda_.49} parent=0 // pred_check
    _
  $region15: #{_lambda_.49} parent=0 // pred_check_branch
    %42 = sbr.rel (0) target = $region17
  $region16: #{_lambda_.49} parent=0 // pred_region
    _
  $region17: #{_lambda_.49} parent=0 // pred_fallthru
    _

// kernel: _lambda_.50
$region0: #{_lambda_.50}
  #allocation0 [shape = 'u32[]', space=smem, size = 0x4, offset = 0x4, fixed_abs, tag = 'smem constant byte address 0x4 - core index']
  #allocation1 [shape = 'u32[72,128]{1,0:T(1,128)}', space=vmem, size = 0x9000, scoped, tag = 'internal scratch']
  %s0 = inlined_call_operand.vmem [shape: f32[9,8,128], index: 0, kind: input, shape index: {}]
  %s1 = inlined_call_operand.vmem [shape: f32[1,128], index: 1, kind: input, shape index: {}]
  %s2 = inlined_call_operand.vmem [shape: f32[8,128], index: 2, kind: output, shape index: {}]
  %s3 = sld [smem:[#allocation0]]
  $region18: #{_lambda_.50} parent=0
    _
  %s5 = ssub.s32 1, %s3
  %s6 = scalar_select 0, %s5, %s3
  // Predicated region
  $region2: #{_lambda_.50} parent=0 // pred_check
    _
  $region3: #{_lambda_.50} parent=0 // pred_check_branch
    %8 = sbr.rel (0) target = $region5
  $region4: #{_lambda_.50} parent=0 // pred_region
    _
  $region5: #{_lambda_.50} parent=0 // pred_fallthru
    _
  // Predicated region
  $region6: #{_lambda_.50} parent=0 // pred_check
    _
  $region7: #{_lambda_.50} parent=0 // pred_check_branch
    %10 = sbr.rel (0) target = $region9
  $region8: #{_lambda_.50} parent=0 // pred_region
    _
  $region9: #{_lambda_.50} parent=0 // pred_fallthru
    _
  %v11 = vld [vmem:[%s0] sm:$0xff]
  %s12 = scalar_lea.vmem %s0, 8
  %v13 = vld [vmem:[%s12] sm:$0xff]
  %v14 = vadd.f32 %v11, %v13
  %s15 = scalar_lea.vmem %s0, 16
  %v16 = vld [vmem:[%s15] sm:$0xff]
  %v17 = vadd.f32 %v14, %v16
  %s18 = scalar_lea.vmem %s0, 24
  %v19 = vld [vmem:[%s18] sm:$0xff]
  %v20 = vadd.f32 %v17, %v19
  %s21 = scalar_lea.vmem %s0, 32
  %v22 = vld [vmem:[%s21] sm:$0xff]
  %v23 = vadd.f32 %v20, %v22
  %s24 = scalar_lea.vmem %s0, 40
  %v25 = vld [vmem:[%s24] sm:$0xff]
  %v26 = vadd.f32 %v23, %v25
  %s27 = scalar_lea.vmem %s0, 48
  %v28 = vld [vmem:[%s27] sm:$0xff]
  %v29 = vadd.f32 %v26, %v28
  %s30 = scalar_lea.vmem %s0, 56
  %v31 = vld [vmem:[%s30] sm:$0xff]
  %v32 = vadd.f32 %v29, %v31
  %s33 = scalar_lea.vmem %s0, 64
  %v34 = vld [vmem:[%s33] sm:$0xff]
  %v35 = vadd.f32 %v32, %v34
  %v36 = vld [vmem:[%s1] sm:$0x1]
  %v38 = vperm.slane %v36, 0
  %v40 = vmul.f32 %v35, %v38
  %41 = vst [vmem:[%s2] sm:$0xff] %v40
  // Predicated region
  $region10: #{_lambda_.50} parent=0 // pred_check
    _
  $region11: #{_lambda_.50} parent=0 // pred_check_branch
    %43 = sbr.rel (0) target = $region13
  $region12: #{_lambda_.50} parent=0 // pred_region
    _
  $region13: #{_lambda_.50} parent=0 // pred_fallthru
    _
  // Predicated region
  $region14: #{_lambda_.50} parent=0 // pred_check
    _
  $region15: #{_lambda_.50} parent=0 // pred_check_branch
    %45 = sbr.rel (0) target = $region17
  $region16: #{_lambda_.50} parent=0 // pred_region
    _
  $region17: #{_lambda_.50} parent=0 // pred_fallthru
    _

// kernel: _lambda_.56
$region0: #{_lambda_.56}
  #allocation0 [shape = 'u32[]', space=smem, size = 0x4, offset = 0x4, fixed_abs, tag = 'smem constant byte address 0x4 - core index']
  #allocation1 [shape = 'u32[72,128]{1,0:T(1,128)}', space=vmem, size = 0x9000, scoped, tag = 'internal scratch']
  %s0 = inlined_call_operand.vmem [shape: f32[9,16,32], index: 0, kind: input, shape index: {}]
  %s1 = inlined_call_operand.vmem [shape: f32[9,16,1], index: 1, kind: input, shape index: {}]
  %s2 = inlined_call_operand.vmem [shape: f32[16,16], index: 2, kind: input, shape index: {}]
  %s3 = inlined_call_operand.vmem [shape: f32[16,1], index: 3, kind: input, shape index: {}]
  %s4 = inlined_call_operand.vmem [shape: f32[16,32], index: 4, kind: output, shape index: {}]
  %s5 = sld [smem:[#allocation0]]
  $region26: #{_lambda_.56} parent=0
    _
  %s7 = ssub.s32 1, %s5
  %s8 = scalar_select 0, %s7, %s5
  // Predicated region
  $region2: #{_lambda_.56} parent=0 // pred_check
    _
  $region3: #{_lambda_.56} parent=0 // pred_check_branch
    %10 = sbr.rel (0) target = $region5
  $region4: #{_lambda_.56} parent=0 // pred_region
    _
  $region5: #{_lambda_.56} parent=0 // pred_fallthru
    _
  // Predicated region
  $region6: #{_lambda_.56} parent=0 // pred_check
    _
  $region7: #{_lambda_.56} parent=0 // pred_check_branch
    %12 = sbr.rel (0) target = $region9
  $region8: #{_lambda_.56} parent=0 // pred_region
    _
  $region9: #{_lambda_.56} parent=0 // pred_fallthru
    _
  // Predicated region
  $region10: #{_lambda_.56} parent=0 // pred_check
    _
  $region11: #{_lambda_.56} parent=0 // pred_check_branch
    %14 = sbr.rel (0) target = $region13
  $region12: #{_lambda_.56} parent=0 // pred_region
    _
  $region13: #{_lambda_.56} parent=0 // pred_fallthru
    _
  // Predicated region
  $region14: #{_lambda_.56} parent=0 // pred_check
    _
  $region15: #{_lambda_.56} parent=0 // pred_check_branch
    %16 = sbr.rel (0) target = $region17
  $region16: #{_lambda_.56} parent=0 // pred_region
    _
  $region17: #{_lambda_.56} parent=0 // pred_fallthru
    _
  %v17 = vld [vmem:[%s1] sm:$0xff]
  %v18 = vld [vmem:[%s1 + $0x8] sm:$0xff]
  %v19 = vld [vmem:[%s0] sm:$0xff]
  %v20 = vld [vmem:[%s0 + $0x8] sm:$0xff]
  %v21 = vmax.f32 %v19, 0.0
  %v22 = vmax.f32 %v20, 0.0
  %24 = vset.pattern.permute.xlu0 0
  %25 = vperm.xlu0 %24, %v17
  %v26 = vpop.permute.xlu0 %25
  %29 = vset.pattern.permute.xlu0 0
  %30 = vperm.xlu0 %29, %v18
  %v31 = vpop.permute.xlu0 %30
  %v33 = vmul.f32 %v26, %v21
  %v34 = vmul.f32 %v31, %v22
  %s35 = scalar_lea.vmem %s1, 16
  %v36 = vld [vmem:[%s35] sm:$0xff]
  %v37 = vld [vmem:[%s35 + $0x8] sm:$0xff]
  %s38 = scalar_lea.vmem %s0, 16
  %v39 = vld [vmem:[%s38] sm:$0xff]
  %v40 = vld [vmem:[%s38 + $0x8] sm:$0xff]
  %v41 = vmax.f32 %v39, 0.0
  %v42 = vmax.f32 %v40, 0.0
  %44 = vset.pattern.permute.xlu0 0
  %45 = vperm.xlu0 %44, %v36
  %v46 = vpop.permute.xlu0 %45
  %49 = vset.pattern.permute.xlu0 0
  %50 = vperm.xlu0 %49, %v37
  %v51 = vpop.permute.xlu0 %50
  %v53 = vmul.f32 %v46, %v41
  %v54 = vmul.f32 %v51, %v42
  %v55 = vadd.f32 %v33, %v53
  %v56 = vadd.f32 %v34, %v54
  %s57 = scalar_lea.vmem %s1, 32
  %v58 = vld [vmem:[%s57] sm:$0xff]
  %v59 = vld [vmem:[%s57 + $0x8] sm:$0xff]
  %s60 = scalar_lea.vmem %s0, 32
  %v61 = vld [vmem:[%s60] sm:$0xff]
  %v62 = vld [vmem:[%s60 + $0x8] sm:$0xff]
  %v63 = vmax.f32 %v61, 0.0
  %v64 = vmax.f32 %v62, 0.0
  %66 = vset.pattern.permute.xlu0 0
  %67 = vperm.xlu0 %66, %v58
  %v68 = vpop.permute.xlu0 %67
  %71 = vset.pattern.permute.xlu0 0
  %72 = vperm.xlu0 %71, %v59
  %v73 = vpop.permute.xlu0 %72
  %v75 = vmul.f32 %v68, %v63
  %v76 = vmul.f32 %v73, %v64
  %v77 = vadd.f32 %v55, %v75
  %v78 = vadd.f32 %v56, %v76
  %s79 = scalar_lea.vmem %s1, 48
  %v80 = vld [vmem:[%s79] sm:$0xff]
  %v81 = vld [vmem:[%s79 + $0x8] sm:$0xff]
  %s82 = scalar_lea.vmem %s0, 48
  %v83 = vld [vmem:[%s82] sm:$0xff]
  %v84 = vld [vmem:[%s82 + $0x8] sm:$0xff]
  %v85 = vmax.f32 %v83, 0.0
  %v86 = vmax.f32 %v84, 0.0
  %88 = vset.pattern.permute.xlu0 0
  %89 = vperm.xlu0 %88, %v80
  %v90 = vpop.permute.xlu0 %89
  %93 = vset.pattern.permute.xlu0 0
  %94 = vperm.xlu0 %93, %v81
  %v95 = vpop.permute.xlu0 %94
  %v97 = vmul.f32 %v90, %v85
  %v98 = vmul.f32 %v95, %v86
  %v99 = vadd.f32 %v77, %v97
  %v100 = vadd.f32 %v78, %v98
  %s101 = scalar_lea.vmem %s1, 64
  %v102 = vld [vmem:[%s101] sm:$0xff]
  %v103 = vld [vmem:[%s101 + $0x8] sm:$0xff]
  %s104 = scalar_lea.vmem %s0, 64
  %v105 = vld [vmem:[%s104] sm:$0xff]
  %v106 = vld [vmem:[%s104 + $0x8] sm:$0xff]
  %v107 = vmax.f32 %v105, 0.0
  %v108 = vmax.f32 %v106, 0.0
  %110 = vset.pattern.permute.xlu0 0
  %111 = vperm.xlu0 %110, %v102
  %v112 = vpop.permute.xlu0 %111
  %115 = vset.pattern.permute.xlu0 0
  %116 = vperm.xlu0 %115, %v103
  %v117 = vpop.permute.xlu0 %116
  %v119 = vmul.f32 %v112, %v107
  %v120 = vmul.f32 %v117, %v108
  %v121 = vadd.f32 %v99, %v119
  %v122 = vadd.f32 %v100, %v120
  %s123 = scalar_lea.vmem %s1, 80
  %v124 = vld [vmem:[%s123] sm:$0xff]
  %v125 = vld [vmem:[%s123 + $0x8] sm:$0xff]
  %s126 = scalar_lea.vmem %s0, 80
  %v127 = vld [vmem:[%s126] sm:$0xff]
  %v128 = vld [vmem:[%s126 + $0x8] sm:$0xff]
  %v129 = vmax.f32 %v127, 0.0
  %v130 = vmax.f32 %v128, 0.0
  %132 = vset.pattern.permute.xlu0 0
  %133 = vperm.xlu0 %132, %v124
  %v134 = vpop.permute.xlu0 %133
  %137 = vset.pattern.permute.xlu0 0
  %138 = vperm.xlu0 %137, %v125
  %v139 = vpop.permute.xlu0 %138
  %v141 = vmul.f32 %v134, %v129
  %v142 = vmul.f32 %v139, %v130
  %v143 = vadd.f32 %v121, %v141
  %v144 = vadd.f32 %v122, %v142
  %s145 = scalar_lea.vmem %s1, 96
  %v146 = vld [vmem:[%s145] sm:$0xff]
  %v147 = vld [vmem:[%s145 + $0x8] sm:$0xff]
  %s148 = scalar_lea.vmem %s0, 96
  %v149 = vld [vmem:[%s148] sm:$0xff]
  %v150 = vld [vmem:[%s148 + $0x8] sm:$0xff]
  %v151 = vmax.f32 %v149, 0.0
  %v152 = vmax.f32 %v150, 0.0
  %154 = vset.pattern.permute.xlu0 0
  %155 = vperm.xlu0 %154, %v146
  %v156 = vpop.permute.xlu0 %155
  %159 = vset.pattern.permute.xlu0 0
  %160 = vperm.xlu0 %159, %v147
  %v161 = vpop.permute.xlu0 %160
  %v163 = vmul.f32 %v156, %v151
  %v164 = vmul.f32 %v161, %v152
  %v165 = vadd.f32 %v143, %v163
  %v166 = vadd.f32 %v144, %v164
  %s167 = scalar_lea.vmem %s1, 112
  %v168 = vld [vmem:[%s167] sm:$0xff]
  %v169 = vld [vmem:[%s167 + $0x8] sm:$0xff]
  %s170 = scalar_lea.vmem %s0, 112
  %v171 = vld [vmem:[%s170] sm:$0xff]
  %v172 = vld [vmem:[%s170 + $0x8] sm:$0xff]
  %v173 = vmax.f32 %v171, 0.0
  %v174 = vmax.f32 %v172, 0.0
  %176 = vset.pattern.permute.xlu0 0
  %177 = vperm.xlu0 %176, %v168
  %v178 = vpop.permute.xlu0 %177
  %181 = vset.pattern.permute.xlu0 0
  %182 = vperm.xlu0 %181, %v169
  %v183 = vpop.permute.xlu0 %182
  %v185 = vmul.f32 %v178, %v173
  %v186 = vmul.f32 %v183, %v174
  %v187 = vadd.f32 %v165, %v185
  %v188 = vadd.f32 %v166, %v186
  %s189 = scalar_lea.vmem %s1, 128
  %v190 = vld [vmem:[%s189] sm:$0xff]
  %v191 = vld [vmem:[%s189 + $0x8] sm:$0xff]
  %s192 = scalar_lea.vmem %s0, 128
  %v193 = vld [vmem:[%s192] sm:$0xff]
  %v194 = vld [vmem:[%s192 + $0x8] sm:$0xff]
  %v195 = vmax.f32 %v193, 0.0
  %v196 = vmax.f32 %v194, 0.0
  %198 = vset.pattern.permute.xlu0 0
  %199 = vperm.xlu0 %198, %v190
  %v200 = vpop.permute.xlu0 %199
  %203 = vset.pattern.permute.xlu0 0
  %204 = vperm.xlu0 %203, %v191
  %v205 = vpop.permute.xlu0 %204
  %v207 = vmul.f32 %v200, %v195
  %v208 = vmul.f32 %v205, %v196
  %v209 = vadd.f32 %v187, %v207
  %v210 = vadd.f32 %v188, %v208
  %v211 = vld [vmem:[%s2] sm:$0xff]
  %v212 = vld [vmem:[%s2 + $0x8] sm:$0xff]
  %v213 = vld [vmem:[%s3] sm:$0xff]
  %v214 = vld [vmem:[%s3 + $0x8] sm:$0xff]
  %216 = vset.pattern.permute.xlu0 0
  %217 = vperm.xlu0 %216, %v213
  %v218 = vpop.permute.xlu0 %217
  %221 = vset.pattern.permute.xlu0 0
  %222 = vperm.xlu0 %221, %v214
  %v223 = vpop.permute.xlu0 %222
  %vm225 = vcmask 130048
  %v227 = vsel %vm225, %v211, 0
  %v230 = vsel %vm225, %v212, 0
  %232 = vmatpush.msra.mxu0 0.0
  %233 = vmatpush.msra.mxu0 0.0
  %234 = vmatpush.msra.mxu0 0.0
  %235 = vmatpush.msra.mxu0 0.0
  %236 = vmatpush.msra.mxu0 0.0
  %237 = vmatpush.msra.mxu0 0.0
  %238 = vmatpush.msra.mxu0 0.0
  %239 = vmatpush.msra.mxu0 0.0
  %240 = vmatpush.msra.mxu0 0.0
  %241 = vmatpush.msra.mxu0 0.0
  %242 = vmatpush.msra.mxu0 0.0
  %243 = vmatpush.msra.mxu0 0.0
  %244 = vmatpush.msra.mxu0 0.0
  %245 = vmatpush.msra.mxu0 0.0
  %246 = vmatpush.msra.mxu0 %v210
  %247 = vmatpush.msra.mxu0 %v209
  %248 = vmatmul.f32.gmra.mxu0 %v227
  %v249 = vpop.f32.mrf.mxu0
  %v250 = vadd.f32 %v218, %v249
  %251 = vmatmul.f32.gmra.mxu0 %v230
  %v252 = vpop.f32.mrf.mxu0
  %v253 = vadd.f32 %v223, %v252
  %254 = vdwg.mxu0
  %vm255 = vcmask 261120
  %256 = vst.msk [vmem:[%s4] sm:$0xff] %vm255, %v250
  %257 = vst.msk [vmem:[%s4 + $0x8] sm:$0xff] %vm255, %v253
  // Predicated region
  $region18: #{_lambda_.56} parent=0 // pred_check
    _
  $region19: #{_lambda_.56} parent=0 // pred_check_branch
    %259 = sbr.rel (0) target = $region21
  $region20: #{_lambda_.56} parent=0 // pred_region
    _
  $region21: #{_lambda_.56} parent=0 // pred_fallthru
    _
  // Predicated region
  $region22: #{_lambda_.56} parent=0 // pred_check
    _
  $region23: #{_lambda_.56} parent=0 // pred_check_branch
    %261 = sbr.rel (0) target = $region25
  $region24: #{_lambda_.56} parent=0 // pred_region
    _
  $region25: #{_lambda_.56} parent=0 // pred_fallthru
    _

// kernel: _lambda_.58
$region0: #{_lambda_.58}
  #allocation0 [shape = 'u32[]', space=smem, size = 0x4, offset = 0x4, fixed_abs, tag = 'smem constant byte address 0x4 - core index']
  #allocation1 [shape = 'u32[72,128]{1,0:T(1,128)}', space=vmem, size = 0x9000, scoped, tag = 'internal scratch']
  %s0 = inlined_call_operand.vmem [shape: f32[9,16,32], index: 0, kind: input, shape index: {}]
  %s1 = inlined_call_operand.vmem [shape: f32[1,32], index: 1, kind: input, shape index: {}]
  %s2 = inlined_call_operand.vmem [shape: f32[16,32], index: 2, kind: input, shape index: {}]
  %s3 = inlined_call_operand.vmem [shape: f32[16,32], index: 3, kind: output, shape index: {}]
  %s4 = sld [smem:[#allocation0]]
  $region22: #{_lambda_.58} parent=0
    _
  %s6 = ssub.s32 1, %s4
  %s7 = scalar_select 0, %s6, %s4
  // Predicated region
  $region2: #{_lambda_.58} parent=0 // pred_check
    _
  $region3: #{_lambda_.58} parent=0 // pred_check_branch
    %9 = sbr.rel (0) target = $region5
  $region4: #{_lambda_.58} parent=0 // pred_region
    _
  $region5: #{_lambda_.58} parent=0 // pred_fallthru
    _
  // Predicated region
  $region6: #{_lambda_.58} parent=0 // pred_check
    _
  $region7: #{_lambda_.58} parent=0 // pred_check_branch
    %11 = sbr.rel (0) target = $region9
  $region8: #{_lambda_.58} parent=0 // pred_region
    _
  $region9: #{_lambda_.58} parent=0 // pred_fallthru
    _
  // Predicated region
  $region10: #{_lambda_.58} parent=0 // pred_check
    _
  $region11: #{_lambda_.58} parent=0 // pred_check_branch
    %13 = sbr.rel (0) target = $region13
  $region12: #{_lambda_.58} parent=0 // pred_region
    _
  $region13: #{_lambda_.58} parent=0 // pred_fallthru
    _
  %v14 = vld [vmem:[%s0] sm:$0xff]
  %v15 = vld [vmem:[%s0 + $0x8] sm:$0xff]
  %s16 = scalar_lea.vmem %s0, 16
  %v17 = vld [vmem:[%s16] sm:$0xff]
  %v18 = vld [vmem:[%s16 + $0x8] sm:$0xff]
  %v19 = vadd.f32 %v14, %v17
  %v20 = vadd.f32 %v15, %v18
  %s21 = scalar_lea.vmem %s0, 32
  %v22 = vld [vmem:[%s21] sm:$0xff]
  %v23 = vld [vmem:[%s21 + $0x8] sm:$0xff]
  %v24 = vadd.f32 %v19, %v22
  %v25 = vadd.f32 %v20, %v23
  %s26 = scalar_lea.vmem %s0, 48
  %v27 = vld [vmem:[%s26] sm:$0xff]
  %v28 = vld [vmem:[%s26 + $0x8] sm:$0xff]
  %v29 = vadd.f32 %v24, %v27
  %v30 = vadd.f32 %v25, %v28
  %s31 = scalar_lea.vmem %s0, 64
  %v32 = vld [vmem:[%s31] sm:$0xff]
  %v33 = vld [vmem:[%s31 + $0x8] sm:$0xff]
  %v34 = vadd.f32 %v29, %v32
  %v35 = vadd.f32 %v30, %v33
  %s36 = scalar_lea.vmem %s0, 80
  %v37 = vld [vmem:[%s36] sm:$0xff]
  %v38 = vld [vmem:[%s36 + $0x8] sm:$0xff]
  %v39 = vadd.f32 %v34, %v37
  %v40 = vadd.f32 %v35, %v38
  %s41 = scalar_lea.vmem %s0, 96
  %v42 = vld [vmem:[%s41] sm:$0xff]
  %v43 = vld [vmem:[%s41 + $0x8] sm:$0xff]
  %v44 = vadd.f32 %v39, %v42
  %v45 = vadd.f32 %v40, %v43
  %s46 = scalar_lea.vmem %s0, 112
  %v47 = vld [vmem:[%s46] sm:$0xff]
  %v48 = vld [vmem:[%s46 + $0x8] sm:$0xff]
  %v49 = vadd.f32 %v44, %v47
  %v50 = vadd.f32 %v45, %v48
  %s51 = scalar_lea.vmem %s0, 128
  %v52 = vld [vmem:[%s51] sm:$0xff]
  %v53 = vld [vmem:[%s51 + $0x8] sm:$0xff]
  %v54 = vadd.f32 %v49, %v52
  %v55 = vadd.f32 %v50, %v53
  %v56 = vld [vmem:[%s1] sm:$0x1]
  %v58 = vperm.slane %v56, 0
  %v60 = vmul.f32 %v54, %v58
  %v61 = vmul.f32 %v55, %v58
  %v62 = vld [vmem:[%s2] sm:$0xff]
  %v63 = vld [vmem:[%s2 + $0x8] sm:$0xff]
  %v64 = vadd.f32 %v60, %v62
  %v65 = vadd.f32 %v61, %v63
  %vm66 = vcmask 261120
  %67 = vst.msk [vmem:[%s3] sm:$0xff] %vm66, %v64
  %68 = vst.msk [vmem:[%s3 + $0x8] sm:$0xff] %vm66, %v65
  // Predicated region
  $region14: #{_lambda_.58} parent=0 // pred_check
    _
  $region15: #{_lambda_.58} parent=0 // pred_check_branch
    %70 = sbr.rel (0) target = $region17
  $region16: #{_lambda_.58} parent=0 // pred_region
    _
  $region17: #{_lambda_.58} parent=0 // pred_fallthru
    _
  // Predicated region
  $region18: #{_lambda_.58} parent=0 // pred_check
    _
  $region19: #{_lambda_.58} parent=0 // pred_check_branch
    %72 = sbr.rel (0) target = $region21
  $region20: #{_lambda_.58} parent=0 // pred_region
    _
  $region21: #{_lambda_.58} parent=0 // pred_fallthru
    _

// kernel: _lambda_.57
$region0: #{_lambda_.57}
  #allocation0 [shape = 'u32[]', space=smem, size = 0x4, offset = 0x4, fixed_abs, tag = 'smem constant byte address 0x4 - core index']
  #allocation1 [shape = 'u32[72,128]{1,0:T(1,128)}', space=vmem, size = 0x9000, scoped, tag = 'internal scratch']
  %s0 = inlined_call_operand.vmem [shape: f32[9,16,32], index: 0, kind: input, shape index: {}]
  %s1 = inlined_call_operand.vmem [shape: f32[9,16,1], index: 1, kind: input, shape index: {}]
  %s2 = inlined_call_operand.vmem [shape: f32[16,16], index: 2, kind: input, shape index: {}]
  %s3 = inlined_call_operand.vmem [shape: f32[16,1], index: 3, kind: input, shape index: {}]
  %s4 = inlined_call_operand.vmem [shape: f32[16,32], index: 4, kind: input, shape index: {}]
  %s5 = inlined_call_operand.vmem [shape: f32[16,32], index: 5, kind: output, shape index: {}]
  %s6 = sld [smem:[#allocation0]]
  $region30: #{_lambda_.57} parent=0
    _
  %s8 = ssub.s32 1, %s6
  %s9 = scalar_select 0, %s8, %s6
  // Predicated region
  $region2: #{_lambda_.57} parent=0 // pred_check
    _
  $region3: #{_lambda_.57} parent=0 // pred_check_branch
    %11 = sbr.rel (0) target = $region5
  $region4: #{_lambda_.57} parent=0 // pred_region
    _
  $region5: #{_lambda_.57} parent=0 // pred_fallthru
    _
  // Predicated region
  $region6: #{_lambda_.57} parent=0 // pred_check
    _
  $region7: #{_lambda_.57} parent=0 // pred_check_branch
    %13 = sbr.rel (0) target = $region9
  $region8: #{_lambda_.57} parent=0 // pred_region
    _
  $region9: #{_lambda_.57} parent=0 // pred_fallthru
    _
  // Predicated region
  $region10: #{_lambda_.57} parent=0 // pred_check
    _
  $region11: #{_lambda_.57} parent=0 // pred_check_branch
    %15 = sbr.rel (0) target = $region13
  $region12: #{_lambda_.57} parent=0 // pred_region
    _
  $region13: #{_lambda_.57} parent=0 // pred_fallthru
    _
  // Predicated region
  $region14: #{_lambda_.57} parent=0 // pred_check
    _
  $region15: #{_lambda_.57} parent=0 // pred_check_branch
    %17 = sbr.rel (0) target = $region17
  $region16: #{_lambda_.57} parent=0 // pred_region
    _
  $region17: #{_lambda_.57} parent=0 // pred_fallthru
    _
  // Predicated region
  $region18: #{_lambda_.57} parent=0 // pred_check
    _
  $region19: #{_lambda_.57} parent=0 // pred_check_branch
    %19 = sbr.rel (0) target = $region21
  $region20: #{_lambda_.57} parent=0 // pred_region
    _
  $region21: #{_lambda_.57} parent=0 // pred_fallthru
    _
  %v20 = vld [vmem:[%s1] sm:$0xff]
  %v21 = vld [vmem:[%s1 + $0x8] sm:$0xff]
  %v22 = vld [vmem:[%s0] sm:$0xff]
  %v23 = vld [vmem:[%s0 + $0x8] sm:$0xff]
  %v24 = vmax.f32 %v22, 0.0
  %v25 = vmax.f32 %v23, 0.0
  %27 = vset.pattern.permute.xlu0 0
  %28 = vperm.xlu0 %27, %v20
  %v29 = vpop.permute.xlu0 %28
  %32 = vset.pattern.permute.xlu0 0
  %33 = vperm.xlu0 %32, %v21
  %v34 = vpop.permute.xlu0 %33
  %v36 = vmul.f32 %v29, %v24
  %v37 = vmul.f32 %v34, %v25
  %s38 = scalar_lea.vmem %s1, 16
  %v39 = vld [vmem:[%s38] sm:$0xff]
  %v40 = vld [vmem:[%s38 + $0x8] sm:$0xff]
  %s41 = scalar_lea.vmem %s0, 16
  %v42 = vld [vmem:[%s41] sm:$0xff]
  %v43 = vld [vmem:[%s41 + $0x8] sm:$0xff]
  %v44 = vmax.f32 %v42, 0.0
  %v45 = vmax.f32 %v43, 0.0
  %47 = vset.pattern.permute.xlu0 0
  %48 = vperm.xlu0 %47, %v39
  %v49 = vpop.permute.xlu0 %48
  %52 = vset.pattern.permute.xlu0 0
  %53 = vperm.xlu0 %52, %v40
  %v54 = vpop.permute.xlu0 %53
  %v56 = vmul.f32 %v49, %v44
  %v57 = vmul.f32 %v54, %v45
  %v58 = vadd.f32 %v36, %v56
  %v59 = vadd.f32 %v37, %v57
  %s60 = scalar_lea.vmem %s1, 32
  %v61 = vld [vmem:[%s60] sm:$0xff]
  %v62 = vld [vmem:[%s60 + $0x8] sm:$0xff]
  %s63 = scalar_lea.vmem %s0, 32
  %v64 = vld [vmem:[%s63] sm:$0xff]
  %v65 = vld [vmem:[%s63 + $0x8] sm:$0xff]
  %v66 = vmax.f32 %v64, 0.0
  %v67 = vmax.f32 %v65, 0.0
  %69 = vset.pattern.permute.xlu0 0
  %70 = vperm.xlu0 %69, %v61
  %v71 = vpop.permute.xlu0 %70
  %74 = vset.pattern.permute.xlu0 0
  %75 = vperm.xlu0 %74, %v62
  %v76 = vpop.permute.xlu0 %75
  %v78 = vmul.f32 %v71, %v66
  %v79 = vmul.f32 %v76, %v67
  %v80 = vadd.f32 %v58, %v78
  %v81 = vadd.f32 %v59, %v79
  %s82 = scalar_lea.vmem %s1, 48
  %v83 = vld [vmem:[%s82] sm:$0xff]
  %v84 = vld [vmem:[%s82 + $0x8] sm:$0xff]
  %s85 = scalar_lea.vmem %s0, 48
  %v86 = vld [vmem:[%s85] sm:$0xff]
  %v87 = vld [vmem:[%s85 + $0x8] sm:$0xff]
  %v88 = vmax.f32 %v86, 0.0
  %v89 = vmax.f32 %v87, 0.0
  %91 = vset.pattern.permute.xlu0 0
  %92 = vperm.xlu0 %91, %v83
  %v93 = vpop.permute.xlu0 %92
  %96 = vset.pattern.permute.xlu0 0
  %97 = vperm.xlu0 %96, %v84
  %v98 = vpop.permute.xlu0 %97
  %v100 = vmul.f32 %v93, %v88
  %v101 = vmul.f32 %v98, %v89
  %v102 = vadd.f32 %v80, %v100
  %v103 = vadd.f32 %v81, %v101
  %s104 = scalar_lea.vmem %s1, 64
  %v105 = vld [vmem:[%s104] sm:$0xff]
  %v106 = vld [vmem:[%s104 + $0x8] sm:$0xff]
  %s107 = scalar_lea.vmem %s0, 64
  %v108 = vld [vmem:[%s107] sm:$0xff]
  %v109 = vld [vmem:[%s107 + $0x8] sm:$0xff]
  %v110 = vmax.f32 %v108, 0.0
  %v111 = vmax.f32 %v109, 0.0
  %113 = vset.pattern.permute.xlu0 0
  %114 = vperm.xlu0 %113, %v105
  %v115 = vpop.permute.xlu0 %114
  %118 = vset.pattern.permute.xlu0 0
  %119 = vperm.xlu0 %118, %v106
  %v120 = vpop.permute.xlu0 %119
  %v122 = vmul.f32 %v115, %v110
  %v123 = vmul.f32 %v120, %v111
  %v124 = vadd.f32 %v102, %v122
  %v125 = vadd.f32 %v103, %v123
  %s126 = scalar_lea.vmem %s1, 80
  %v127 = vld [vmem:[%s126] sm:$0xff]
  %v128 = vld [vmem:[%s126 + $0x8] sm:$0xff]
  %s129 = scalar_lea.vmem %s0, 80
  %v130 = vld [vmem:[%s129] sm:$0xff]
  %v131 = vld [vmem:[%s129 + $0x8] sm:$0xff]
  %v132 = vmax.f32 %v130, 0.0
  %v133 = vmax.f32 %v131, 0.0
  %135 = vset.pattern.permute.xlu0 0
  %136 = vperm.xlu0 %135, %v127
  %v137 = vpop.permute.xlu0 %136
  %140 = vset.pattern.permute.xlu0 0
  %141 = vperm.xlu0 %140, %v128
  %v142 = vpop.permute.xlu0 %141
  %v144 = vmul.f32 %v137, %v132
  %v145 = vmul.f32 %v142, %v133
  %v146 = vadd.f32 %v124, %v144
  %v147 = vadd.f32 %v125, %v145
  %s148 = scalar_lea.vmem %s1, 96
  %v149 = vld [vmem:[%s148] sm:$0xff]
  %v150 = vld [vmem:[%s148 + $0x8] sm:$0xff]
  %s151 = scalar_lea.vmem %s0, 96
  %v152 = vld [vmem:[%s151] sm:$0xff]
  %v153 = vld [vmem:[%s151 + $0x8] sm:$0xff]
  %v154 = vmax.f32 %v152, 0.0
  %v155 = vmax.f32 %v153, 0.0
  %157 = vset.pattern.permute.xlu0 0
  %158 = vperm.xlu0 %157, %v149
  %v159 = vpop.permute.xlu0 %158
  %162 = vset.pattern.permute.xlu0 0
  %163 = vperm.xlu0 %162, %v150
  %v164 = vpop.permute.xlu0 %163
  %v166 = vmul.f32 %v159, %v154
  %v167 = vmul.f32 %v164, %v155
  %v168 = vadd.f32 %v146, %v166
  %v169 = vadd.f32 %v147, %v167
  %s170 = scalar_lea.vmem %s1, 112
  %v171 = vld [vmem:[%s170] sm:$0xff]
  %v172 = vld [vmem:[%s170 + $0x8] sm:$0xff]
  %s173 = scalar_lea.vmem %s0, 112
  %v174 = vld [vmem:[%s173] sm:$0xff]
  %v175 = vld [vmem:[%s173 + $0x8] sm:$0xff]
  %v176 = vmax.f32 %v174, 0.0
  %v177 = vmax.f32 %v175, 0.0
  %179 = vset.pattern.permute.xlu0 0
  %180 = vperm.xlu0 %179, %v171
  %v181 = vpop.permute.xlu0 %180
  %184 = vset.pattern.permute.xlu0 0
  %185 = vperm.xlu0 %184, %v172
  %v186 = vpop.permute.xlu0 %185
  %v188 = vmul.f32 %v181, %v176
  %v189 = vmul.f32 %v186, %v177
  %v190 = vadd.f32 %v168, %v188
  %v191 = vadd.f32 %v169, %v189
  %s192 = scalar_lea.vmem %s1, 128
  %v193 = vld [vmem:[%s192] sm:$0xff]
  %v194 = vld [vmem:[%s192 + $0x8] sm:$0xff]
  %s195 = scalar_lea.vmem %s0, 128
  %v196 = vld [vmem:[%s195] sm:$0xff]
  %v197 = vld [vmem:[%s195 + $0x8] sm:$0xff]
  %v198 = vmax.f32 %v196, 0.0
  %v199 = vmax.f32 %v197, 0.0
  %201 = vset.pattern.permute.xlu0 0
  %202 = vperm.xlu0 %201, %v193
  %v203 = vpop.permute.xlu0 %202
  %206 = vset.pattern.permute.xlu0 0
  %207 = vperm.xlu0 %206, %v194
  %v208 = vpop.permute.xlu0 %207
  %v210 = vmul.f32 %v203, %v198
  %v211 = vmul.f32 %v208, %v199
  %v212 = vadd.f32 %v190, %v210
  %v213 = vadd.f32 %v191, %v211
  %v214 = vld [vmem:[%s2] sm:$0xff]
  %v215 = vld [vmem:[%s2 + $0x8] sm:$0xff]
  %v216 = vld [vmem:[%s3] sm:$0xff]
  %v217 = vld [vmem:[%s3 + $0x8] sm:$0xff]
  %219 = vset.pattern.permute.xlu0 0
  %220 = vperm.xlu0 %219, %v216
  %v221 = vpop.permute.xlu0 %220
  %224 = vset.pattern.permute.xlu0 0
  %225 = vperm.xlu0 %224, %v217
  %v226 = vpop.permute.xlu0 %225
  %vm228 = vcmask 130048
  %v230 = vsel %vm228, %v214, 0
  %v233 = vsel %vm228, %v215, 0
  %235 = vmatpush.msra.mxu0 0.0
  %236 = vmatpush.msra.mxu0 0.0
  %237 = vmatpush.msra.mxu0 0.0
  %238 = vmatpush.msra.mxu0 0.0
  %239 = vmatpush.msra.mxu0 0.0
  %240 = vmatpush.msra.mxu0 0.0
  %241 = vmatpush.msra.mxu0 0.0
  %242 = vmatpush.msra.mxu0 0.0
  %243 = vmatpush.msra.mxu0 0.0
  %244 = vmatpush.msra.mxu0 0.0
  %245 = vmatpush.msra.mxu0 0.0
  %246 = vmatpush.msra.mxu0 0.0
  %247 = vmatpush.msra.mxu0 0.0
  %248 = vmatpush.msra.mxu0 0.0
  %249 = vmatpush.msra.mxu0 %v213
  %250 = vmatpush.msra.mxu0 %v212
  %251 = vmatmul.f32.gmra.mxu0 %v230
  %v252 = vpop.f32.mrf.mxu0
  %v253 = vadd.f32 %v221, %v252
  %254 = vmatmul.f32.gmra.mxu0 %v233
  %v255 = vpop.f32.mrf.mxu0
  %v256 = vadd.f32 %v226, %v255
  %257 = vdwg.mxu0
  %v258 = vld [vmem:[%s4] sm:$0xff]
  %v259 = vld [vmem:[%s4 + $0x8] sm:$0xff]
  %v260 = vadd.f32 %v253, %v258
  %v261 = vadd.f32 %v256, %v259
  %vm262 = vcmask 261120
  %263 = vst.msk [vmem:[%s5] sm:$0xff] %vm262, %v260
  %264 = vst.msk [vmem:[%s5 + $0x8] sm:$0xff] %vm262, %v261
  // Predicated region
  $region22: #{_lambda_.57} parent=0 // pred_check
    _
  $region23: #{_lambda_.57} parent=0 // pred_check_branch
    %266 = sbr.rel (0) target = $region25
  $region24: #{_lambda_.57} parent=0 // pred_region
    _
  $region25: #{_lambda_.57} parent=0 // pred_fallthru
    _
  // Predicated region
  $region26: #{_lambda_.57} parent=0 // pred_check
    _
  $region27: #{_lambda_.57} parent=0 // pred_check_branch
    %268 = sbr.rel (0) target = $region29
  $region28: #{_lambda_.57} parent=0 // pred_region
    _
  $region29: #{_lambda_.57} parent=0 // pred_fallthru
    _

// kernel: _lambda_.59
$region0: #{_lambda_.59}
  #allocation0 [shape = 'u32[]', space=smem, size = 0x4, offset = 0x4, fixed_abs, tag = 'smem constant byte address 0x4 - core index']
  #allocation1 [shape = 'u32[72,128]{1,0:T(1,128)}', space=vmem, size = 0x9000, scoped, tag = 'internal scratch']
  %s0 = inlined_call_operand.vmem [shape: f32[9,16,32], index: 0, kind: input, shape index: {}]
  %s1 = inlined_call_operand.vmem [shape: f32[16,32], index: 1, kind: input, shape index: {}]
  %s2 = inlined_call_operand.vmem [shape: f32[16,32], index: 2, kind: output, shape index: {}]
  %s3 = sld [smem:[#allocation0]]
  $region18: #{_lambda_.59} parent=0
    _
  %s5 = ssub.s32 1, %s3
  %s6 = scalar_select 0, %s5, %s3
  // Predicated region
  $region2: #{_lambda_.59} parent=0 // pred_check
    _
  $region3: #{_lambda_.59} parent=0 // pred_check_branch
    %8 = sbr.rel (0) target = $region5
  $region4: #{_lambda_.59} parent=0 // pred_region
    _
  $region5: #{_lambda_.59} parent=0 // pred_fallthru
    _
  // Predicated region
  $region6: #{_lambda_.59} parent=0 // pred_check
    _
  $region7: #{_lambda_.59} parent=0 // pred_check_branch
    %10 = sbr.rel (0) target = $region9
  $region8: #{_lambda_.59} parent=0 // pred_region
    _
  $region9: #{_lambda_.59} parent=0 // pred_fallthru
    _
  %v11 = vld [vmem:[%s0] sm:$0xff]
  %v12 = vld [vmem:[%s0 + $0x8] sm:$0xff]
  %s13 = scalar_lea.vmem %s0, 16
  %v14 = vld [vmem:[%s13] sm:$0xff]
  %v15 = vld [vmem:[%s13 + $0x8] sm:$0xff]
  %v16 = vmax.f32 %v11, %v14
  %v17 = vmax.f32 %v12, %v15
  %s18 = scalar_lea.vmem %s0, 32
  %v19 = vld [vmem:[%s18] sm:$0xff]
  %v20 = vld [vmem:[%s18 + $0x8] sm:$0xff]
  %v21 = vmax.f32 %v16, %v19
  %v22 = vmax.f32 %v17, %v20
  %s23 = scalar_lea.vmem %s0, 48
  %v24 = vld [vmem:[%s23] sm:$0xff]
  %v25 = vld [vmem:[%s23 + $0x8] sm:$0xff]
  %v26 = vmax.f32 %v21, %v24
  %v27 = vmax.f32 %v22, %v25
  %s28 = scalar_lea.vmem %s0, 64
  %v29 = vld [vmem:[%s28] sm:$0xff]
  %v30 = vld [vmem:[%s28 + $0x8] sm:$0xff]
  %v31 = vmax.f32 %v26, %v29
  %v32 = vmax.f32 %v27, %v30
  %s33 = scalar_lea.vmem %s0, 80
  %v34 = vld [vmem:[%s33] sm:$0xff]
  %v35 = vld [vmem:[%s33 + $0x8] sm:$0xff]
  %v36 = vmax.f32 %v31, %v34
  %v37 = vmax.f32 %v32, %v35
  %s38 = scalar_lea.vmem %s0, 96
  %v39 = vld [vmem:[%s38] sm:$0xff]
  %v40 = vld [vmem:[%s38 + $0x8] sm:$0xff]
  %v41 = vmax.f32 %v36, %v39
  %v42 = vmax.f32 %v37, %v40
  %s43 = scalar_lea.vmem %s0, 112
  %v44 = vld [vmem:[%s43] sm:$0xff]
  %v45 = vld [vmem:[%s43 + $0x8] sm:$0xff]
  %v46 = vmax.f32 %v41, %v44
  %v47 = vmax.f32 %v42, %v45
  %s48 = scalar_lea.vmem %s0, 128
  %v49 = vld [vmem:[%s48] sm:$0xff]
  %v50 = vld [vmem:[%s48 + $0x8] sm:$0xff]
  %v51 = vmax.f32 %v46, %v49
  %v52 = vmax.f32 %v47, %v50
  %v53 = vld [vmem:[%s1] sm:$0xff]
  %v54 = vld [vmem:[%s1 + $0x8] sm:$0xff]
  %v55 = vadd.f32 %v51, %v53
  %v56 = vadd.f32 %v52, %v54
  %vm57 = vcmask 261120
  %58 = vst.msk [vmem:[%s2] sm:$0xff] %vm57, %v55
  %59 = vst.msk [vmem:[%s2 + $0x8] sm:$0xff] %vm57, %v56
  // Predicated region
  $region10: #{_lambda_.59} parent=0 // pred_check
    _
  $region11: #{_lambda_.59} parent=0 // pred_check_branch
    %61 = sbr.rel (0) target = $region13
  $region12: #{_lambda_.59} parent=0 // pred_region
    _
  $region13: #{_lambda_.59} parent=0 // pred_fallthru
    _
  // Predicated region
  $region14: #{_lambda_.59} parent=0 // pred_check
    _
  $region15: #{_lambda_.59} parent=0 // pred_check_branch
    %63 = sbr.rel (0) target = $region17
  $region16: #{_lambda_.59} parent=0 // pred_region
    _
  $region17: #{_lambda_.59} parent=0 // pred_fallthru
    _

// kernel: _lambda_.60
$region0: #{_lambda_.60}
  #allocation0 [shape = 'u32[]', space=smem, size = 0x4, offset = 0x4, fixed_abs, tag = 'smem constant byte address 0x4 - core index']
  #allocation1 [shape = 'u32[72,128]{1,0:T(1,128)}', space=vmem, size = 0x9000, scoped, tag = 'internal scratch']
  %s0 = inlined_call_operand.vmem [shape: f32[9,16,32], index: 0, kind: input, shape index: {}]
  %s1 = inlined_call_operand.vmem [shape: f32[1,32], index: 1, kind: input, shape index: {}]
  %s2 = inlined_call_operand.vmem [shape: f32[16,32], index: 2, kind: output, shape index: {}]
  %s3 = sld [smem:[#allocation0]]
  $region18: #{_lambda_.60} parent=0
    _
  %s5 = ssub.s32 1, %s3
  %s6 = scalar_select 0, %s5, %s3
  // Predicated region
  $region2: #{_lambda_.60} parent=0 // pred_check
    _
  $region3: #{_lambda_.60} parent=0 // pred_check_branch
    %8 = sbr.rel (0) target = $region5
  $region4: #{_lambda_.60} parent=0 // pred_region
    _
  $region5: #{_lambda_.60} parent=0 // pred_fallthru
    _
  // Predicated region
  $region6: #{_lambda_.60} parent=0 // pred_check
    _
  $region7: #{_lambda_.60} parent=0 // pred_check_branch
    %10 = sbr.rel (0) target = $region9
  $region8: #{_lambda_.60} parent=0 // pred_region
    _
  $region9: #{_lambda_.60} parent=0 // pred_fallthru
    _
  %v11 = vld [vmem:[%s0] sm:$0xff]
  %v12 = vld [vmem:[%s0 + $0x8] sm:$0xff]
  %s13 = scalar_lea.vmem %s0, 16
  %v14 = vld [vmem:[%s13] sm:$0xff]
  %v15 = vld [vmem:[%s13 + $0x8] sm:$0xff]
  %v16 = vadd.f32 %v11, %v14
  %v17 = vadd.f32 %v12, %v15
  %s18 = scalar_lea.vmem %s0, 32
  %v19 = vld [vmem:[%s18] sm:$0xff]
  %v20 = vld [vmem:[%s18 + $0x8] sm:$0xff]
  %v21 = vadd.f32 %v16, %v19
  %v22 = vadd.f32 %v17, %v20
  %s23 = scalar_lea.vmem %s0, 48
  %v24 = vld [vmem:[%s23] sm:$0xff]
  %v25 = vld [vmem:[%s23 + $0x8] sm:$0xff]
  %v26 = vadd.f32 %v21, %v24
  %v27 = vadd.f32 %v22, %v25
  %s28 = scalar_lea.vmem %s0, 64
  %v29 = vld [vmem:[%s28] sm:$0xff]
  %v30 = vld [vmem:[%s28 + $0x8] sm:$0xff]
  %v31 = vadd.f32 %v26, %v29
  %v32 = vadd.f32 %v27, %v30
  %s33 = scalar_lea.vmem %s0, 80
  %v34 = vld [vmem:[%s33] sm:$0xff]
  %v35 = vld [vmem:[%s33 + $0x8] sm:$0xff]
  %v36 = vadd.f32 %v31, %v34
  %v37 = vadd.f32 %v32, %v35
  %s38 = scalar_lea.vmem %s0, 96
  %v39 = vld [vmem:[%s38] sm:$0xff]
  %v40 = vld [vmem:[%s38 + $0x8] sm:$0xff]
  %v41 = vadd.f32 %v36, %v39
  %v42 = vadd.f32 %v37, %v40
  %s43 = scalar_lea.vmem %s0, 112
  %v44 = vld [vmem:[%s43] sm:$0xff]
  %v45 = vld [vmem:[%s43 + $0x8] sm:$0xff]
  %v46 = vadd.f32 %v41, %v44
  %v47 = vadd.f32 %v42, %v45
  %s48 = scalar_lea.vmem %s0, 128
  %v49 = vld [vmem:[%s48] sm:$0xff]
  %v50 = vld [vmem:[%s48 + $0x8] sm:$0xff]
  %v51 = vadd.f32 %v46, %v49
  %v52 = vadd.f32 %v47, %v50
  %v53 = vld [vmem:[%s1] sm:$0x1]
  %v55 = vperm.slane %v53, 0
  %v57 = vmul.f32 %v51, %v55
  %v58 = vmul.f32 %v52, %v55
  %vm59 = vcmask 261120
  %60 = vst.msk [vmem:[%s2] sm:$0xff] %vm59, %v57
  %61 = vst.msk [vmem:[%s2 + $0x8] sm:$0xff] %vm59, %v58
  // Predicated region
  $region10: #{_lambda_.60} parent=0 // pred_check
    _
  $region11: #{_lambda_.60} parent=0 // pred_check_branch
    %63 = sbr.rel (0) target = $region13
  $region12: #{_lambda_.60} parent=0 // pred_region
    _
  $region13: #{_lambda_.60} parent=0 // pred_fallthru
    _
  // Predicated region
  $region14: #{_lambda_.60} parent=0 // pred_check
    _
  $region15: #{_lambda_.60} parent=0 // pred_check_branch
    %65 = sbr.rel (0) target = $region17
  $region16: #{_lambda_.60} parent=0 // pred_region
    _
  $region17: #{_lambda_.60} parent=0 // pred_fallthru
    _

// kernel: _lambda_.63
$region0: #{_lambda_.63}
  #allocation0 [shape = 'u32[]', space=smem, size = 0x4, offset = 0x4, fixed_abs, tag = 'smem constant byte address 0x4 - core index']
  #allocation1 [shape = 'u32[72,128]{1,0:T(1,128)}', space=vmem, size = 0x9000, scoped, tag = 'internal scratch']
  %s0 = inlined_call_operand.vmem [shape: f32[64,32], index: 0, kind: input, shape index: {}]
  %s1 = inlined_call_operand.vmem [shape: f32[32,2], index: 1, kind: input, shape index: {}]
  %s2 = inlined_call_operand.vmem [shape: f32[10,64], index: 2, kind: input, shape index: {}]
  %s3 = inlined_call_operand.vmem [shape: f32[10,1], index: 3, kind: input, shape index: {}]
  %s4 = inlined_call_operand.vmem [shape: f32[10,2], index: 4, kind: output, shape index: {}]
  %s5 = sld [smem:[#allocation0]]
  $region26: #{_lambda_.63} parent=0
    _
  %s7 = ssub.s32 1, %s5
  %s8 = scalar_select 0, %s7, %s5
  // Predicated region
  $region2: #{_lambda_.63} parent=0 // pred_check
    _
  $region3: #{_lambda_.63} parent=0 // pred_check_branch
    %10 = sbr.rel (0) target = $region5
  $region4: #{_lambda_.63} parent=0 // pred_region
    _
  $region5: #{_lambda_.63} parent=0 // pred_fallthru
    _
  // Predicated region
  $region6: #{_lambda_.63} parent=0 // pred_check
    _
  $region7: #{_lambda_.63} parent=0 // pred_check_branch
    %12 = sbr.rel (0) target = $region9
  $region8: #{_lambda_.63} parent=0 // pred_region
    _
  $region9: #{_lambda_.63} parent=0 // pred_fallthru
    _
  // Predicated region
  $region10: #{_lambda_.63} parent=0 // pred_check
    _
  $region11: #{_lambda_.63} parent=0 // pred_check_branch
    %14 = sbr.rel (0) target = $region13
  $region12: #{_lambda_.63} parent=0 // pred_region
    _
  $region13: #{_lambda_.63} parent=0 // pred_fallthru
    _
  // Predicated region
  $region14: #{_lambda_.63} parent=0 // pred_check
    _
  $region15: #{_lambda_.63} parent=0 // pred_check_branch
    %16 = sbr.rel (0) target = $region17
  $region16: #{_lambda_.63} parent=0 // pred_region
    _
  $region17: #{_lambda_.63} parent=0 // pred_fallthru
    _
  %v17 = vld [vmem:[%s0] sm:$0xff]
  %v18 = vld [vmem:[%s0 + $0x8] sm:$0xff]
  %v19 = vld [vmem:[%s0 + $0x10] sm:$0xff]
  %v20 = vld [vmem:[%s0 + $0x18] sm:$0xff]
  %v21 = vld [vmem:[%s0 + $0x20] sm:$0xff]
  %v22 = vld [vmem:[%s0 + $0x28] sm:$0xff]
  %v23 = vld [vmem:[%s0 + $0x30] sm:$0xff]
  %v24 = vld [vmem:[%s0 + $0x38] sm:$0xff]
  %v25 = vld [vmem:[%s1] sm:$0xff]
  %v26 = vld [vmem:[%s1 + $0x8] sm:$0xff]
  %v27 = vld [vmem:[%s1 + $0x10] sm:$0xff]
  %v28 = vld [vmem:[%s1 + $0x18] sm:$0xff]
  %vm29 = vcmask 261120
  %v31 = vsel %vm29, %v17, 0
  %v34 = vsel %vm29, %v18, 0
  %v37 = vsel %vm29, %v19, 0
  %v40 = vsel %vm29, %v20, 0
  %v43 = vsel %vm29, %v21, 0
  %v46 = vsel %vm29, %v22, 0
  %v49 = vsel %vm29, %v23, 0
  %v52 = vsel %vm29, %v24, 0
  %54 = vmatpush.msra.mxu0 0.0
  %55 = vmatpush.msra.mxu0 0.0
  %56 = vmatpush.msra.mxu0 0.0
  %57 = vmatpush.msra.mxu0 0.0
  %58 = vmatpush.msra.mxu0 0.0
  %59 = vmatpush.msra.mxu0 0.0
  %60 = vmatpush.msra.mxu0 0.0
  %61 = vmatpush.msra.mxu0 0.0
  %62 = vmatpush.msra.mxu0 0.0
  %63 = vmatpush.msra.mxu0 0.0
  %64 = vmatpush.msra.mxu0 0.0
  %65 = vmatpush.msra.mxu0 0.0
  %66 = vmatpush.msra.mxu0 %v28
  %67 = vmatpush.msra.mxu0 %v27
  %68 = vmatpush.msra.mxu0 %v26
  %69 = vmatpush.msra.mxu0 %v25
  %70 = vmatmul.f32.gmra.mxu0 %v31
  %v71 = vpop.f32.mrf.mxu0
  %v72 = vadd.f32 0.0, %v71
  %73 = vmatmul.f32.gmra.mxu0 %v34
  %v74 = vpop.f32.mrf.mxu0
  %v75 = vadd.f32 0.0, %v74
  %76 = vmatmul.f32.gmra.mxu0 %v37
  %v77 = vpop.f32.mrf.mxu0
  %v78 = vadd.f32 0.0, %v77
  %79 = vmatmul.f32.gmra.mxu0 %v40
  %v80 = vpop.f32.mrf.mxu0
  %v81 = vadd.f32 0.0, %v80
  %82 = vmatmul.f32.gmra.mxu0 %v43
  %v83 = vpop.f32.mrf.mxu0
  %v84 = vadd.f32 0.0, %v83
  %85 = vmatmul.f32.gmra.mxu0 %v46
  %v86 = vpop.f32.mrf.mxu0
  %v87 = vadd.f32 0.0, %v86
  %88 = vmatmul.f32.gmra.mxu0 %v49
  %v89 = vpop.f32.mrf.mxu0
  %v90 = vadd.f32 0.0, %v89
  %91 = vmatmul.f32.gmra.mxu0 %v52
  %v92 = vpop.f32.mrf.mxu0
  %v93 = vadd.f32 0.0, %v92
  %94 = vdwg.mxu0
  %v95 = vld [vmem:[%s2] sm:$0xff]
  %v96 = vld [vmem:[%s2 + $0x8] sm:$0x3]
  %v97 = vld [vmem:[%s3] sm:$0xff]
  %v98 = vld [vmem:[%s3 + $0x8] sm:$0x3]
  %100 = vset.pattern.permute.xlu0 0
  %101 = vperm.xlu0 %100, %v97
  %v102 = vpop.permute.xlu0 %101
  %105 = vset.pattern.permute.xlu0 0
  %106 = vperm.xlu0 %105, %v98
  %v107 = vpop.permute.xlu0 %106
  %vm109 = vcmask 523264
  %v111 = vsel %vm109, %v95, 0
  %v114 = vsel %vm109, %v96, 0
  %116 = vmatpush.msra.mxu0 0.0
  %117 = vmatpush.msra.mxu0 0.0
  %118 = vmatpush.msra.mxu0 0.0
  %119 = vmatpush.msra.mxu0 0.0
  %120 = vmatpush.msra.mxu0 0.0
  %121 = vmatpush.msra.mxu0 0.0
  %122 = vmatpush.msra.mxu0 0.0
  %123 = vmatpush.msra.mxu0 0.0
  %124 = vmatpush.msra.mxu0 %v93
  %125 = vmatpush.msra.mxu0 %v90
  %126 = vmatpush.msra.mxu0 %v87
  %127 = vmatpush.msra.mxu0 %v84
  %128 = vmatpush.msra.mxu0 %v81
  %129 = vmatpush.msra.mxu0 %v78
  %130 = vmatpush.msra.mxu0 %v75
  %131 = vmatpush.msra.mxu0 %v72
  %132 = vmatmul.f32.gmra.mxu0 %v111
  %v133 = vpop.f32.mrf.mxu0
  %v134 = vadd.f32 %v102, %v133
  %135 = vmatmul.f32.gmra.mxu0 %v114
  %v136 = vpop.f32.mrf.mxu0
  %v137 = vadd.f32 %v107, %v136
  %138 = vdwg.mxu0
  %vm139 = vcmask 15360
  %140 = vst.msk [vmem:[%s4] sm:$0xff] %vm139, %v134
  %vm141 = vcmask 9216
  %142 = vst.msk [vmem:[%s4 + $0x8] sm:$0x3] %vm141, %v137
  // Predicated region
  $region18: #{_lambda_.63} parent=0 // pred_check
    _
  $region19: #{_lambda_.63} parent=0 // pred_check_branch
    %144 = sbr.rel (0) target = $region21
  $region20: #{_lambda_.63} parent=0 // pred_region
    _
  $region21: #{_lambda_.63} parent=0 // pred_fallthru
    _
  // Predicated region
  $region22: #{_lambda_.63} parent=0 // pred_check
    _
  $region23: #{_lambda_.63} parent=0 // pred_check_branch
    %146 = sbr.rel (0) target = $region25
  $region24: #{_lambda_.63} parent=0 // pred_region
    _
  $region25: #{_lambda_.63} parent=0 // pred_fallthru
    _

</llo_original>
